<compile_context>
chip_gen: v5e
topology: v5e:2x2
jax: 0.10.0
libtpu: 0.0.40
codegen_flags: <defaults>
</compile_context>

<pallas_src>
import functools

import jax
import jax.numpy as jnp
from jax.experimental import pallas as pl
from jax.experimental.pallas import tpu as pltpu


# ----------------------------- small helpers --------------------------------

def _round_up(x, m):
    return ((x + m - 1) // m) * m


def _pad2(x, rows, cols):
    pr, pc = rows - x.shape[0], cols - x.shape[1]
    if pr or pc:
        x = jnp.pad(x, ((0, pr), (0, pc)))
    return x


_VMEM_LIMIT = 32 * 1024 * 1024


# ----------------------------- fused matmul kernel ---------------------------

def _make_matmul_kernel(fuse_in_bn: bool, fuse_out_bn: bool, add_bias: bool):
    """Tiled matmul with optional fused BN+ReLU prologue (on A columns),
    BN+ReLU epilogue (on output columns), and bias epilogue."""

    def kernel(*refs):
        refs = list(refs)
        a_ref = refs.pop(0)
        if fuse_in_bn:
            si_ref = refs.pop(0)
            ti_ref = refs.pop(0)
        b_ref = refs.pop(0)
        if fuse_out_bn:
            so_ref = refs.pop(0)
            to_ref = refs.pop(0)
        if add_bias:
            bias_ref = refs.pop(0)
        o_ref, acc_ref = refs

        @pl.when(pl.program_id(2) == 0)
        def _init():
            acc_ref[...] = jnp.zeros_like(acc_ref)

        a = a_ref[...]
        if fuse_in_bn:
            a = jnp.maximum(
                a.astype(jnp.float32) * si_ref[...] + ti_ref[...], 0.0
            ).astype(jnp.bfloat16)
        acc_ref[...] += jnp.dot(a, b_ref[...],
                                preferred_element_type=jnp.float32)

        @pl.when(pl.program_id(2) == pl.num_programs(2) - 1)
        def _finalize():
            out = acc_ref[...]
            if fuse_out_bn:
                out = jnp.maximum(out * so_ref[...] + to_ref[...], 0.0)
            if add_bias:
                out = out + bias_ref[...]
            o_ref[...] = out.astype(o_ref.dtype)

    return kernel


def fused_matmul(a, b, *, scale_in=None, shift_in=None,
                 scale_out=None, shift_out=None, bias=None,
                 out_dtype=jnp.bfloat16, tm=256, tn=256, tk=512):
    """out = epilogue( prologue(a) @ b ).  a:(M,K)  b:(K,N)  -> (M,N)[:M,:N]

    prologue: relu(a * scale_in + shift_in) per K-column   (inference BN+ReLU)
    epilogue: relu(out * scale_out + shift_out) per N-column and/or +bias.
    Inputs are zero-padded to tile multiples; zero scale/shift padding keeps the
    padded columns contributing exactly 0.
    """
    M, K = a.shape
    K2, N = b.shape
    assert K == K2

    tm = min(tm, _round_up(M, 16))
    tn = min(tn, _round_up(N, 128))
    tk = min(tk, _round_up(K, 128))
    Mp, Kp, Np = _round_up(M, tm), _round_up(K, tk), _round_up(N, tn)

    fuse_in = scale_in is not None
    fuse_out = scale_out is not None
    add_bias = bias is not None

    operands = [_pad2(a, Mp, Kp).astype(jnp.bfloat16)]
    in_specs = [pl.BlockSpec((tm, tk), lambda i, j, k: (i, k))]
    if fuse_in:
        operands += [_pad2(scale_in, 1, Kp), _pad2(shift_in, 1, Kp)]
        in_specs += [pl.BlockSpec((1, tk), lambda i, j, k: (0, k)),
                     pl.BlockSpec((1, tk), lambda i, j, k: (0, k))]
    operands.append(_pad2(b, Kp, Np).astype(jnp.bfloat16))
    in_specs.append(pl.BlockSpec((tk, tn), lambda i, j, k: (k, j)))
    if fuse_out:
        operands += [_pad2(scale_out, 1, Np), _pad2(shift_out, 1, Np)]
        in_specs += [pl.BlockSpec((1, tn), lambda i, j, k: (0, j)),
                     pl.BlockSpec((1, tn), lambda i, j, k: (0, j))]
    if add_bias:
        operands.append(_pad2(bias, 1, Np))
        in_specs.append(pl.BlockSpec((1, tn), lambda i, j, k: (0, j)))

    kernel = _make_matmul_kernel(fuse_in, fuse_out, add_bias)
    flops = 2 * Mp * Np * Kp
    bytes_accessed = 2 * (Mp * Kp + Kp * Np) + Mp * Np * jnp.dtype(out_dtype).itemsize

    out = pl.pallas_call(
        kernel,
        out_shape=jax.ShapeDtypeStruct((Mp, Np), out_dtype),
        grid_spec=pltpu.PrefetchScalarGridSpec(
            num_scalar_prefetch=0,
            grid=(Mp // tm, Np // tn, Kp // tk),
            in_specs=in_specs,
            out_specs=pl.BlockSpec((tm, tn), lambda i, j, k: (i, j)),
            scratch_shapes=[pltpu.VMEM((tm, tn), jnp.float32)]),
        compiler_params=pltpu.CompilerParams(
            dimension_semantics=("parallel", "parallel", "arbitrary"),
            vmem_limit_bytes=_VMEM_LIMIT),
        cost_estimate=pl.CostEstimate(flops=int(flops), transcendentals=0,
                                      bytes_accessed=int(bytes_accessed)),
    )(*operands)
    return out[:M, :N]


# ----------------------------- pooling kernels -------------------------------

def _reduce_max_kernel(x_ref, o_ref):
    o_ref[...] = jnp.max(x_ref[...], axis=0)


def _reduce_mean_kernel(x_ref, o_ref):
    o_ref[...] = jnp.mean(x_ref[...].astype(jnp.float32), axis=0).astype(o_ref.dtype)


def pallas_window_reduce(stacked, op, tm=1024):
    """stacked: (K, M, C) -> (M, C) max/mean over K, tiled over M rows."""
    K, M, C = stacked.shape
    tm = min(tm, _round_up(M, 16))
    Mp = _round_up(M, tm)
    if Mp != M:
        stacked = jnp.pad(stacked, ((0, 0), (0, Mp - M), (0, 0)))
    kernel = _reduce_max_kernel if op == "max" else _reduce_mean_kernel
    out = pl.pallas_call(
        kernel,
        out_shape=jax.ShapeDtypeStruct((Mp, C), stacked.dtype),
        grid_spec=pltpu.PrefetchScalarGridSpec(
            num_scalar_prefetch=0,
            grid=(Mp // tm,),
            in_specs=[pl.BlockSpec((K, tm, C), lambda i: (0, i, 0))],
            out_specs=pl.BlockSpec((tm, C), lambda i: (i, 0))),
        compiler_params=pltpu.CompilerParams(
            dimension_semantics=("parallel",),
            vmem_limit_bytes=_VMEM_LIMIT),
    )(stacked)
    return out[:M]


def max_pool_3x3_s2_p1(x):
    # Input is post-ReLU (>= 0), so zero padding is equivalent to -inf padding.
    # TODO(synk): window extraction still materializes 9 shifted copies via XLA;
    # an in-kernel strided window read would cut that HBM traffic further.
    N, H, W, C = x.shape
    xp = jnp.pad(x, ((0, 0), (1, 1), (1, 1), (0, 0)))
    Ho = (H + 2 - 3) // 2 + 1
    Wo = (W + 2 - 3) // 2 + 1
    wins = [xp[:, i:i + Ho * 2:2, j:j + Wo * 2:2, :]
            for i in range(3) for j in range(3)]
    stacked = jnp.stack(wins, axis=0).reshape(9, N * Ho * Wo, C)
    return pallas_window_reduce(stacked, "max").reshape(N, Ho, Wo, C)


def avg_pool_2x2_s2(x):
    N, H, W, C = x.shape
    Ho, Wo = H // 2, W // 2
    wins = [x[:, i:i + Ho * 2:2, j:j + Wo * 2:2, :]
            for i in range(2) for j in range(2)]
    stacked = jnp.stack(wins, axis=0).reshape(4, N * Ho * Wo, C)
    return pallas_window_reduce(stacked, "mean").reshape(N, Ho, Wo, C)


# --------------------- fused norm5 + ReLU + global avg pool -------------------

def _make_gap_kernel(inv_hw):
    def kernel(x_ref, s_ref, t_ref, o_ref, acc_ref):
        @pl.when(pl.program_id(0) == 0)
        def _init():
            acc_ref[...] = jnp.zeros_like(acc_ref)

        x = x_ref[...].astype(jnp.float32)
        x = jnp.maximum(x * s_ref[...] + t_ref[...], 0.0)   # BN + ReLU
        acc_ref[...] += jnp.sum(x, axis=1)

        @pl.when(pl.program_id(0) == pl.num_programs(0) - 1)
        def _finalize():
            o_ref[...] = (acc_ref[...] * inv_hw).astype(o_ref.dtype)
    return kernel


def bn_relu_global_avg_pool(x, scale, shift):
    """relu(x * scale + shift) followed by mean over H*W.  x: (N,H,W,C) -> (N,C) f32."""
    N, H, W, C = x.shape
    HW = H * W
    x3 = x.reshape(N, HW, C)
    # Chunk the HW (reduction) axis with an exact divisor so no zero padding
    # ever passes through the fused BN shift.
    thw = HW
    for cand in (2048, 1024, 512, 256, 128, 64, 32, 16):
        if cand <= HW and HW % cand == 0:
            thw = cand
            break
    out = pl.pallas_call(
        _make_gap_kernel(1.0 / HW),
        out_shape=jax.ShapeDtypeStruct((N, C), jnp.float32),
        grid_spec=pltpu.PrefetchScalarGridSpec(
            num_scalar_prefetch=0,
            grid=(HW // thw,),
            in_specs=[pl.BlockSpec((N, thw, C), lambda i: (0, i, 0)),
                      pl.BlockSpec((1, C), lambda i: (0, 0)),
                      pl.BlockSpec((1, C), lambda i: (0, 0))],
            out_specs=pl.BlockSpec((N, C), lambda i: (0, 0)),
            scratch_shapes=[pltpu.VMEM((N, C), jnp.float32)]),
        compiler_params=pltpu.CompilerParams(
            dimension_semantics=("arbitrary",),
            vmem_limit_bytes=_VMEM_LIMIT),
    )(x3, scale, shift)
    return out


# ----------------------------- conv glue (NHWC) -------------------------------

def _im2col(x, k, stride, pad):
    N, H, W, C = x.shape
    if pad:
        x = jnp.pad(x, ((0, 0), (pad, pad), (pad, pad), (0, 0)))
    Ho = (H + 2 * pad - k) // stride + 1
    Wo = (W + 2 * pad - k) // stride + 1
    cols = [x[:, i:i + Ho * stride:stride, j:j + Wo * stride:stride, :]
            for i in range(k) for j in range(k)]
    patches = jnp.concatenate(cols, axis=-1)            # (N,Ho,Wo,k*k*C)
    return patches.reshape(N * Ho * Wo, k * k * C), (N, Ho, Wo)


def conv1x1(x, w, **fuse):
    """1x1 conv = plain matmul (no im2col), with optional fused BN+ReLU pro/epilogue."""
    N, H, W, C = x.shape
    out = fused_matmul(x.reshape(N * H * W, C), w, **fuse)
    return out.reshape(N, H, W, w.shape[1])


def conv_kxk(x, w, k, stride, pad, **fuse):
    a, (N, Ho, Wo) = _im2col(x, k, stride, pad)
    out = fused_matmul(a, w, **fuse)
    return out.reshape(N, Ho, Wo, w.shape[1])


# ----------------------------- parameter init --------------------------------

def _conv_w(key, cin, cout, k):
    # He-style init, stored as (k*k*cin, cout) with (kh,kw,cin) row ordering, bf16.
    w = jax.random.normal(key, (cout, cin, k, k), jnp.float32)
    w = w * (2.0 / (cin * k * k)) ** 0.5
    return jnp.transpose(w, (2, 3, 1, 0)).reshape(k * k * cin, cout).astype(jnp.bfloat16)


def _bn(key, c, eps=1e-5):
    k1, k2, k3, k4 = jax.random.split(key, 4)
    gamma = jax.random.uniform(k1, (c,), jnp.float32, 0.5, 1.5)
    beta = 0.1 * jax.random.normal(k2, (c,), jnp.float32)
    mean = 0.1 * jax.random.normal(k3, (c,), jnp.float32)
    var = jax.random.uniform(k4, (c,), jnp.float32, 0.5, 1.5)
    scale = gamma / jnp.sqrt(var + eps)
    shift = beta - mean * scale
    return scale.reshape(1, c), shift.reshape(1, c)


def init_params(key, in_ch, num_init, growth, block_config, bn_size, num_classes):
    keys = iter(jax.random.split(key, 512))
    p = {}
    p["conv0_w"] = _conv_w(next(keys), in_ch, num_init, 7)
    p["norm0"] = _bn(next(keys), num_init)
    c = num_init
    for bi, n_layers in enumerate(block_config):
        for li in range(n_layers):
            lp = {}
            lp["n1"] = _bn(next(keys), c)
            lp["w1"] = _conv_w(next(keys), c, bn_size * growth, 1)
            lp["n2"] = _bn(next(keys), bn_size * growth)
            lp["w2"] = _conv_w(next(keys), bn_size * growth, growth, 3)
            p[f"b{bi}l{li}"] = lp
            c += growth
        if bi != len(block_config) - 1:
            tp = {}
            tp["n"] = _bn(next(keys), c)
            tp["w"] = _conv_w(next(keys), c, c // 2, 1)
            p[f"t{bi}"] = tp
            c = c // 2
    p["norm5"] = _bn(next(keys), c)
    kw, kb = jax.random.split(next(keys))
    p["cls_w"] = (0.05 * jax.random.normal(kw, (c, num_classes), jnp.float32)).astype(jnp.bfloat16)
    p["cls_b"] = 0.05 * jax.random.normal(kb, (1, num_classes), jnp.float32)
    return p


# ----------------------------- forward pass -----------------------------------

def densenet_forward(x_nchw, params, block_config):
    x = jnp.transpose(x_nchw, (0, 2, 3, 1)).astype(jnp.bfloat16)   # NCHW -> NHWC, bf16

    # conv0 with norm0 + relu0 fused as a matmul epilogue
    s0, t0 = params["norm0"]
    x = conv_kxk(x, params["conv0_w"], 7, 2, 3, scale_out=s0, shift_out=t0)
    x = max_pool_3x3_s2_p1(x)                                      # pool0

    # TODO(synk): the growing jnp.concatenate could be replaced by a preallocated
    # channel slab + input_output_aliases to avoid re-copying the feature map.
    for bi, n_layers in enumerate(block_config):
        for li in range(n_layers):
            lp = params[f"b{bi}l{li}"]
            s1, t1 = lp["n1"]
            s2, t2 = lp["n2"]
            # 1x1 conv with norm1+relu fused as prologue and norm2+relu as epilogue
            h = conv1x1(x, lp["w1"], scale_in=s1, shift_in=t1,
                        scale_out=s2, shift_out=t2)
            # 3x3 conv (input is already BN+ReLU'd, so zero padding is correct)
            h = conv_kxk(h, lp["w2"], 3, 1, 1)
            x = jnp.concatenate([x, h], axis=-1)
        if bi != len(block_config) - 1:
            tp = params[f"t{bi}"]
            s, t = tp["n"]
            # transition: BN+ReLU fused as prologue of the 1x1 conv, then avg pool
            x = conv1x1(x, tp["w"], scale_in=s, shift_in=t)
            x = avg_pool_2x2_s2(x)

    # norm5 + wrapper F.relu + AvgPool().view(N,-1), all fused
    s5, t5 = params["norm5"]
    x = bn_relu_global_avg_pool(x, s5, t5)                         # (N, C) f32

    # nn.Linear classifier (bias fused in the matmul epilogue)
    return fused_matmul(x, params["cls_w"], bias=params["cls_b"],
                        out_dtype=jnp.float32)


# ----------------------------- main --------------------------------------------

if __name__ == "__main__":
    # scaled-down densenet121-style config (structure identical, sizes reduced)
    IN_CH = 3
    NUM_INIT = 16
    GROWTH = 8
    BLOCK_CONFIG = (2, 2)
    BN_SIZE = 4
    NUM_CLASSES = 5

    key = jax.random.PRNGKey(0)
    kx, kp = jax.random.split(key)
    x = jax.random.normal(kx, (2, IN_CH, 32, 32), jnp.float32)     # NCHW like PyTorch
    params = init_params(kp, IN_CH, NUM_INIT, GROWTH, BLOCK_CONFIG,
                         BN_SIZE, NUM_CLASSES)

    fwd = jax.jit(functools.partial(densenet_forward, block_config=BLOCK_CONFIG))
    logits = fwd(x, params)
    jax.block_until_ready(logits)
    assert logits.shape == (2, NUM_CLASSES) and logits.dtype == jnp.float32
    print("KERNEL_OK")
</pallas_src>

<mosaic_0001>
module attributes {stable_mosaic.version = 11 : i64} {
  func.func @kernel(%arg0: i32, %arg1: i32, %arg2: i32, %arg3: memref<256x256xbf16, #tpu.memory_space<vmem>>, %arg4: memref<256x128xbf16, #tpu.memory_space<vmem>>, %arg5: memref<1x128xf32, #tpu.memory_space<vmem>>, %arg6: memref<1x128xf32, #tpu.memory_space<vmem>>, %arg7: memref<256x128xbf16, #tpu.memory_space<vmem>>, %arg8: memref<256x128xf32, #tpu.memory_space<vmem>>) attributes {dimension_semantics = [#tpu.dimension_semantics<parallel>, #tpu.dimension_semantics<parallel>, #tpu.dimension_semantics<arbitrary>], iteration_bounds = array<i64: 2, 1, 1>, scalar_prefetch = 0 : i64, scratch_operands = 1 : i64, tpu.core_type = #tpu.core_type<tc>, window_params = [{transform_indices = @transform_0, window_bounds = array<i64: 256, 256>}, {transform_indices = @transform_1, window_bounds = array<i64: 256, 128>}, {transform_indices = @transform_2, window_bounds = array<i64: 1, 128>}, {transform_indices = @transform_3, window_bounds = array<i64: 1, 128>}, {transform_indices = @transform_4, window_bounds = array<i64: 256, 128>}]} {
    %c0_i32 = arith.constant 0 : i32
    %0 = arith.cmpi eq, %arg2, %c0_i32 : i32
    %1 = arith.extui %0 : i1 to i32
    %c0_i32_0 = arith.constant 0 : i32
    %2 = arith.cmpi ne, %1, %c0_i32_0 : i32
    scf.if %2 {
      %cst_10 = arith.constant 0.000000e+00 : f32
      %12 = vector.broadcast %cst_10 : f32 to vector<256x128xf32>
      %c0_11 = arith.constant 0 : index
      %c0_12 = arith.constant 0 : index
      %13 = vector.load %arg8[%c0_11, %c0_12] : memref<256x128xf32, #tpu.memory_space<vmem>>, vector<256x128xf32>
      tpu.vector_store %arg8[%c0_11, %c0_12], %12 {strides = array<i32>} : memref<256x128xf32, #tpu.memory_space<vmem>>, vector<256x128xf32>,
    } else {
    }
    %c0 = arith.constant 0 : index
    %c0_1 = arith.constant 0 : index
    %3 = vector.load %arg3[%c0, %c0_1] : memref<256x256xbf16, #tpu.memory_space<vmem>>, vector<256x256xbf16>
    %c0_2 = arith.constant 0 : index
    %c0_3 = arith.constant 0 : index
    %4 = vector.load %arg8[%c0_2, %c0_3] : memref<256x128xf32, #tpu.memory_space<vmem>>, vector<256x128xf32>
    %c0_4 = arith.constant 0 : index
    %c0_5 = arith.constant 0 : index
    %5 = vector.load %arg4[%c0_4, %c0_5] : memref<256x128xbf16, #tpu.memory_space<vmem>>, vector<256x128xbf16>
    %cst = arith.constant dense<0.000000e+00> : vector<256x128xf32>
    %6 = tpu.matmul %3, %5, %cst {dimension_numbers = #tpu.dot_dimension_numbers<[1], [0], [0], [1], [0, 0, 1, 1], [], []>} : vector<256x256xbf16>, vector<256x128xbf16>, vector<256x128xf32> -> vector<256x128xf32>
    %7 = arith.addf %4, %6 : vector<256x128xf32>
    %c0_6 = arith.constant 0 : index
    %c0_7 = arith.constant 0 : index
    %8 = vector.load %arg8[%c0_6, %c0_7] : memref<256x128xf32, #tpu.memory_space<vmem>>, vector<256x128xf32>
    tpu.vector_store %arg8[%c0_6, %c0_7], %7 {strides = array<i32>} : memref<256x128xf32, #tpu.memory_space<vmem>>, vector<256x128xf32>,
    %c0_i32_8 = arith.constant 0 : i32
    %9 = arith.cmpi eq, %arg2, %c0_i32_8 : i32
    %10 = arith.extui %9 : i1 to i32
    %c0_i32_9 = arith.constant 0 : i32
    %11 = arith.cmpi ne, %10, %c0_i32_9 : i32
    scf.if %11 {
      %c0_10 = arith.constant 0 : index
      %c0_11 = arith.constant 0 : index
      %12 = vector.load %arg8[%c0_10, %c0_11] : memref<256x128xf32, #tpu.memory_space<vmem>>, vector<256x128xf32>
      %c0_12 = arith.constant 0 : index
      %c0_13 = arith.constant 0 : index
      %13 = vector.load %arg5[%c0_12, %c0_13] : memref<1x128xf32, #tpu.memory_space<vmem>>, vector<1x128xf32>
      %14 = vector.broadcast %13 : vector<1x128xf32> to vector<256x128xf32>
      %15 = arith.mulf %12, %14 : vector<256x128xf32>
      %c0_14 = arith.constant 0 : index
      %c0_15 = arith.constant 0 : index
      %16 = vector.load %arg6[%c0_14, %c0_15] : memref<1x128xf32, #tpu.memory_space<vmem>>, vector<1x128xf32>
      %17 = vector.broadcast %16 : vector<1x128xf32> to vector<256x128xf32>
      %18 = arith.addf %15, %17 : vector<256x128xf32>
      %cst_16 = arith.constant 0.000000e+00 : f32
      %19 = vector.broadcast %cst_16 : f32 to vector<256x128xf32>
      %20 = arith.maximumf %18, %19 : vector<256x128xf32>
      %21 = arith.truncf %20 : vector<256x128xf32> to vector<256x128xbf16>
      %c0_17 = arith.constant 0 : index
      %c0_18 = arith.constant 0 : index
      %22 = vector.load %arg7[%c0_17, %c0_18] : memref<256x128xbf16, #tpu.memory_space<vmem>>, vector<256x128xbf16>
      tpu.vector_store %arg7[%c0_17, %c0_18], %21 {strides = array<i32>} : memref<256x128xbf16, #tpu.memory_space<vmem>>, vector<256x128xbf16>,
    } else {
    }
    return
  }
  func.func @transform_0(%arg0: i32, %arg1: i32, %arg2: i32) -> (i32, i32) {
    %c0_i32 = arith.constant 0 : i32
    return %arg0, %arg2 : i32, i32
  }
  func.func @transform_1(%arg0: i32, %arg1: i32, %arg2: i32) -> (i32, i32) {
    %c0_i32 = arith.constant 0 : i32
    return %arg2, %arg1 : i32, i32
  }
  func.func @transform_2(%arg0: i32, %arg1: i32, %arg2: i32) -> (i32, i32) {
    %c0_i32 = arith.constant 0 : i32
    %c0_i32_0 = arith.constant 0 : i32
    return %c0_i32, %arg1 : i32, i32
  }
  func.func @transform_3(%arg0: i32, %arg1: i32, %arg2: i32) -> (i32, i32) {
    %c0_i32 = arith.constant 0 : i32
    %c0_i32_0 = arith.constant 0 : i32
    return %c0_i32, %arg1 : i32, i32
  }
  func.func @transform_4(%arg0: i32, %arg1: i32, %arg2: i32) -> (i32, i32) {
    %c0_i32 = arith.constant 0 : i32
    return %arg0, %arg1 : i32, i32
  }
}

module attributes {stable_mosaic.version = 11 : i64} {
  func.func @_reduce_max_kernel(%arg0: i32, %arg1: memref<9x128x16xbf16, #tpu.memory_space<vmem>>, %arg2: memref<128x16xbf16, #tpu.memory_space<vmem>>) attributes {dimension_semantics = [#tpu.dimension_semantics<parallel>], iteration_bounds = array<i64: 1>, scalar_prefetch = 0 : i64, scratch_operands = 0 : i64, tpu.core_type = #tpu.core_type<tc>, window_params = [{transform_indices = @transform_0, window_bounds = array<i64: 9, 128, 16>}, {transform_indices = @transform_1, window_bounds = array<i64: 128, 16>}]} {
    %c0 = arith.constant 0 : index
    %c0_0 = arith.constant 0 : index
    %c0_1 = arith.constant 0 : index
    %0 = vector.load %arg1[%c0, %c0_0, %c0_1] : memref<9x128x16xbf16, #tpu.memory_space<vmem>>, vector<9x128x16xbf16>
    %cst = arith.constant dense<0xFF80> : vector<128x16xbf16>
    %1 = vector.multi_reduction <maximumf>, %0, %cst [0] : vector<9x128x16xbf16> to vector<128x16xbf16>
    %c0_2 = arith.constant 0 : index
    %c0_3 = arith.constant 0 : index
    %2 = vector.load %arg2[%c0_2, %c0_3] : memref<128x16xbf16, #tpu.memory_space<vmem>>, vector<128x16xbf16>
    tpu.vector_store %arg2[%c0_2, %c0_3], %1 {strides = array<i32>} : memref<128x16xbf16, #tpu.memory_space<vmem>>, vector<128x16xbf16>,
    return
  }
  func.func @transform_0(%arg0: i32) -> (i32, i32, i32) {
    %c0_i32 = arith.constant 0 : i32
    %c0_i32_0 = arith.constant 0 : i32
    %c0_i32_1 = arith.constant 0 : i32
    return %c0_i32, %arg0, %c0_i32_0 : i32, i32, i32
  }
  func.func @transform_1(%arg0: i32) -> (i32, i32) {
    %c0_i32 = arith.constant 0 : i32
    %c0_i32_0 = arith.constant 0 : i32
    return %arg0, %c0_i32 : i32, i32
  }
}

module attributes {stable_mosaic.version = 11 : i64} {
  func.func @kernel(%arg0: i32, %arg1: i32, %arg2: i32, %arg3: memref<128x128xbf16, #tpu.memory_space<vmem>>, %arg4: memref<1x128xf32, #tpu.memory_space<vmem>>, %arg5: memref<1x128xf32, #tpu.memory_space<vmem>>, %arg6: memref<128x128xbf16, #tpu.memory_space<vmem>>, %arg7: memref<1x128xf32, #tpu.memory_space<vmem>>, %arg8: memref<1x128xf32, #tpu.memory_space<vmem>>, %arg9: memref<128x128xbf16, #tpu.memory_space<vmem>>, %arg10: memref<128x128xf32, #tpu.memory_space<vmem>>) attributes {dimension_semantics = [#tpu.dimension_semantics<parallel>, #tpu.dimension_semantics<parallel>, #tpu.dimension_semantics<arbitrary>], iteration_bounds = array<i64: 1, 1, 1>, scalar_prefetch = 0 : i64, scratch_operands = 1 : i64, tpu.core_type = #tpu.core_type<tc>, window_params = [{transform_indices = @transform_0, window_bounds = array<i64: 128, 128>}, {transform_indices = @transform_1, window_bounds = array<i64: 1, 128>}, {transform_indices = @transform_2, window_bounds = array<i64: 1, 128>}, {transform_indices = @transform_3, window_bounds = array<i64: 128, 128>}, {transform_indices = @transform_4, window_bounds = array<i64: 1, 128>}, {transform_indices = @transform_5, window_bounds = array<i64: 1, 128>}, {transform_indices = @transform_6, window_bounds = array<i64: 128, 128>}]} {
    %c0_i32 = arith.constant 0 : i32
    %0 = arith.cmpi eq, %arg2, %c0_i32 : i32
    %1 = arith.extui %0 : i1 to i32
    %c0_i32_0 = arith.constant 0 : i32
    %2 = arith.cmpi ne, %1, %c0_i32_0 : i32
    scf.if %2 {
      %cst_15 = arith.constant 0.000000e+00 : f32
      %22 = vector.broadcast %cst_15 : f32 to vector<128x128xf32>
      %c0_16 = arith.constant 0 : index
      %c0_17 = arith.constant 0 : index
      %23 = vector.load %arg10[%c0_16, %c0_17] : memref<128x128xf32, #tpu.memory_space<vmem>>, vector<128x128xf32>
      tpu.vector_store %arg10[%c0_16, %c0_17], %22 {strides = array<i32>} : memref<128x128xf32, #tpu.memory_space<vmem>>, vector<128x128xf32>,
    } else {
    }
    %c0 = arith.constant 0 : index
    %c0_1 = arith.constant 0 : index
    %3 = vector.load %arg3[%c0, %c0_1] : memref<128x128xbf16, #tpu.memory_space<vmem>>, vector<128x128xbf16>
    %4 = arith.extf %3 : vector<128x128xbf16> to vector<128x128xf32>
    %c0_2 = arith.constant 0 : index
    %c0_3 = arith.constant 0 : index
    %5 = vector.load %arg4[%c0_2, %c0_3] : memref<1x128xf32, #tpu.memory_space<vmem>>, vector<1x128xf32>
    %6 = vector.broadcast %5 : vector<1x128xf32> to vector<128x128xf32>
    %7 = arith.mulf %4, %6 : vector<128x128xf32>
    %c0_4 = arith.constant 0 : index
    %c0_5 = arith.constant 0 : index
    %8 = vector.load %arg5[%c0_4, %c0_5] : memref<1x128xf32, #tpu.memory_space<vmem>>, vector<1x128xf32>
    %9 = vector.broadcast %8 : vector<1x128xf32> to vector<128x128xf32>
    %10 = arith.addf %7, %9 : vector<128x128xf32>
    %cst = arith.constant 0.000000e+00 : f32
    %11 = vector.broadcast %cst : f32 to vector<128x128xf32>
    %12 = arith.maximumf %10, %11 : vector<128x128xf32>
    %13 = arith.truncf %12 : vector<128x128xf32> to vector<128x128xbf16>
    %c0_6 = arith.constant 0 : index
    %c0_7 = arith.constant 0 : index
    %14 = vector.load %arg10[%c0_6, %c0_7] : memref<128x128xf32, #tpu.memory_space<vmem>>, vector<128x128xf32>
    %c0_8 = arith.constant 0 : index
    %c0_9 = arith.constant 0 : index
    %15 = vector.load %arg6[%c0_8, %c0_9] : memref<128x128xbf16, #tpu.memory_space<vmem>>, vector<128x128xbf16>
    %cst_10 = arith.constant dense<0.000000e+00> : vector<128x128xf32>
    %16 = tpu.matmul %13, %15, %cst_10 {dimension_numbers = #tpu.dot_dimension_numbers<[1], [0], [0], [1], [0, 0, 1, 1], [], []>} : vector<128x128xbf16>, vector<128x128xbf16>, vector<128x128xf32> -> vector<128x128xf32>
    %17 = arith.addf %14, %16 : vector<128x128xf32>
    %c0_11 = arith.constant 0 : index
    %c0_12 = arith.constant 0 : index
    %18 = vector.load %arg10[%c0_11, %c0_12] : memref<128x128xf32, #tpu.memory_space<vmem>>, vector<128x128xf32>
    tpu.vector_store %arg10[%c0_11, %c0_12], %17 {strides = array<i32>} : memref<128x128xf32, #tpu.memory_space<vmem>>, vector<128x128xf32>,
    %c0_i32_13 = arith.constant 0 : i32
    %19 = arith.cmpi eq, %arg2, %c0_i32_13 : i32
    %20 = arith.extui %19 : i1 to i32
    %c0_i32_14 = arith.constant 0 : i32
    %21 = arith.cmpi ne, %20, %c0_i32_14 : i32
    scf.if %21 {
      %c0_15 = arith.constant 0 : index
      %c0_16 = arith.constant 0 : index
      %22 = vector.load %arg10[%c0_15, %c0_16] : memref<128x128xf32, #tpu.memory_space<vmem>>, vector<128x128xf32>
      %c0_17 = arith.constant 0 : index
      %c0_18 = arith.constant 0 : index
      %23 = vector.load %arg7[%c0_17, %c0_18] : memref<1x128xf32, #tpu.memory_space<vmem>>, vector<1x128xf32>
      %24 = vector.broadcast %23 : vector<1x128xf32> to vector<128x128xf32>
      %25 = arith.mulf %22, %24 : vector<128x128xf32>
      %c0_19 = arith.constant 0 : index
      %c0_20 = arith.constant 0 : index
      %26 = vector.load %arg8[%c0_19, %c0_20] : memref<1x128xf32, #tpu.memory_space<vmem>>, vector<1x128xf32>
      %27 = vector.broadcast %26 : vector<1x128xf32> to vector<128x128xf32>
      %28 = arith.addf %25, %27 : vector<128x128xf32>
      %cst_21 = arith.constant 0.000000e+00 : f32
      %29 = vector.broadcast %cst_21 : f32 to vector<128x128xf32>
      %30 = arith.maximumf %28, %29 : vector<128x128xf32>
      %31 = arith.truncf %30 : vector<128x128xf32> to vector<128x128xbf16>
      %c0_22 = arith.constant 0 : index
      %c0_23 = arith.constant 0 : index
      %32 = vector.load %arg9[%c0_22, %c0_23] : memref<128x128xbf16, #tpu.memory_space<vmem>>, vector<128x128xbf16>
      tpu.vector_store %arg9[%c0_22, %c0_23], %31 {strides = array<i32>} : memref<128x128xbf16, #tpu.memory_space<vmem>>, vector<128x128xbf16>,
    } else {
    }
    return
  }
  func.func @transform_0(%arg0: i32, %arg1: i32, %arg2: i32) -> (i32, i32) {
    %c0_i32 = arith.constant 0 : i32
    return %arg0, %arg2 : i32, i32
  }
  func.func @transform_1(%arg0: i32, %arg1: i32, %arg2: i32) -> (i32, i32) {
    %c0_i32 = arith.constant 0 : i32
    %c0_i32_0 = arith.constant 0 : i32
    return %c0_i32, %arg2 : i32, i32
  }
  func.func @transform_2(%arg0: i32, %arg1: i32, %arg2: i32) -> (i32, i32) {
    %c0_i32 = arith.constant 0 : i32
    %c0_i32_0 = arith.constant 0 : i32
    return %c0_i32, %arg2 : i32, i32
  }
  func.func @transform_3(%arg0: i32, %arg1: i32, %arg2: i32) -> (i32, i32) {
    %c0_i32 = arith.constant 0 : i32
    return %arg2, %arg1 : i32, i32
  }
  func.func @transform_4(%arg0: i32, %arg1: i32, %arg2: i32) -> (i32, i32) {
    %c0_i32 = arith.constant 0 : i32
    %c0_i32_0 = arith.constant 0 : i32
    return %c0_i32, %arg1 : i32, i32
  }
  func.func @transform_5(%arg0: i32, %arg1: i32, %arg2: i32) -> (i32, i32) {
    %c0_i32 = arith.constant 0 : i32
    %c0_i32_0 = arith.constant 0 : i32
    return %c0_i32, %arg1 : i32, i32
  }
  func.func @transform_6(%arg0: i32, %arg1: i32, %arg2: i32) -> (i32, i32) {
    %c0_i32 = arith.constant 0 : i32
    return %arg0, %arg1 : i32, i32
  }
}

module attributes {stable_mosaic.version = 11 : i64} {
  func.func @kernel(%arg0: i32, %arg1: i32, %arg2: i32, %arg3: memref<128x384xbf16, #tpu.memory_space<vmem>>, %arg4: memref<384x128xbf16, #tpu.memory_space<vmem>>, %arg5: memref<128x128xbf16, #tpu.memory_space<vmem>>, %arg6: memref<128x128xf32, #tpu.memory_space<vmem>>) attributes {dimension_semantics = [#tpu.dimension_semantics<parallel>, #tpu.dimension_semantics<parallel>, #tpu.dimension_semantics<arbitrary>], iteration_bounds = array<i64: 1, 1, 1>, scalar_prefetch = 0 : i64, scratch_operands = 1 : i64, tpu.core_type = #tpu.core_type<tc>, window_params = [{transform_indices = @transform_0, window_bounds = array<i64: 128, 384>}, {transform_indices = @transform_1, window_bounds = array<i64: 384, 128>}, {transform_indices = @transform_2, window_bounds = array<i64: 128, 128>}]} {
    %c0_i32 = arith.constant 0 : i32
    %0 = arith.cmpi eq, %arg2, %c0_i32 : i32
    %1 = arith.extui %0 : i1 to i32
    %c0_i32_0 = arith.constant 0 : i32
    %2 = arith.cmpi ne, %1, %c0_i32_0 : i32
    scf.if %2 {
      %cst_10 = arith.constant 0.000000e+00 : f32
      %12 = vector.broadcast %cst_10 : f32 to vector<128x128xf32>
      %c0_11 = arith.constant 0 : index
      %c0_12 = arith.constant 0 : index
      %13 = vector.load %arg6[%c0_11, %c0_12] : memref<128x128xf32, #tpu.memory_space<vmem>>, vector<128x128xf32>
      tpu.vector_store %arg6[%c0_11, %c0_12], %12 {strides = array<i32>} : memref<128x128xf32, #tpu.memory_space<vmem>>, vector<128x128xf32>,
    } else {
    }
    %c0 = arith.constant 0 : index
    %c0_1 = arith.constant 0 : index
    %3 = vector.load %arg3[%c0, %c0_1] : memref<128x384xbf16, #tpu.memory_space<vmem>>, vector<128x384xbf16>
    %c0_2 = arith.constant 0 : index
    %c0_3 = arith.constant 0 : index
    %4 = vector.load %arg6[%c0_2, %c0_3] : memref<128x128xf32, #tpu.memory_space<vmem>>, vector<128x128xf32>
    %c0_4 = arith.constant 0 : index
    %c0_5 = arith.constant 0 : index
    %5 = vector.load %arg4[%c0_4, %c0_5] : memref<384x128xbf16, #tpu.memory_space<vmem>>, vector<384x128xbf16>
    %cst = arith.constant dense<0.000000e+00> : vector<128x128xf32>
    %6 = tpu.matmul %3, %5, %cst {dimension_numbers = #tpu.dot_dimension_numbers<[1], [0], [0], [1], [0, 0, 1, 1], [], []>} : vector<128x384xbf16>, vector<384x128xbf16>, vector<128x128xf32> -> vector<128x128xf32>
    %7 = arith.addf %4, %6 : vector<128x128xf32>
    %c0_6 = arith.constant 0 : index
    %c0_7 = arith.constant 0 : index
    %8 = vector.load %arg6[%c0_6, %c0_7] : memref<128x128xf32, #tpu.memory_space<vmem>>, vector<128x128xf32>
    tpu.vector_store %arg6[%c0_6, %c0_7], %7 {strides = array<i32>} : memref<128x128xf32, #tpu.memory_space<vmem>>, vector<128x128xf32>,
    %c0_i32_8 = arith.constant 0 : i32
    %9 = arith.cmpi eq, %arg2, %c0_i32_8 : i32
    %10 = arith.extui %9 : i1 to i32
    %c0_i32_9 = arith.constant 0 : i32
    %11 = arith.cmpi ne, %10, %c0_i32_9 : i32
    scf.if %11 {
      %c0_10 = arith.constant 0 : index
      %c0_11 = arith.constant 0 : index
      %12 = vector.load %arg6[%c0_10, %c0_11] : memref<128x128xf32, #tpu.memory_space<vmem>>, vector<128x128xf32>
      %13 = arith.truncf %12 : vector<128x128xf32> to vector<128x128xbf16>
      %c0_12 = arith.constant 0 : index
      %c0_13 = arith.constant 0 : index
      %14 = vector.load %arg5[%c0_12, %c0_13] : memref<128x128xbf16, #tpu.memory_space<vmem>>, vector<128x128xbf16>
      tpu.vector_store %arg5[%c0_12, %c0_13], %13 {strides = array<i32>} : memref<128x128xbf16, #tpu.memory_space<vmem>>, vector<128x128xbf16>,
    } else {
    }
    return
  }
  func.func @transform_0(%arg0: i32, %arg1: i32, %arg2: i32) -> (i32, i32) {
    %c0_i32 = arith.constant 0 : i32
    return %arg0, %arg2 : i32, i32
  }
  func.func @transform_1(%arg0: i32, %arg1: i32, %arg2: i32) -> (i32, i32) {
    %c0_i32 = arith.constant 0 : i32
    return %arg2, %arg1 : i32, i32
  }
  func.func @transform_2(%arg0: i32, %arg1: i32, %arg2: i32) -> (i32, i32) {
    %c0_i32 = arith.constant 0 : i32
    return %arg0, %arg1 : i32, i32
  }
}

module attributes {stable_mosaic.version = 11 : i64} {
  func.func @kernel(%arg0: i32, %arg1: i32, %arg2: i32, %arg3: memref<128x128xbf16, #tpu.memory_space<vmem>>, %arg4: memref<1x128xf32, #tpu.memory_space<vmem>>, %arg5: memref<1x128xf32, #tpu.memory_space<vmem>>, %arg6: memref<128x128xbf16, #tpu.memory_space<vmem>>, %arg7: memref<128x128xbf16, #tpu.memory_space<vmem>>, %arg8: memref<128x128xf32, #tpu.memory_space<vmem>>) attributes {dimension_semantics = [#tpu.dimension_semantics<parallel>, #tpu.dimension_semantics<parallel>, #tpu.dimension_semantics<arbitrary>], iteration_bounds = array<i64: 1, 1, 1>, scalar_prefetch = 0 : i64, scratch_operands = 1 : i64, tpu.core_type = #tpu.core_type<tc>, window_params = [{transform_indices = @transform_0, window_bounds = array<i64: 128, 128>}, {transform_indices = @transform_1, window_bounds = array<i64: 1, 128>}, {transform_indices = @transform_2, window_bounds = array<i64: 1, 128>}, {transform_indices = @transform_3, window_bounds = array<i64: 128, 128>}, {transform_indices = @transform_4, window_bounds = array<i64: 128, 128>}]} {
    %c0_i32 = arith.constant 0 : i32
    %0 = arith.cmpi eq, %arg2, %c0_i32 : i32
    %1 = arith.extui %0 : i1 to i32
    %c0_i32_0 = arith.constant 0 : i32
    %2 = arith.cmpi ne, %1, %c0_i32_0 : i32
    scf.if %2 {
      %cst_15 = arith.constant 0.000000e+00 : f32
      %22 = vector.broadcast %cst_15 : f32 to vector<128x128xf32>
      %c0_16 = arith.constant 0 : index
      %c0_17 = arith.constant 0 : index
      %23 = vector.load %arg8[%c0_16, %c0_17] : memref<128x128xf32, #tpu.memory_space<vmem>>, vector<128x128xf32>
      tpu.vector_store %arg8[%c0_16, %c0_17], %22 {strides = array<i32>} : memref<128x128xf32, #tpu.memory_space<vmem>>, vector<128x128xf32>,
    } else {
    }
    %c0 = arith.constant 0 : index
    %c0_1 = arith.constant 0 : index
    %3 = vector.load %arg3[%c0, %c0_1] : memref<128x128xbf16, #tpu.memory_space<vmem>>, vector<128x128xbf16>
    %4 = arith.extf %3 : vector<128x128xbf16> to vector<128x128xf32>
    %c0_2 = arith.constant 0 : index
    %c0_3 = arith.constant 0 : index
    %5 = vector.load %arg4[%c0_2, %c0_3] : memref<1x128xf32, #tpu.memory_space<vmem>>, vector<1x128xf32>
    %6 = vector.broadcast %5 : vector<1x128xf32> to vector<128x128xf32>
    %7 = arith.mulf %4, %6 : vector<128x128xf32>
    %c0_4 = arith.constant 0 : index
    %c0_5 = arith.constant 0 : index
    %8 = vector.load %arg5[%c0_4, %c0_5] : memref<1x128xf32, #tpu.memory_space<vmem>>, vector<1x128xf32>
    %9 = vector.broadcast %8 : vector<1x128xf32> to vector<128x128xf32>
    %10 = arith.addf %7, %9 : vector<128x128xf32>
    %cst = arith.constant 0.000000e+00 : f32
    %11 = vector.broadcast %cst : f32 to vector<128x128xf32>
    %12 = arith.maximumf %10, %11 : vector<128x128xf32>
    %13 = arith.truncf %12 : vector<128x128xf32> to vector<128x128xbf16>
    %c0_6 = arith.constant 0 : index
    %c0_7 = arith.constant 0 : index
    %14 = vector.load %arg8[%c0_6, %c0_7] : memref<128x128xf32, #tpu.memory_space<vmem>>, vector<128x128xf32>
    %c0_8 = arith.constant 0 : index
    %c0_9 = arith.constant 0 : index
    %15 = vector.load %arg6[%c0_8, %c0_9] : memref<128x128xbf16, #tpu.memory_space<vmem>>, vector<128x128xbf16>
    %cst_10 = arith.constant dense<0.000000e+00> : vector<128x128xf32>
    %16 = tpu.matmul %13, %15, %cst_10 {dimension_numbers = #tpu.dot_dimension_numbers<[1], [0], [0], [1], [0, 0, 1, 1], [], []>} : vector<128x128xbf16>, vector<128x128xbf16>, vector<128x128xf32> -> vector<128x128xf32>
    %17 = arith.addf %14, %16 : vector<128x128xf32>
    %c0_11 = arith.constant 0 : index
    %c0_12 = arith.constant 0 : index
    %18 = vector.load %arg8[%c0_11, %c0_12] : memref<128x128xf32, #tpu.memory_space<vmem>>, vector<128x128xf32>
    tpu.vector_store %arg8[%c0_11, %c0_12], %17 {strides = array<i32>} : memref<128x128xf32, #tpu.memory_space<vmem>>, vector<128x128xf32>,
    %c0_i32_13 = arith.constant 0 : i32
    %19 = arith.cmpi eq, %arg2, %c0_i32_13 : i32
    %20 = arith.extui %19 : i1 to i32
    %c0_i32_14 = arith.constant 0 : i32
    %21 = arith.cmpi ne, %20, %c0_i32_14 : i32
    scf.if %21 {
      %c0_15 = arith.constant 0 : index
      %c0_16 = arith.constant 0 : index
      %22 = vector.load %arg8[%c0_15, %c0_16] : memref<128x128xf32, #tpu.memory_space<vmem>>, vector<128x128xf32>
      %23 = arith.truncf %22 : vector<128x128xf32> to vector<128x128xbf16>
      %c0_17 = arith.constant 0 : index
      %c0_18 = arith.constant 0 : index
      %24 = vector.load %arg7[%c0_17, %c0_18] : memref<128x128xbf16, #tpu.memory_space<vmem>>, vector<128x128xbf16>
      tpu.vector_store %arg7[%c0_17, %c0_18], %23 {strides = array<i32>} : memref<128x128xbf16, #tpu.memory_space<vmem>>, vector<128x128xbf16>,
    } else {
    }
    return
  }
  func.func @transform_0(%arg0: i32, %arg1: i32, %arg2: i32) -> (i32, i32) {
    %c0_i32 = arith.constant 0 : i32
    return %arg0, %arg2 : i32, i32
  }
  func.func @transform_1(%arg0: i32, %arg1: i32, %arg2: i32) -> (i32, i32) {
    %c0_i32 = arith.constant 0 : i32
    %c0_i32_0 = arith.constant 0 : i32
    return %c0_i32, %arg2 : i32, i32
  }
  func.func @transform_2(%arg0: i32, %arg1: i32, %arg2: i32) -> (i32, i32) {
    %c0_i32 = arith.constant 0 : i32
    %c0_i32_0 = arith.constant 0 : i32
    return %c0_i32, %arg2 : i32, i32
  }
  func.func @transform_3(%arg0: i32, %arg1: i32, %arg2: i32) -> (i32, i32) {
    %c0_i32 = arith.constant 0 : i32
    return %arg2, %arg1 : i32, i32
  }
  func.func @transform_4(%arg0: i32, %arg1: i32, %arg2: i32) -> (i32, i32) {
    %c0_i32 = arith.constant 0 : i32
    return %arg0, %arg1 : i32, i32
  }
}

module attributes {stable_mosaic.version = 11 : i64} {
  func.func @kernel(%arg0: i32, %arg1: i32, %arg2: i32, %arg3: memref<32x128xbf16, #tpu.memory_space<vmem>>, %arg4: memref<1x128xf32, #tpu.memory_space<vmem>>, %arg5: memref<1x128xf32, #tpu.memory_space<vmem>>, %arg6: memref<128x128xbf16, #tpu.memory_space<vmem>>, %arg7: memref<1x128xf32, #tpu.memory_space<vmem>>, %arg8: memref<1x128xf32, #tpu.memory_space<vmem>>, %arg9: memref<32x128xbf16, #tpu.memory_space<vmem>>, %arg10: memref<32x128xf32, #tpu.memory_space<vmem>>) attributes {dimension_semantics = [#tpu.dimension_semantics<parallel>, #tpu.dimension_semantics<parallel>, #tpu.dimension_semantics<arbitrary>], iteration_bounds = array<i64: 1, 1, 1>, scalar_prefetch = 0 : i64, scratch_operands = 1 : i64, tpu.core_type = #tpu.core_type<tc>, window_params = [{transform_indices = @transform_0, window_bounds = array<i64: 32, 128>}, {transform_indices = @transform_1, window_bounds = array<i64: 1, 128>}, {transform_indices = @transform_2, window_bounds = array<i64: 1, 128>}, {transform_indices = @transform_3, window_bounds = array<i64: 128, 128>}, {transform_indices = @transform_4, window_bounds = array<i64: 1, 128>}, {transform_indices = @transform_5, window_bounds = array<i64: 1, 128>}, {transform_indices = @transform_6, window_bounds = array<i64: 32, 128>}]} {
    %c0_i32 = arith.constant 0 : i32
    %0 = arith.cmpi eq, %arg2, %c0_i32 : i32
    %1 = arith.extui %0 : i1 to i32
    %c0_i32_0 = arith.constant 0 : i32
    %2 = arith.cmpi ne, %1, %c0_i32_0 : i32
    scf.if %2 {
      %cst_15 = arith.constant 0.000000e+00 : f32
      %22 = vector.broadcast %cst_15 : f32 to vector<32x128xf32>
      %c0_16 = arith.constant 0 : index
      %c0_17 = arith.constant 0 : index
      %23 = vector.load %arg10[%c0_16, %c0_17] : memref<32x128xf32, #tpu.memory_space<vmem>>, vector<32x128xf32>
      tpu.vector_store %arg10[%c0_16, %c0_17], %22 {strides = array<i32>} : memref<32x128xf32, #tpu.memory_space<vmem>>, vector<32x128xf32>,
    } else {
    }
    %c0 = arith.constant 0 : index
    %c0_1 = arith.constant 0 : index
    %3 = vector.load %arg3[%c0, %c0_1] : memref<32x128xbf16, #tpu.memory_space<vmem>>, vector<32x128xbf16>
    %4 = arith.extf %3 : vector<32x128xbf16> to vector<32x128xf32>
    %c0_2 = arith.constant 0 : index
    %c0_3 = arith.constant 0 : index
    %5 = vector.load %arg4[%c0_2, %c0_3] : memref<1x128xf32, #tpu.memory_space<vmem>>, vector<1x128xf32>
    %6 = vector.broadcast %5 : vector<1x128xf32> to vector<32x128xf32>
    %7 = arith.mulf %4, %6 : vector<32x128xf32>
    %c0_4 = arith.constant 0 : index
    %c0_5 = arith.constant 0 : index
    %8 = vector.load %arg5[%c0_4, %c0_5] : memref<1x128xf32, #tpu.memory_space<vmem>>, vector<1x128xf32>
    %9 = vector.broadcast %8 : vector<1x128xf32> to vector<32x128xf32>
    %10 = arith.addf %7, %9 : vector<32x128xf32>
    %cst = arith.constant 0.000000e+00 : f32
    %11 = vector.broadcast %cst : f32 to vector<32x128xf32>
    %12 = arith.maximumf %10, %11 : vector<32x128xf32>
    %13 = arith.truncf %12 : vector<32x128xf32> to vector<32x128xbf16>
    %c0_6 = arith.constant 0 : index
    %c0_7 = arith.constant 0 : index
    %14 = vector.load %arg10[%c0_6, %c0_7] : memref<32x128xf32, #tpu.memory_space<vmem>>, vector<32x128xf32>
    %c0_8 = arith.constant 0 : index
    %c0_9 = arith.constant 0 : index
    %15 = vector.load %arg6[%c0_8, %c0_9] : memref<128x128xbf16, #tpu.memory_space<vmem>>, vector<128x128xbf16>
    %cst_10 = arith.constant dense<0.000000e+00> : vector<32x128xf32>
    %16 = tpu.matmul %13, %15, %cst_10 {dimension_numbers = #tpu.dot_dimension_numbers<[1], [0], [0], [1], [0, 0, 1, 1], [], []>} : vector<32x128xbf16>, vector<128x128xbf16>, vector<32x128xf32> -> vector<32x128xf32>
    %17 = arith.addf %14, %16 : vector<32x128xf32>
    %c0_11 = arith.constant 0 : index
    %c0_12 = arith.constant 0 : index
    %18 = vector.load %arg10[%c0_11, %c0_12] : memref<32x128xf32, #tpu.memory_space<vmem>>, vector<32x128xf32>
    tpu.vector_store %arg10[%c0_11, %c0_12], %17 {strides = array<i32>} : memref<32x128xf32, #tpu.memory_space<vmem>>, vector<32x128xf32>,
    %c0_i32_13 = arith.constant 0 : i32
    %19 = arith.cmpi eq, %arg2, %c0_i32_13 : i32
    %20 = arith.extui %19 : i1 to i32
    %c0_i32_14 = arith.constant 0 : i32
    %21 = arith.cmpi ne, %20, %c0_i32_14 : i32
    scf.if %21 {
      %c0_15 = arith.constant 0 : index
      %c0_16 = arith.constant 0 : index
      %22 = vector.load %arg10[%c0_15, %c0_16] : memref<32x128xf32, #tpu.memory_space<vmem>>, vector<32x128xf32>
      %c0_17 = arith.constant 0 : index
      %c0_18 = arith.constant 0 : index
      %23 = vector.load %arg7[%c0_17, %c0_18] : memref<1x128xf32, #tpu.memory_space<vmem>>, vector<1x128xf32>
      %24 = vector.broadcast %23 : vector<1x128xf32> to vector<32x128xf32>
      %25 = arith.mulf %22, %24 : vector<32x128xf32>
      %c0_19 = arith.constant 0 : index
      %c0_20 = arith.constant 0 : index
      %26 = vector.load %arg8[%c0_19, %c0_20] : memref<1x128xf32, #tpu.memory_space<vmem>>, vector<1x128xf32>
      %27 = vector.broadcast %26 : vector<1x128xf32> to vector<32x128xf32>
      %28 = arith.addf %25, %27 : vector<32x128xf32>
      %cst_21 = arith.constant 0.000000e+00 : f32
      %29 = vector.broadcast %cst_21 : f32 to vector<32x128xf32>
      %30 = arith.maximumf %28, %29 : vector<32x128xf32>
      %31 = arith.truncf %30 : vector<32x128xf32> to vector<32x128xbf16>
      %c0_22 = arith.constant 0 : index
      %c0_23 = arith.constant 0 : index
      %32 = vector.load %arg9[%c0_22, %c0_23] : memref<32x128xbf16, #tpu.memory_space<vmem>>, vector<32x128xbf16>
      tpu.vector_store %arg9[%c0_22, %c0_23], %31 {strides = array<i32>} : memref<32x128xbf16, #tpu.memory_space<vmem>>, vector<32x128xbf16>,
    } else {
    }
    return
  }
  func.func @transform_0(%arg0: i32, %arg1: i32, %arg2: i32) -> (i32, i32) {
    %c0_i32 = arith.constant 0 : i32
    return %arg0, %arg2 : i32, i32
  }
  func.func @transform_1(%arg0: i32, %arg1: i32, %arg2: i32) -> (i32, i32) {
    %c0_i32 = arith.constant 0 : i32
    %c0_i32_0 = arith.constant 0 : i32
    return %c0_i32, %arg2 : i32, i32
  }
  func.func @transform_2(%arg0: i32, %arg1: i32, %arg2: i32) -> (i32, i32) {
    %c0_i32 = arith.constant 0 : i32
    %c0_i32_0 = arith.constant 0 : i32
    return %c0_i32, %arg2 : i32, i32
  }
  func.func @transform_3(%arg0: i32, %arg1: i32, %arg2: i32) -> (i32, i32) {
    %c0_i32 = arith.constant 0 : i32
    return %arg2, %arg1 : i32, i32
  }
  func.func @transform_4(%arg0: i32, %arg1: i32, %arg2: i32) -> (i32, i32) {
    %c0_i32 = arith.constant 0 : i32
    %c0_i32_0 = arith.constant 0 : i32
    return %c0_i32, %arg1 : i32, i32
  }
  func.func @transform_5(%arg0: i32, %arg1: i32, %arg2: i32) -> (i32, i32) {
    %c0_i32 = arith.constant 0 : i32
    %c0_i32_0 = arith.constant 0 : i32
    return %c0_i32, %arg1 : i32, i32
  }
  func.func @transform_6(%arg0: i32, %arg1: i32, %arg2: i32) -> (i32, i32) {
    %c0_i32 = arith.constant 0 : i32
    return %arg0, %arg1 : i32, i32
  }
}

module attributes {stable_mosaic.version = 11 : i64} {
  func.func @_reduce_mean_kernel(%arg0: i32, %arg1: memref<4x32x16xbf16, #tpu.memory_space<vmem>>, %arg2: memref<32x16xbf16, #tpu.memory_space<vmem>>) attributes {dimension_semantics = [#tpu.dimension_semantics<parallel>], iteration_bounds = array<i64: 1>, scalar_prefetch = 0 : i64, scratch_operands = 0 : i64, tpu.core_type = #tpu.core_type<tc>, window_params = [{transform_indices = @transform_0, window_bounds = array<i64: 4, 32, 16>}, {transform_indices = @transform_1, window_bounds = array<i64: 32, 16>}]} {
    %c0 = arith.constant 0 : index
    %c0_0 = arith.constant 0 : index
    %c0_1 = arith.constant 0 : index
    %0 = vector.load %arg1[%c0, %c0_0, %c0_1] : memref<4x32x16xbf16, #tpu.memory_space<vmem>>, vector<4x32x16xbf16>
    %1 = arith.extf %0 : vector<4x32x16xbf16> to vector<4x32x16xf32>
    %cst = arith.constant dense<0.000000e+00> : vector<32x16xf32>
    %2 = vector.multi_reduction <add>, %1, %cst [0] : vector<4x32x16xf32> to vector<32x16xf32>
    %cst_2 = arith.constant 4.000000e+00 : f32
    %3 = vector.broadcast %cst_2 : f32 to vector<32x16xf32>
    %4 = arith.divf %2, %3 : vector<32x16xf32>
    %5 = arith.truncf %4 : vector<32x16xf32> to vector<32x16xbf16>
    %c0_3 = arith.constant 0 : index
    %c0_4 = arith.constant 0 : index
    %6 = vector.load %arg2[%c0_3, %c0_4] : memref<32x16xbf16, #tpu.memory_space<vmem>>, vector<32x16xbf16>
    tpu.vector_store %arg2[%c0_3, %c0_4], %5 {strides = array<i32>} : memref<32x16xbf16, #tpu.memory_space<vmem>>, vector<32x16xbf16>,
    return
  }
  func.func @transform_0(%arg0: i32) -> (i32, i32, i32) {
    %c0_i32 = arith.constant 0 : i32
    %c0_i32_0 = arith.constant 0 : i32
    %c0_i32_1 = arith.constant 0 : i32
    return %c0_i32, %arg0, %c0_i32_0 : i32, i32, i32
  }
  func.func @transform_1(%arg0: i32) -> (i32, i32) {
    %c0_i32 = arith.constant 0 : i32
    %c0_i32_0 = arith.constant 0 : i32
    return %arg0, %c0_i32 : i32, i32
  }
}

module attributes {stable_mosaic.version = 11 : i64} {
  func.func @kernel(%arg0: i32, %arg1: i32, %arg2: i32, %arg3: memref<32x384xbf16, #tpu.memory_space<vmem>>, %arg4: memref<384x128xbf16, #tpu.memory_space<vmem>>, %arg5: memref<32x128xbf16, #tpu.memory_space<vmem>>, %arg6: memref<32x128xf32, #tpu.memory_space<vmem>>) attributes {dimension_semantics = [#tpu.dimension_semantics<parallel>, #tpu.dimension_semantics<parallel>, #tpu.dimension_semantics<arbitrary>], iteration_bounds = array<i64: 1, 1, 1>, scalar_prefetch = 0 : i64, scratch_operands = 1 : i64, tpu.core_type = #tpu.core_type<tc>, window_params = [{transform_indices = @transform_0, window_bounds = array<i64: 32, 384>}, {transform_indices = @transform_1, window_bounds = array<i64: 384, 128>}, {transform_indices = @transform_2, window_bounds = array<i64: 32, 128>}]} {
    %c0_i32 = arith.constant 0 : i32
    %0 = arith.cmpi eq, %arg2, %c0_i32 : i32
    %1 = arith.extui %0 : i1 to i32
    %c0_i32_0 = arith.constant 0 : i32
    %2 = arith.cmpi ne, %1, %c0_i32_0 : i32
    scf.if %2 {
      %cst_10 = arith.constant 0.000000e+00 : f32
      %12 = vector.broadcast %cst_10 : f32 to vector<32x128xf32>
      %c0_11 = arith.constant 0 : index
      %c0_12 = arith.constant 0 : index
      %13 = vector.load %arg6[%c0_11, %c0_12] : memref<32x128xf32, #tpu.memory_space<vmem>>, vector<32x128xf32>
      tpu.vector_store %arg6[%c0_11, %c0_12], %12 {strides = array<i32>} : memref<32x128xf32, #tpu.memory_space<vmem>>, vector<32x128xf32>,
    } else {
    }
    %c0 = arith.constant 0 : index
    %c0_1 = arith.constant 0 : index
    %3 = vector.load %arg3[%c0, %c0_1] : memref<32x384xbf16, #tpu.memory_space<vmem>>, vector<32x384xbf16>
    %c0_2 = arith.constant 0 : index
    %c0_3 = arith.constant 0 : index
    %4 = vector.load %arg6[%c0_2, %c0_3] : memref<32x128xf32, #tpu.memory_space<vmem>>, vector<32x128xf32>
    %c0_4 = arith.constant 0 : index
    %c0_5 = arith.constant 0 : index
    %5 = vector.load %arg4[%c0_4, %c0_5] : memref<384x128xbf16, #tpu.memory_space<vmem>>, vector<384x128xbf16>
    %cst = arith.constant dense<0.000000e+00> : vector<32x128xf32>
    %6 = tpu.matmul %3, %5, %cst {dimension_numbers = #tpu.dot_dimension_numbers<[1], [0], [0], [1], [0, 0, 1, 1], [], []>} : vector<32x384xbf16>, vector<384x128xbf16>, vector<32x128xf32> -> vector<32x128xf32>
    %7 = arith.addf %4, %6 : vector<32x128xf32>
    %c0_6 = arith.constant 0 : index
    %c0_7 = arith.constant 0 : index
    %8 = vector.load %arg6[%c0_6, %c0_7] : memref<32x128xf32, #tpu.memory_space<vmem>>, vector<32x128xf32>
    tpu.vector_store %arg6[%c0_6, %c0_7], %7 {strides = array<i32>} : memref<32x128xf32, #tpu.memory_space<vmem>>, vector<32x128xf32>,
    %c0_i32_8 = arith.constant 0 : i32
    %9 = arith.cmpi eq, %arg2, %c0_i32_8 : i32
    %10 = arith.extui %9 : i1 to i32
    %c0_i32_9 = arith.constant 0 : i32
    %11 = arith.cmpi ne, %10, %c0_i32_9 : i32
    scf.if %11 {
      %c0_10 = arith.constant 0 : index
      %c0_11 = arith.constant 0 : index
      %12 = vector.load %arg6[%c0_10, %c0_11] : memref<32x128xf32, #tpu.memory_space<vmem>>, vector<32x128xf32>
      %13 = arith.truncf %12 : vector<32x128xf32> to vector<32x128xbf16>
      %c0_12 = arith.constant 0 : index
      %c0_13 = arith.constant 0 : index
      %14 = vector.load %arg5[%c0_12, %c0_13] : memref<32x128xbf16, #tpu.memory_space<vmem>>, vector<32x128xbf16>
      tpu.vector_store %arg5[%c0_12, %c0_13], %13 {strides = array<i32>} : memref<32x128xbf16, #tpu.memory_space<vmem>>, vector<32x128xbf16>,
    } else {
    }
    return
  }
  func.func @transform_0(%arg0: i32, %arg1: i32, %arg2: i32) -> (i32, i32) {
    %c0_i32 = arith.constant 0 : i32
    return %arg0, %arg2 : i32, i32
  }
  func.func @transform_1(%arg0: i32, %arg1: i32, %arg2: i32) -> (i32, i32) {
    %c0_i32 = arith.constant 0 : i32
    return %arg2, %arg1 : i32, i32
  }
  func.func @transform_2(%arg0: i32, %arg1: i32, %arg2: i32) -> (i32, i32) {
    %c0_i32 = arith.constant 0 : i32
    return %arg0, %arg1 : i32, i32
  }
}

module attributes {stable_mosaic.version = 11 : i64} {
  func.func @kernel(%arg0: i32, %arg1: memref<2x16x32xbf16, #tpu.memory_space<vmem>>, %arg2: memref<1x32xf32, #tpu.memory_space<vmem>>, %arg3: memref<1x32xf32, #tpu.memory_space<vmem>>, %arg4: memref<2x32xf32, #tpu.memory_space<vmem>>, %arg5: memref<2x32xf32, #tpu.memory_space<vmem>>) attributes {dimension_semantics = [#tpu.dimension_semantics<arbitrary>], iteration_bounds = array<i64: 1>, scalar_prefetch = 0 : i64, scratch_operands = 1 : i64, tpu.core_type = #tpu.core_type<tc>, window_params = [{transform_indices = @transform_0, window_bounds = array<i64: 2, 16, 32>}, {pipeline_mode = #tpu.pipeline_mode<synchronous>, transform_indices = @transform_1, window_bounds = array<i64: 1, 32>}, {pipeline_mode = #tpu.pipeline_mode<synchronous>, transform_indices = @transform_2, window_bounds = array<i64: 1, 32>}, {pipeline_mode = #tpu.pipeline_mode<synchronous>, transform_indices = @transform_3, window_bounds = array<i64: 2, 32>}]} {
    %c0_i32 = arith.constant 0 : i32
    %0 = arith.cmpi eq, %arg0, %c0_i32 : i32
    %1 = arith.extui %0 : i1 to i32
    %c0_i32_0 = arith.constant 0 : i32
    %2 = arith.cmpi ne, %1, %c0_i32_0 : i32
    scf.if %2 {
      %cst_14 = arith.constant 0.000000e+00 : f32
      %22 = vector.broadcast %cst_14 : f32 to vector<2x32xf32>
      %c0_15 = arith.constant 0 : index
      %c0_16 = arith.constant 0 : index
      %23 = vector.load %arg5[%c0_15, %c0_16] : memref<2x32xf32, #tpu.memory_space<vmem>>, vector<2x32xf32>
      tpu.vector_store %arg5[%c0_15, %c0_16], %22 {strides = array<i32>} : memref<2x32xf32, #tpu.memory_space<vmem>>, vector<2x32xf32>,
    } else {
    }
    %c0 = arith.constant 0 : index
    %c0_1 = arith.constant 0 : index
    %c0_2 = arith.constant 0 : index
    %3 = vector.load %arg1[%c0, %c0_1, %c0_2] : memref<2x16x32xbf16, #tpu.memory_space<vmem>>, vector<2x16x32xbf16>
    %4 = arith.extf %3 : vector<2x16x32xbf16> to vector<2x16x32xf32>
    %c0_3 = arith.constant 0 : index
    %c0_4 = arith.constant 0 : index
    %5 = vector.load %arg2[%c0_3, %c0_4] : memref<1x32xf32, #tpu.memory_space<vmem>>, vector<1x32xf32>
    %6 = vector.shape_cast %5 : vector<1x32xf32> to vector<1x1x32xf32>
    %7 = vector.broadcast %6 : vector<1x1x32xf32> to vector<2x16x32xf32>
    %8 = arith.mulf %4, %7 : vector<2x16x32xf32>
    %c0_5 = arith.constant 0 : index
    %c0_6 = arith.constant 0 : index
    %9 = vector.load %arg3[%c0_5, %c0_6] : memref<1x32xf32, #tpu.memory_space<vmem>>, vector<1x32xf32>
    %10 = vector.shape_cast %9 : vector<1x32xf32> to vector<1x1x32xf32>
    %11 = vector.broadcast %10 : vector<1x1x32xf32> to vector<2x16x32xf32>
    %12 = arith.addf %8, %11 : vector<2x16x32xf32>
    %cst = arith.constant 0.000000e+00 : f32
    %13 = vector.broadcast %cst : f32 to vector<2x16x32xf32>
    %14 = arith.maximumf %12, %13 : vector<2x16x32xf32>
    %c0_7 = arith.constant 0 : index
    %c0_8 = arith.constant 0 : index
    %15 = vector.load %arg5[%c0_7, %c0_8] : memref<2x32xf32, #tpu.memory_space<vmem>>, vector<2x32xf32>
    %cst_9 = arith.constant dense<0.000000e+00> : vector<2x32xf32>
    %16 = vector.multi_reduction <add>, %14, %cst_9 [1] : vector<2x16x32xf32> to vector<2x32xf32>
    %17 = arith.addf %15, %16 : vector<2x32xf32>
    %c0_10 = arith.constant 0 : index
    %c0_11 = arith.constant 0 : index
    %18 = vector.load %arg5[%c0_10, %c0_11] : memref<2x32xf32, #tpu.memory_space<vmem>>, vector<2x32xf32>
    tpu.vector_store %arg5[%c0_10, %c0_11], %17 {strides = array<i32>} : memref<2x32xf32, #tpu.memory_space<vmem>>, vector<2x32xf32>,
    %c0_i32_12 = arith.constant 0 : i32
    %19 = arith.cmpi eq, %arg0, %c0_i32_12 : i32
    %20 = arith.extui %19 : i1 to i32
    %c0_i32_13 = arith.constant 0 : i32
    %21 = arith.cmpi ne, %20, %c0_i32_13 : i32
    scf.if %21 {
      %c0_14 = arith.constant 0 : index
      %c0_15 = arith.constant 0 : index
      %22 = vector.load %arg5[%c0_14, %c0_15] : memref<2x32xf32, #tpu.memory_space<vmem>>, vector<2x32xf32>
      %cst_16 = arith.constant 6.250000e-02 : f32
      %23 = vector.broadcast %cst_16 : f32 to vector<2x32xf32>
      %24 = arith.mulf %22, %23 : vector<2x32xf32>
      %c0_17 = arith.constant 0 : index
      %c0_18 = arith.constant 0 : index
      %25 = vector.load %arg4[%c0_17, %c0_18] : memref<2x32xf32, #tpu.memory_space<vmem>>, vector<2x32xf32>
      tpu.vector_store %arg4[%c0_17, %c0_18], %24 {strides = array<i32>} : memref<2x32xf32, #tpu.memory_space<vmem>>, vector<2x32xf32>,
    } else {
    }
    return
  }
  func.func @transform_0(%arg0: i32) -> (i32, i32, i32) {
    %c0_i32 = arith.constant 0 : i32
    %c0_i32_0 = arith.constant 0 : i32
    %c0_i32_1 = arith.constant 0 : i32
    return %c0_i32, %arg0, %c0_i32_0 : i32, i32, i32
  }
  func.func @transform_1(%arg0: i32) -> (i32, i32) {
    %c0_i32 = arith.constant 0 : i32
    %c0_i32_0 = arith.constant 0 : i32
    %c0_i32_1 = arith.constant 0 : i32
    return %c0_i32, %c0_i32_0 : i32, i32
  }
  func.func @transform_2(%arg0: i32) -> (i32, i32) {
    %c0_i32 = arith.constant 0 : i32
    %c0_i32_0 = arith.constant 0 : i32
    %c0_i32_1 = arith.constant 0 : i32
    return %c0_i32, %c0_i32_0 : i32, i32
  }
  func.func @transform_3(%arg0: i32) -> (i32, i32) {
    %c0_i32 = arith.constant 0 : i32
    %c0_i32_0 = arith.constant 0 : i32
    %c0_i32_1 = arith.constant 0 : i32
    return %c0_i32, %c0_i32_0 : i32, i32
  }
}

module attributes {stable_mosaic.version = 11 : i64} {
  func.func @kernel(%arg0: i32, %arg1: i32, %arg2: i32, %arg3: memref<16x128xbf16, #tpu.memory_space<vmem>>, %arg4: memref<128x128xbf16, #tpu.memory_space<vmem>>, %arg5: memref<1x128xf32, #tpu.memory_space<vmem>>, %arg6: memref<16x128xf32, #tpu.memory_space<vmem>>, %arg7: memref<16x128xf32, #tpu.memory_space<vmem>>) attributes {dimension_semantics = [#tpu.dimension_semantics<parallel>, #tpu.dimension_semantics<parallel>, #tpu.dimension_semantics<arbitrary>], iteration_bounds = array<i64: 1, 1, 1>, scalar_prefetch = 0 : i64, scratch_operands = 1 : i64, tpu.core_type = #tpu.core_type<tc>, window_params = [{transform_indices = @transform_0, window_bounds = array<i64: 16, 128>}, {transform_indices = @transform_1, window_bounds = array<i64: 128, 128>}, {transform_indices = @transform_2, window_bounds = array<i64: 1, 128>}, {transform_indices = @transform_3, window_bounds = array<i64: 16, 128>}]} {
    %c0_i32 = arith.constant 0 : i32
    %0 = arith.cmpi eq, %arg2, %c0_i32 : i32
    %1 = arith.extui %0 : i1 to i32
    %c0_i32_0 = arith.constant 0 : i32
    %2 = arith.cmpi ne, %1, %c0_i32_0 : i32
    scf.if %2 {
      %cst_10 = arith.constant 0.000000e+00 : f32
      %12 = vector.broadcast %cst_10 : f32 to vector<16x128xf32>
      %c0_11 = arith.constant 0 : index
      %c0_12 = arith.constant 0 : index
      %13 = vector.load %arg7[%c0_11, %c0_12] : memref<16x128xf32, #tpu.memory_space<vmem>>, vector<16x128xf32>
      tpu.vector_store %arg7[%c0_11, %c0_12], %12 {strides = array<i32>} : memref<16x128xf32, #tpu.memory_space<vmem>>, vector<16x128xf32>,
    } else {
    }
    %c0 = arith.constant 0 : index
    %c0_1 = arith.constant 0 : index
    %3 = vector.load %arg3[%c0, %c0_1] : memref<16x128xbf16, #tpu.memory_space<vmem>>, vector<16x128xbf16>
    %c0_2 = arith.constant 0 : index
    %c0_3 = arith.constant 0 : index
    %4 = vector.load %arg7[%c0_2, %c0_3] : memref<16x128xf32, #tpu.memory_space<vmem>>, vector<16x128xf32>
    %c0_4 = arith.constant 0 : index
    %c0_5 = arith.constant 0 : index
    %5 = vector.load %arg4[%c0_4, %c0_5] : memref<128x128xbf16, #tpu.memory_space<vmem>>, vector<128x128xbf16>
    %cst = arith.constant dense<0.000000e+00> : vector<16x128xf32>
    %6 = tpu.matmul %3, %5, %cst {dimension_numbers = #tpu.dot_dimension_numbers<[1], [0], [0], [1], [0, 0, 1, 1], [], []>} : vector<16x128xbf16>, vector<128x128xbf16>, vector<16x128xf32> -> vector<16x128xf32>
    %7 = arith.addf %4, %6 : vector<16x128xf32>
    %c0_6 = arith.constant 0 : index
    %c0_7 = arith.constant 0 : index
    %8 = vector.load %arg7[%c0_6, %c0_7] : memref<16x128xf32, #tpu.memory_space<vmem>>, vector<16x128xf32>
    tpu.vector_store %arg7[%c0_6, %c0_7], %7 {strides = array<i32>} : memref<16x128xf32, #tpu.memory_space<vmem>>, vector<16x128xf32>,
    %c0_i32_8 = arith.constant 0 : i32
    %9 = arith.cmpi eq, %arg2, %c0_i32_8 : i32
    %10 = arith.extui %9 : i1 to i32
    %c0_i32_9 = arith.constant 0 : i32
    %11 = arith.cmpi ne, %10, %c0_i32_9 : i32
    scf.if %11 {
      %c0_10 = arith.constant 0 : index
      %c0_11 = arith.constant 0 : index
      %12 = vector.load %arg7[%c0_10, %c0_11] : memref<16x128xf32, #tpu.memory_space<vmem>>, vector<16x128xf32>
      %c0_12 = arith.constant 0 : index
      %c0_13 = arith.constant 0 : index
      %13 = vector.load %arg5[%c0_12, %c0_13] : memref<1x128xf32, #tpu.memory_space<vmem>>, vector<1x128xf32>
      %14 = vector.broadcast %13 : vector<1x128xf32> to vector<16x128xf32>
      %15 = arith.addf %12, %14 : vector<16x128xf32>
      %c0_14 = arith.constant 0 : index
      %c0_15 = arith.constant 0 : index
      %16 = vector.load %arg6[%c0_14, %c0_15] : memref<16x128xf32, #tpu.memory_space<vmem>>, vector<16x128xf32>
      tpu.vector_store %arg6[%c0_14, %c0_15], %15 {strides = array<i32>} : memref<16x128xf32, #tpu.memory_space<vmem>>, vector<16x128xf32>,
    } else {
    }
    return
  }
  func.func @transform_0(%arg0: i32, %arg1: i32, %arg2: i32) -> (i32, i32) {
    %c0_i32 = arith.constant 0 : i32
    return %arg0, %arg2 : i32, i32
  }
  func.func @transform_1(%arg0: i32, %arg1: i32, %arg2: i32) -> (i32, i32) {
    %c0_i32 = arith.constant 0 : i32
    return %arg2, %arg1 : i32, i32
  }
  func.func @transform_2(%arg0: i32, %arg1: i32, %arg2: i32) -> (i32, i32) {
    %c0_i32 = arith.constant 0 : i32
    %c0_i32_0 = arith.constant 0 : i32
    return %c0_i32, %arg1 : i32, i32
  }
  func.func @transform_3(%arg0: i32, %arg1: i32, %arg2: i32) -> (i32, i32) {
    %c0_i32 = arith.constant 0 : i32
    return %arg0, %arg1 : i32, i32
  }
}

</mosaic_0001>

<llo_original>
// kernel: densenet_forward.14
$region0: #{densenet_forward.14}
  #allocation0 [shape = 'u32[]', space=smem, size = 0x4, offset = 0x4, fixed_abs, tag = 'smem constant byte address 0x4 - core index']
  #allocation1 [shape = 'u32[72,128]{1,0:T(1,128)}', space=vmem, size = 0x9000, scoped, tag = 'internal scratch']
  #allocation2 [shape = 'f32[256,128]{1,0:T(8,128)}', space=vmem, size = 0x20000, scoped, tag = 'scratch operand']
  %s0 = inlined_call_operand.vmem [shape: bf16[512,256], index: 0, kind: input, shape index: {}]
  %s1 = inlined_call_operand.vmem [shape: bf16[256,128], index: 1, kind: input, shape index: {}]
  %s2 = inlined_call_operand.vmem [shape: f32[1,128], index: 2, kind: input, shape index: {}]
  %s3 = inlined_call_operand.vmem [shape: f32[1,128], index: 3, kind: input, shape index: {}]
  %s4 = inlined_call_operand.vmem [shape: bf16[512,128], index: 4, kind: output, shape index: {}]
  %s5 = sld [smem:[#allocation0]]
  $region57: #{densenet_forward.14} parent=0
    _
  %s7 = ssub.s32 1, %s5
  %s8 = scalar_select 0, %s7, %s5
  loop: start=0, step=1, limit=4
  $region2: #{densenet_forward.14} parent=0 // loop_pre_header
    _
  $region3: #{densenet_forward.14} parent=0 // loop_header
    %s10 = sphi 0, %s14
    %p11 = scmp.ge.s32.totalorder %s10, 4
    %s17 = sphi 0, %s36
    %s18 = sphi 0, %s32
    %s19 = sphi 0, %s28
    %s20 = sphi 0, %s17
    %s21 = sphi 0, %s18
    %s22 = sphi 0, %s19
    %s23 = sphi 0, %s20
    %s24 = sphi 0, %s21
    %s25 = sphi 0, %s22
    %s41 = sphi 0, %s43
    %s44 = sphi 0, %s41
    %s45 = sphi 0, %s44
    %s61 = sphi 0, %s45
    %s69 = sphi 0, %s71
    %s72 = sphi 0, %s69
    %s73 = sphi 0, %s72
    %s89 = sphi 0, %s73
    %s95 = sphi 0, %s97
    %s98 = sphi 0, %s95
    %s99 = sphi 0, %s98
    %s115 = sphi 0, %s99
    %s121 = sphi 0, %s123
    %s124 = sphi 0, %s121
    %s125 = sphi 0, %s124
    %s141 = sphi 0, %s125
    %s149 = sphi 0, %s151
    %s152 = sphi 0, %s149
    %s153 = sphi 0, %s152
    %s169 = sphi 0, %s153
  $region4: #{densenet_forward.14} parent=0 // loop_header_branch
    %13 = sbr.rel (%p11) target = $region8
  $region5: #{densenet_forward.14} parent=0 // loop_body
    %s15 = ssub.s32 %s10, 1
    %s16 = ssub.s32 %s10, 2
    %s26 = sadd.s32 1, %s19
    %p27 = scmp.ge.s32.totalorder %s26, 1
    %s28 = scalar_select %p27, 0, %s26
    %s29 = sadd.s32 1, %s18
    %s30 = scalar_select %p27, %s29, %s18
    %p31 = scmp.ge.s32.totalorder %s30, 1
    %s32 = scalar_select %p31, 0, %s30
    %s33 = sadd.s32 1, %s17
    %s34 = scalar_select %p31, %s33, %s17
    %p35 = scmp.ge.s32.totalorder %s34, 2
    %s36 = scalar_select %p35, 0, %s34
    %s37 = ssub.s32 %s17, %s36
    %s38 = ssub.s32 %s19, %s28
    %s39 = sor.u32 %s37, %s38
    %p40 = scmp.eq.s32.totalorder %s39, 0
    %s42 = sadd.s32 %s41, 1
    %s43 = scalar_select %p40, %s41, %s42
    %p46 = pneg %p40
    %p47 = scmp.eq.s32.totalorder %s10, 1
    %p48 = por %p46, %p47
    %p49 = scmp.ne.s32.totalorder %s41, %s44
    %p50 = scmp.eq.s32.totalorder %s10, 0
    %p51 = por %p49, %p50
    %p52 = scmp.ne.s32.totalorder %s41, %s44
    %p53 = scmp.eq.s32.totalorder %s15, 1
    %p54 = por %p52, %p53
    %p55 = scmp.ne.s32.totalorder %s44, %s45
    %p56 = scmp.eq.s32.totalorder %s15, 0
    %p57 = por %p55, %p56
    %p58 = scmp.ne.s32.totalorder %s44, %s45
    %p59 = scmp.eq.s32.totalorder %s16, 1
    %p60 = por %p58, %p59
    %p62 = scmp.ne.s32.totalorder %s45, %s61
    %p63 = scmp.eq.s32.totalorder %s16, 0
    %p64 = por %p62, %p63
    %s65 = ssub.s32 %s19, %s28
    %s66 = ssub.s32 %s18, %s32
    %s67 = sor.u32 %s65, %s66
    %p68 = scmp.eq.s32.totalorder %s67, 0
    %s70 = sadd.s32 %s69, 1
    %s71 = scalar_select %p68, %s69, %s70
    %p74 = pneg %p68
    %p75 = scmp.eq.s32.totalorder %s10, 1
    %p76 = por %p74, %p75
    %p77 = scmp.ne.s32.totalorder %s69, %s72
    %p78 = scmp.eq.s32.totalorder %s10, 0
    %p79 = por %p77, %p78
    %p80 = scmp.ne.s32.totalorder %s69, %s72
    %p81 = scmp.eq.s32.totalorder %s15, 1
    %p82 = por %p80, %p81
    %p83 = scmp.ne.s32.totalorder %s72, %s73
    %p84 = scmp.eq.s32.totalorder %s15, 0
    %p85 = por %p83, %p84
    %p86 = scmp.ne.s32.totalorder %s72, %s73
    %p87 = scmp.eq.s32.totalorder %s16, 1
    %p88 = por %p86, %p87
    %p90 = scmp.ne.s32.totalorder %s73, %s89
    %p91 = scmp.eq.s32.totalorder %s16, 0
    %p92 = por %p90, %p91
    %s93 = ssub.s32 %s18, %s32
    %p94 = scmp.eq.s32.totalorder %s93, 0
    %s96 = sadd.s32 %s95, 1
    %s97 = scalar_select %p94, %s95, %s96
    %p100 = pneg %p94
    %p101 = scmp.eq.s32.totalorder %s10, 1
    %p102 = por %p100, %p101
    %p103 = scmp.ne.s32.totalorder %s95, %s98
    %p104 = scmp.eq.s32.totalorder %s10, 0
    %p105 = por %p103, %p104
    %p106 = scmp.ne.s32.totalorder %s95, %s98
    %p107 = scmp.eq.s32.totalorder %s15, 1
    %p108 = por %p106, %p107
    %p109 = scmp.ne.s32.totalorder %s98, %s99
    %p110 = scmp.eq.s32.totalorder %s15, 0
    %p111 = por %p109, %p110
    %p112 = scmp.ne.s32.totalorder %s98, %s99
    %p113 = scmp.eq.s32.totalorder %s16, 1
    %p114 = por %p112, %p113
    %p116 = scmp.ne.s32.totalorder %s99, %s115
    %p117 = scmp.eq.s32.totalorder %s16, 0
    %p118 = por %p116, %p117
    %s119 = ssub.s32 %s18, %s32
    %p120 = scmp.eq.s32.totalorder %s119, 0
    %s122 = sadd.s32 %s121, 1
    %s123 = scalar_select %p120, %s121, %s122
    %p126 = pneg %p120
    %p127 = scmp.eq.s32.totalorder %s10, 1
    %p128 = por %p126, %p127
    %p129 = scmp.ne.s32.totalorder %s121, %s124
    %p130 = scmp.eq.s32.totalorder %s10, 0
    %p131 = por %p129, %p130
    %p132 = scmp.ne.s32.totalorder %s121, %s124
    %p133 = scmp.eq.s32.totalorder %s15, 1
    %p134 = por %p132, %p133
    %p135 = scmp.ne.s32.totalorder %s124, %s125
    %p136 = scmp.eq.s32.totalorder %s15, 0
    %p137 = por %p135, %p136
    %p138 = scmp.ne.s32.totalorder %s124, %s125
    %p139 = scmp.eq.s32.totalorder %s16, 1
    %p140 = por %p138, %p139
    %p142 = scmp.ne.s32.totalorder %s125, %s141
    %p143 = scmp.eq.s32.totalorder %s16, 0
    %p144 = por %p142, %p143
    %s145 = ssub.s32 %s17, %s36
    %s146 = ssub.s32 %s18, %s32
    %s147 = sor.u32 %s145, %s146
    %p148 = scmp.eq.s32.totalorder %s147, 0
    %s150 = sadd.s32 %s149, 1
    %s151 = scalar_select %p148, %s149, %s150
    %p154 = pneg %p148
    %p155 = scmp.eq.s32.totalorder %s10, 1
    %p156 = por %p154, %p155
    %p157 = scmp.ne.s32.totalorder %s149, %s152
    %p158 = scmp.eq.s32.totalorder %s10, 0
    %p159 = por %p157, %p158
    %p160 = scmp.ne.s32.totalorder %s149, %s152
    %p161 = scmp.eq.s32.totalorder %s15, 1
    %p162 = por %p160, %p161
    %p163 = scmp.ne.s32.totalorder %s152, %s153
    %p164 = scmp.eq.s32.totalorder %s15, 0
    %p165 = por %p163, %p164
    %p166 = scmp.ne.s32.totalorder %s152, %s153
    %p167 = scmp.eq.s32.totalorder %s16, 1
    %p168 = por %p166, %p167
    %p170 = scmp.ne.s32.totalorder %s153, %s169
    %p171 = scmp.eq.s32.totalorder %s16, 0
    %p172 = por %p170, %p171
    %p173 = scmp.le.s32.totalorder 1, %s10
    %p174 = scmp.lt.s32.totalorder %s10, 3
    %p175 = pnand %p173, %p174
    %p176 = pneg %p175
    // Predicated region
    $region9: #{densenet_forward.14} parent=5 // pred_check
      _
    $region10: #{densenet_forward.14} parent=5 // pred_check_branch
      %178 = sbr.rel (%p175) target = $region12
    $region11: #{densenet_forward.14} parent=5 // pred_region
      %s179 = ssub.s32 %s10, 1
      // Predicated region
      $region13: #{densenet_forward.14} parent=11 // pred_check
        %p180 = pneg %p85
      $region14: #{densenet_forward.14} parent=11 // pred_check_branch
        %182 = sbr.rel (%p180) target = $region16
      $region15: #{densenet_forward.14} parent=11 // pred_region
        %s183 = smul.u32 32, %s22
        %p184 = scmp.lt.s32.totalorder %s183, 31
        %s185 = scalar_select %p184, %s183, 31
        %p186 = scmp.lt.s32.totalorder %s21, 0
        %s187 = scalar_select %p186, %s21, 0
        %s188 = sadd.s32 %s187, %s185
        %s189 = smul.addr %s188, 4
        %s190 = scalar_lea.vmem %s1, %s189
        %s191 = smul.u32 32, %s22
      $region16: #{densenet_forward.14} parent=11 // pred_fallthru
        _
      // Predicated region
      $region17: #{densenet_forward.14} parent=11 // pred_check
        %p192 = pneg %p111
      $region18: #{densenet_forward.14} parent=11 // pred_check_branch
        %194 = sbr.rel (%p192) target = $region20
      $region19: #{densenet_forward.14} parent=11 // pred_region
        %p195 = scmp.lt.s32.totalorder %s21, 0
        %s196 = scalar_select %p195, %s21, 0
        %s197 = scalar_lea.vmem %s2, %s196
      $region20: #{densenet_forward.14} parent=11 // pred_fallthru
        _
      // Predicated region
      $region21: #{densenet_forward.14} parent=11 // pred_check
        %p198 = pneg %p137
      $region22: #{densenet_forward.14} parent=11 // pred_check_branch
        %200 = sbr.rel (%p198) target = $region24
      $region23: #{densenet_forward.14} parent=11 // pred_region
        %p201 = scmp.lt.s32.totalorder %s21, 0
        %s202 = scalar_select %p201, %s21, 0
        %s203 = scalar_lea.vmem %s3, %s202
      $region24: #{densenet_forward.14} parent=11 // pred_fallthru
        _
    $region12: #{densenet_forward.14} parent=5 // pred_fallthru
      _
    %p204 = scmp.lt.s32.totalorder %s10, 2
    // Predicated region
    $region25: #{densenet_forward.14} parent=5 // pred_check
      %p205 = pneg %p204
    $region26: #{densenet_forward.14} parent=5 // pred_check_branch
      %207 = sbr.rel (%p205) target = $region28
    $region27: #{densenet_forward.14} parent=5 // pred_region
      // Predicated region
      $region29: #{densenet_forward.14} parent=27 // pred_check
        %p208 = pneg %p51
      $region30: #{densenet_forward.14} parent=27 // pred_check_branch
        %210 = sbr.rel (%p208) target = $region32
      $region31: #{densenet_forward.14} parent=27 // pred_region
        %s211 = smul.u32 32, %s17
        %s212 = smul.u32 2, %s19
        %p213 = scmp.lt.s32.totalorder %s211, 63
        %s214 = scalar_select %p213, %s211, 63
        %p215 = scmp.lt.s32.totalorder %s212, 1
        %s216 = scalar_select %p215, %s212, 1
        %s217 = smul.addr %s214, 2
        %s218 = sadd.s32 %s216, %s217
        %s219 = smul.addr %s218, 4
        %s220 = scalar_lea.vmem %s0, %s219
        %s221 = smul.u32 32, %s17
        %s222 = smul.u32 2, %s19
      $region32: #{densenet_forward.14} parent=27 // pred_fallthru
        _
    $region28: #{densenet_forward.14} parent=5 // pred_fallthru
      _
    %p223 = scmp.le.s32.totalorder 1, %s10
    %p224 = scmp.lt.s32.totalorder %s10, 3
    %p225 = pnand %p223, %p224
    %p226 = pneg %p225
    // Predicated region
    $region33: #{densenet_forward.14} parent=5 // pred_check
      _
    $region34: #{densenet_forward.14} parent=5 // pred_check_branch
      %228 = sbr.rel (%p225) target = $region36
    $region35: #{densenet_forward.14} parent=5 // pred_region
      %s229 = ssub.s32 %s10, 1
      %s230 = smul.u32 32, %s20
      %s231 = smul.u32 2, %s22
      %p232 = scmp.lt.s32.totalorder %s230, 63
      %s233 = scalar_select %p232, %s230, 63
      %p234 = scmp.lt.s32.totalorder %s231, 1
      %s235 = scalar_select %p234, %s231, 1
      %s236 = smul.addr %s233, 2
      %s237 = sadd.s32 %s235, %s236
      %s238 = smul.addr %s237, 4
      %s239 = scalar_lea.vmem %s0, %s238
      %p240 = pneg %p57
      %p241 = pneg %p54
      %s242 = smul.u32 32, %s22
      %p243 = scmp.lt.s32.totalorder %s242, 31
      %s244 = scalar_select %p243, %s242, 31
      %p245 = scmp.lt.s32.totalorder %s21, 0
      %s246 = scalar_select %p245, %s21, 0
      %s247 = sadd.s32 %s246, %s244
      %s248 = smul.addr %s247, 4
      %s249 = scalar_lea.vmem %s1, %s248
      %p250 = pneg %p85
      %p251 = pneg %p82
      %p252 = scmp.lt.s32.totalorder %s21, 0
      %s253 = scalar_select %p252, %s21, 0
      %s254 = scalar_lea.vmem %s2, %s253
      %p255 = pneg %p111
      %p256 = pneg %p108
      %p257 = scmp.lt.s32.totalorder %s21, 0
      %s258 = scalar_select %p257, %s21, 0
      %s259 = scalar_lea.vmem %s3, %s258
      %p260 = pneg %p137
      %p261 = pneg %p134
      %p262 = pneg %p165
      %p263 = pneg %p162
      %s264 = smul.u32 32, %s20
      %p265 = scmp.lt.s32.totalorder %s264, 63
      %s266 = scalar_select %p265, %s264, 63
      %p267 = scmp.lt.s32.totalorder %s21, 0
      %s268 = scalar_select %p267, %s21, 0
      %s269 = sadd.s32 %s268, %s266
      %s270 = smul.addr %s269, 4
      %s271 = scalar_lea.vmem %s4, %s270
      %s272 = smul.u32 32, %s20
      %s273 = smul.u32 2, %s22
      %p274 = scmp.lt.s32.totalorder %s272, 63
      %s275 = scalar_select %p274, %s272, 63
      %p276 = scmp.lt.s32.totalorder %s273, 1
      %s277 = scalar_select %p276, %s273, 1
      %s278 = smul.addr %s275, 2
      %s279 = sadd.s32 %s277, %s278
      %s280 = smul.addr %s279, 4
      %s281 = scalar_lea.vmem %s0, %s280
      %s282 = smul.u32 32, %s20
      %s283 = smul.u32 2, %s22
      %s284 = smul.u32 32, %s22
      %p285 = scmp.lt.s32.totalorder %s284, 31
      %s286 = scalar_select %p285, %s284, 31
      %p287 = scmp.lt.s32.totalorder %s21, 0
      %s288 = scalar_select %p287, %s21, 0
      %s289 = sadd.s32 %s288, %s286
      %s290 = smul.addr %s289, 4
      %s291 = scalar_lea.vmem %s1, %s290
      %s292 = smul.u32 32, %s22
      %p293 = scmp.lt.s32.totalorder %s21, 0
      %s294 = scalar_select %p293, %s21, 0
      %s295 = scalar_lea.vmem %s2, %s294
      %p296 = scmp.lt.s32.totalorder %s21, 0
      %s297 = scalar_select %p296, %s21, 0
      %s298 = scalar_lea.vmem %s3, %s297
      %s299 = smul.u32 32, %s20
      %p300 = scmp.lt.s32.totalorder %s299, 63
      %s301 = scalar_select %p300, %s299, 63
      %p302 = scmp.lt.s32.totalorder %s21, 0
      %s303 = scalar_select %p302, %s21, 0
      %s304 = sadd.s32 %s303, %s301
      %s305 = smul.addr %s304, 4
      %s306 = scalar_lea.vmem %s4, %s305
      %s307 = smul.u32 32, %s20
      %p308 = scmp.eq.s32.totalorder %s22, 0
      // Predicated region
      $region37: #{densenet_forward.14} parent=35 // pred_check
        %p309 = pneg %p308
      $region38: #{densenet_forward.14} parent=35 // pred_check_branch
        %311 = sbr.rel (%p309) target = $region40
      $region39: #{densenet_forward.14} parent=35 // pred_region
        %312 = vst [vmem:[#allocation2] sm:$0xff] 0.0
        %313 = vst [vmem:[#allocation2 + $0x8] sm:$0xff] 0.0
        %314 = vst [vmem:[#allocation2 + $0x10] sm:$0xff] 0.0
        %315 = vst [vmem:[#allocation2 + $0x18] sm:$0xff] 0.0
        %316 = vst [vmem:[#allocation2 + $0x20] sm:$0xff] 0.0
        %317 = vst [vmem:[#allocation2 + $0x28] sm:$0xff] 0.0
        %318 = vst [vmem:[#allocation2 + $0x30] sm:$0xff] 0.0
        %319 = vst [vmem:[#allocation2 + $0x38] sm:$0xff] 0.0
        %320 = vst [vmem:[#allocation2 + $0x40] sm:$0xff] 0.0
        %321 = vst [vmem:[#allocation2 + $0x48] sm:$0xff] 0.0
        %322 = vst [vmem:[#allocation2 + $0x50] sm:$0xff] 0.0
        %323 = vst [vmem:[#allocation2 + $0x58] sm:$0xff] 0.0
        %324 = vst [vmem:[#allocation2 + $0x60] sm:$0xff] 0.0
        %325 = vst [vmem:[#allocation2 + $0x68] sm:$0xff] 0.0
        %326 = vst [vmem:[#allocation2 + $0x70] sm:$0xff] 0.0
        %327 = vst [vmem:[#allocation2 + $0x78] sm:$0xff] 0.0
        %328 = vst [vmem:[#allocation2 + $0x80] sm:$0xff] 0.0
        %329 = vst [vmem:[#allocation2 + $0x88] sm:$0xff] 0.0
        %330 = vst [vmem:[#allocation2 + $0x90] sm:$0xff] 0.0
        %331 = vst [vmem:[#allocation2 + $0x98] sm:$0xff] 0.0
        %332 = vst [vmem:[#allocation2 + $0xa0] sm:$0xff] 0.0
        %333 = vst [vmem:[#allocation2 + $0xa8] sm:$0xff] 0.0
        %334 = vst [vmem:[#allocation2 + $0xb0] sm:$0xff] 0.0
        %335 = vst [vmem:[#allocation2 + $0xb8] sm:$0xff] 0.0
        %336 = vst [vmem:[#allocation2 + $0xc0] sm:$0xff] 0.0
        %337 = vst [vmem:[#allocation2 + $0xc8] sm:$0xff] 0.0
        %338 = vst [vmem:[#allocation2 + $0xd0] sm:$0xff] 0.0
        %339 = vst [vmem:[#allocation2 + $0xd8] sm:$0xff] 0.0
        %340 = vst [vmem:[#allocation2 + $0xe0] sm:$0xff] 0.0
        %341 = vst [vmem:[#allocation2 + $0xe8] sm:$0xff] 0.0
        %342 = vst [vmem:[#allocation2 + $0xf0] sm:$0xff] 0.0
        %343 = vst [vmem:[#allocation2 + $0xf8] sm:$0xff] 0.0
      $region40: #{densenet_forward.14} parent=35 // pred_fallthru
        _
      %v344 = vld [vmem:[%s281] sm:$0xff]
      %v345 = vld [vmem:[%s281 + $0x8] sm:$0xff]
      %v346 = vld [vmem:[%s281 + $0x10] sm:$0xff]
      %v347 = vld [vmem:[%s281 + $0x18] sm:$0xff]
      %v348 = vld [vmem:[%s281 + $0x20] sm:$0xff]
      %v349 = vld [vmem:[%s281 + $0x28] sm:$0xff]
      %v350 = vld [vmem:[%s281 + $0x30] sm:$0xff]
      %v351 = vld [vmem:[%s281 + $0x38] sm:$0xff]
      %v352 = vld [vmem:[%s281 + $0x40] sm:$0xff]
      %v353 = vld [vmem:[%s281 + $0x48] sm:$0xff]
      %v354 = vld [vmem:[%s281 + $0x50] sm:$0xff]
      %v355 = vld [vmem:[%s281 + $0x58] sm:$0xff]
      %v356 = vld [vmem:[%s281 + $0x60] sm:$0xff]
      %v357 = vld [vmem:[%s281 + $0x68] sm:$0xff]
      %v358 = vld [vmem:[%s281 + $0x70] sm:$0xff]
      %v359 = vld [vmem:[%s281 + $0x78] sm:$0xff]
      %v360 = vld [vmem:[%s281 + $0x80] sm:$0xff]
      %v361 = vld [vmem:[%s281 + $0x88] sm:$0xff]
      %v362 = vld [vmem:[%s281 + $0x90] sm:$0xff]
      %v363 = vld [vmem:[%s281 + $0x98] sm:$0xff]
      %v364 = vld [vmem:[%s281 + $0xa0] sm:$0xff]
      %v365 = vld [vmem:[%s281 + $0xa8] sm:$0xff]
      %v366 = vld [vmem:[%s281 + $0xb0] sm:$0xff]
      %v367 = vld [vmem:[%s281 + $0xb8] sm:$0xff]
      %v368 = vld [vmem:[%s281 + $0xc0] sm:$0xff]
      %v369 = vld [vmem:[%s281 + $0xc8] sm:$0xff]
      %v370 = vld [vmem:[%s281 + $0xd0] sm:$0xff]
      %v371 = vld [vmem:[%s281 + $0xd8] sm:$0xff]
      %v372 = vld [vmem:[%s281 + $0xe0] sm:$0xff]
      %v373 = vld [vmem:[%s281 + $0xe8] sm:$0xff]
      %v374 = vld [vmem:[%s281 + $0xf0] sm:$0xff]
      %v375 = vld [vmem:[%s281 + $0xf8] sm:$0xff]
      %v376 = vld [vmem:[#allocation2] sm:$0xff]
      %v377 = vld [vmem:[#allocation2 + $0x8] sm:$0xff]
      %v378 = vld [vmem:[#allocation2 + $0x10] sm:$0xff]
      %v379 = vld [vmem:[#allocation2 + $0x18] sm:$0xff]
      %v380 = vld [vmem:[#allocation2 + $0x20] sm:$0xff]
      %v381 = vld [vmem:[#allocation2 + $0x28] sm:$0xff]
      %v382 = vld [vmem:[#allocation2 + $0x30] sm:$0xff]
      %v383 = vld [vmem:[#allocation2 + $0x38] sm:$0xff]
      %v384 = vld [vmem:[#allocation2 + $0x40] sm:$0xff]
      %v385 = vld [vmem:[#allocation2 + $0x48] sm:$0xff]
      %v386 = vld [vmem:[#allocation2 + $0x50] sm:$0xff]
      %v387 = vld [vmem:[#allocation2 + $0x58] sm:$0xff]
      %v388 = vld [vmem:[#allocation2 + $0x60] sm:$0xff]
      %v389 = vld [vmem:[#allocation2 + $0x68] sm:$0xff]
      %v390 = vld [vmem:[#allocation2 + $0x70] sm:$0xff]
      %v391 = vld [vmem:[#allocation2 + $0x78] sm:$0xff]
      %v392 = vld [vmem:[#allocation2 + $0x80] sm:$0xff]
      %v393 = vld [vmem:[#allocation2 + $0x88] sm:$0xff]
      %v394 = vld [vmem:[#allocation2 + $0x90] sm:$0xff]
      %v395 = vld [vmem:[#allocation2 + $0x98] sm:$0xff]
      %v396 = vld [vmem:[#allocation2 + $0xa0] sm:$0xff]
      %v397 = vld [vmem:[#allocation2 + $0xa8] sm:$0xff]
      %v398 = vld [vmem:[#allocation2 + $0xb0] sm:$0xff]
      %v399 = vld [vmem:[#allocation2 + $0xb8] sm:$0xff]
      %v400 = vld [vmem:[#allocation2 + $0xc0] sm:$0xff]
      %v401 = vld [vmem:[#allocation2 + $0xc8] sm:$0xff]
      %v402 = vld [vmem:[#allocation2 + $0xd0] sm:$0xff]
      %v403 = vld [vmem:[#allocation2 + $0xd8] sm:$0xff]
      %v404 = vld [vmem:[#allocation2 + $0xe0] sm:$0xff]
      %v405 = vld [vmem:[#allocation2 + $0xe8] sm:$0xff]
      %v406 = vld [vmem:[#allocation2 + $0xf0] sm:$0xff]
      %v407 = vld [vmem:[#allocation2 + $0xf8] sm:$0xff]
      %v408 = vld [vmem:[%s291] sm:$0xf]
      %v409 = vld [vmem:[%s291 + $0x4] sm:$0xf]
      %v410 = vld [vmem:[%s291 + $0x8] sm:$0xf]
      %v411 = vld [vmem:[%s291 + $0xc] sm:$0xf]
      %v412 = vld [vmem:[%s291 + $0x10] sm:$0xf]
      %v413 = vld [vmem:[%s291 + $0x14] sm:$0xf]
      %v414 = vld [vmem:[%s291 + $0x18] sm:$0xf]
      %v415 = vld [vmem:[%s291 + $0x1c] sm:$0xf]
      %v416 = vld [vmem:[%s291 + $0x20] sm:$0xf]
      %v417 = vld [vmem:[%s291 + $0x24] sm:$0xf]
      %v418 = vld [vmem:[%s291 + $0x28] sm:$0xf]
      %v419 = vld [vmem:[%s291 + $0x2c] sm:$0xf]
      %v420 = vld [vmem:[%s291 + $0x30] sm:$0xf]
      %v421 = vld [vmem:[%s291 + $0x34] sm:$0xf]
      %v422 = vld [vmem:[%s291 + $0x38] sm:$0xf]
      %v423 = vld [vmem:[%s291 + $0x3c] sm:$0xf]
      %v424 = vld [vmem:[%s291 + $0x40] sm:$0xf]
      %v425 = vld [vmem:[%s291 + $0x44] sm:$0xf]
      %v426 = vld [vmem:[%s291 + $0x48] sm:$0xf]
      %v427 = vld [vmem:[%s291 + $0x4c] sm:$0xf]
      %v428 = vld [vmem:[%s291 + $0x50] sm:$0xf]
      %v429 = vld [vmem:[%s291 + $0x54] sm:$0xf]
      %v430 = vld [vmem:[%s291 + $0x58] sm:$0xf]
      %v431 = vld [vmem:[%s291 + $0x5c] sm:$0xf]
      %v432 = vld [vmem:[%s291 + $0x60] sm:$0xf]
      %v433 = vld [vmem:[%s291 + $0x64] sm:$0xf]
      %v434 = vld [vmem:[%s291 + $0x68] sm:$0xf]
      %v435 = vld [vmem:[%s291 + $0x6c] sm:$0xf]
      %v436 = vld [vmem:[%s291 + $0x70] sm:$0xf]
      %v437 = vld [vmem:[%s291 + $0x74] sm:$0xf]
      %v438 = vld [vmem:[%s291 + $0x78] sm:$0xf]
      %v439 = vld [vmem:[%s291 + $0x7c] sm:$0xf]
      %v472 = vunpack.c.l.b16 %v344
      %v473 = vunpack.c.h.b16 %v344
      %v474 = vunpack.c.l.b16 %v345
      %v475 = vunpack.c.h.b16 %v345
      %v476 = vunpack.c.l.b16 %v346
      %v477 = vunpack.c.h.b16 %v346
      %v478 = vunpack.c.l.b16 %v347
      %v479 = vunpack.c.h.b16 %v347
      %v480 = vunpack.c.l.b16 %v348
      %v481 = vunpack.c.h.b16 %v348
      %v482 = vunpack.c.l.b16 %v349
      %v483 = vunpack.c.h.b16 %v349
      %v484 = vunpack.c.l.b16 %v350
      %v485 = vunpack.c.h.b16 %v350
      %v486 = vunpack.c.l.b16 %v351
      %v487 = vunpack.c.h.b16 %v351
      %v488 = vunpack.c.l.b16 %v352
      %v489 = vunpack.c.h.b16 %v352
      %v490 = vunpack.c.l.b16 %v353
      %v491 = vunpack.c.h.b16 %v353
      %v492 = vunpack.c.l.b16 %v354
      %v493 = vunpack.c.h.b16 %v354
      %v494 = vunpack.c.l.b16 %v355
      %v495 = vunpack.c.h.b16 %v355
      %v496 = vunpack.c.l.b16 %v356
      %v497 = vunpack.c.h.b16 %v356
      %v498 = vunpack.c.l.b16 %v357
      %v499 = vunpack.c.h.b16 %v357
      %v500 = vunpack.c.l.b16 %v358
      %v501 = vunpack.c.h.b16 %v358
      %v502 = vunpack.c.l.b16 %v359
      %v503 = vunpack.c.h.b16 %v359
      %v504 = vunpack.c.l.b16 %v360
      %v505 = vunpack.c.h.b16 %v360
      %v506 = vunpack.c.l.b16 %v361
      %v507 = vunpack.c.h.b16 %v361
      %v508 = vunpack.c.l.b16 %v362
      %v509 = vunpack.c.h.b16 %v362
      %v510 = vunpack.c.l.b16 %v363
      %v511 = vunpack.c.h.b16 %v363
      %v512 = vunpack.c.l.b16 %v364
      %v513 = vunpack.c.h.b16 %v364
      %v514 = vunpack.c.l.b16 %v365
      %v515 = vunpack.c.h.b16 %v365
      %v516 = vunpack.c.l.b16 %v366
      %v517 = vunpack.c.h.b16 %v366
      %v518 = vunpack.c.l.b16 %v367
      %v519 = vunpack.c.h.b16 %v367
      %v520 = vunpack.c.l.b16 %v368
      %v521 = vunpack.c.h.b16 %v368
      %v522 = vunpack.c.l.b16 %v369
      %v523 = vunpack.c.h.b16 %v369
      %v524 = vunpack.c.l.b16 %v370
      %v525 = vunpack.c.h.b16 %v370
      %v526 = vunpack.c.l.b16 %v371
      %v527 = vunpack.c.h.b16 %v371
      %v528 = vunpack.c.l.b16 %v372
      %v529 = vunpack.c.h.b16 %v372
      %v530 = vunpack.c.l.b16 %v373
      %v531 = vunpack.c.h.b16 %v373
      %v532 = vunpack.c.l.b16 %v374
      %v533 = vunpack.c.h.b16 %v374
      %v534 = vunpack.c.l.b16 %v375
      %v535 = vunpack.c.h.b16 %v375
      %v536 = vpack.c.b16 %v474, %v472
      %v537 = vpack.c.b16 %v475, %v473
      %v538 = vpack.c.b16 %v478, %v476
      %v539 = vpack.c.b16 %v479, %v477
      %v540 = vpack.c.b16 %v482, %v480
      %v541 = vpack.c.b16 %v483, %v481
      %v542 = vpack.c.b16 %v486, %v484
      %v543 = vpack.c.b16 %v487, %v485
      %v544 = vpack.c.b16 %v490, %v488
      %v545 = vpack.c.b16 %v491, %v489
      %v546 = vpack.c.b16 %v494, %v492
      %v547 = vpack.c.b16 %v495, %v493
      %v548 = vpack.c.b16 %v498, %v496
      %v549 = vpack.c.b16 %v499, %v497
      %v550 = vpack.c.b16 %v502, %v500
      %v551 = vpack.c.b16 %v503, %v501
      %v552 = vpack.c.b16 %v506, %v504
      %v553 = vpack.c.b16 %v507, %v505
      %v554 = vpack.c.b16 %v510, %v508
      %v555 = vpack.c.b16 %v511, %v509
      %v556 = vpack.c.b16 %v514, %v512
      %v557 = vpack.c.b16 %v515, %v513
      %v558 = vpack.c.b16 %v518, %v516
      %v559 = vpack.c.b16 %v519, %v517
      %v560 = vpack.c.b16 %v522, %v520
      %v561 = vpack.c.b16 %v523, %v521
      %v562 = vpack.c.b16 %v526, %v524
      %v563 = vpack.c.b16 %v527, %v525
      %v564 = vpack.c.b16 %v530, %v528
      %v565 = vpack.c.b16 %v531, %v529
      %v566 = vpack.c.b16 %v534, %v532
      %v567 = vpack.c.b16 %v535, %v533
      %v632 = vunpack.c.l.b16 %v408
      %v633 = vunpack.c.l.b16 %v409
      %v634 = vunpack.c.l.b16 %v410
      %v635 = vunpack.c.l.b16 %v411
      %v636 = vunpack.c.l.b16 %v412
      %v637 = vunpack.c.l.b16 %v413
      %v638 = vunpack.c.l.b16 %v414
      %v639 = vunpack.c.l.b16 %v415
      %v640 = vunpack.c.l.b16 %v416
      %v641 = vunpack.c.l.b16 %v417
      %v642 = vunpack.c.l.b16 %v418
      %v643 = vunpack.c.l.b16 %v419
      %v644 = vunpack.c.l.b16 %v420
      %v645 = vunpack.c.l.b16 %v421
      %v646 = vunpack.c.l.b16 %v422
      %v647 = vunpack.c.l.b16 %v423
      %v648 = vunpack.c.l.b16 %v424
      %v649 = vunpack.c.l.b16 %v425
      %v650 = vunpack.c.l.b16 %v426
      %v651 = vunpack.c.l.b16 %v427
      %v652 = vunpack.c.l.b16 %v428
      %v653 = vunpack.c.l.b16 %v429
      %v654 = vunpack.c.l.b16 %v430
      %v655 = vunpack.c.l.b16 %v431
      %v656 = vunpack.c.l.b16 %v432
      %v657 = vunpack.c.l.b16 %v433
      %v658 = vunpack.c.l.b16 %v434
      %v659 = vunpack.c.l.b16 %v435
      %v660 = vunpack.c.l.b16 %v436
      %v661 = vunpack.c.l.b16 %v437
      %v662 = vunpack.c.l.b16 %v438
      %v663 = vunpack.c.l.b16 %v439
      %v664 = vpack.c.b16 %v633, %v632
      %v665 = vpack.c.b16 %v635, %v634
      %v666 = vpack.c.b16 %v637, %v636
      %v667 = vpack.c.b16 %v639, %v638
      %v668 = vpack.c.b16 %v641, %v640
      %v669 = vpack.c.b16 %v643, %v642
      %v670 = vpack.c.b16 %v645, %v644
      %v671 = vpack.c.b16 %v647, %v646
      %v672 = vpack.c.b16 %v649, %v648
      %v673 = vpack.c.b16 %v651, %v650
      %v674 = vpack.c.b16 %v653, %v652
      %v675 = vpack.c.b16 %v655, %v654
      %v676 = vpack.c.b16 %v657, %v656
      %v677 = vpack.c.b16 %v659, %v658
      %v678 = vpack.c.b16 %v661, %v660
      %v679 = vpack.c.b16 %v663, %v662
      %696 = vmatpush.bf16.msra.mxu0 %v671
      %697 = vmatpush.bf16.msra.mxu0 %v670
      %698 = vmatpush.bf16.msra.mxu0 %v669
      %699 = vmatpush.bf16.msra.mxu0 %v668
      %700 = vmatpush.bf16.msra.mxu0 %v667
      %701 = vmatpush.bf16.msra.mxu0 %v666
      %702 = vmatpush.bf16.msra.mxu0 %v665
      %703 = vmatpush.bf16.msra.mxu0 %v664
      %704 = vmatmul.bf16.gmra.mxu0 %v536
      %v705 = vpop.f32.mrf.mxu0
      %v706 = vadd.f32 0.0, %v705
      %v707 = vpop.f32.mrf.mxu0
      %v708 = vadd.f32 0.0, %v707
      %709 = vmatmul.bf16.gmra.mxu0 %v538
      %v710 = vpop.f32.mrf.mxu0
      %v711 = vadd.f32 0.0, %v710
      %v712 = vpop.f32.mrf.mxu0
      %v713 = vadd.f32 0.0, %v712
      %714 = vmatmul.bf16.gmra.mxu0 %v540
      %v715 = vpop.f32.mrf.mxu0
      %v716 = vadd.f32 0.0, %v715
      %v717 = vpop.f32.mrf.mxu0
      %v718 = vadd.f32 0.0, %v717
      %719 = vmatmul.bf16.gmra.mxu0 %v542
      %v720 = vpop.f32.mrf.mxu0
      %v721 = vadd.f32 0.0, %v720
      %v722 = vpop.f32.mrf.mxu0
      %v723 = vadd.f32 0.0, %v722
      %724 = vmatmul.bf16.gmra.mxu0 %v544
      %v725 = vpop.f32.mrf.mxu0
      %v726 = vadd.f32 0.0, %v725
      %v727 = vpop.f32.mrf.mxu0
      %v728 = vadd.f32 0.0, %v727
      %729 = vmatmul.bf16.gmra.mxu0 %v546
      %v730 = vpop.f32.mrf.mxu0
      %v731 = vadd.f32 0.0, %v730
      %v732 = vpop.f32.mrf.mxu0
      %v733 = vadd.f32 0.0, %v732
      %734 = vmatmul.bf16.gmra.mxu0 %v548
      %v735 = vpop.f32.mrf.mxu0
      %v736 = vadd.f32 0.0, %v735
      %v737 = vpop.f32.mrf.mxu0
      %v738 = vadd.f32 0.0, %v737
      %739 = vmatmul.bf16.gmra.mxu0 %v550
      %v740 = vpop.f32.mrf.mxu0
      %v741 = vadd.f32 0.0, %v740
      %v742 = vpop.f32.mrf.mxu0
      %v743 = vadd.f32 0.0, %v742
      %744 = vmatmul.bf16.gmra.mxu0 %v552
      %v745 = vpop.f32.mrf.mxu0
      %v746 = vadd.f32 0.0, %v745
      %v747 = vpop.f32.mrf.mxu0
      %v748 = vadd.f32 0.0, %v747
      %749 = vmatmul.bf16.gmra.mxu0 %v554
      %v750 = vpop.f32.mrf.mxu0
      %v751 = vadd.f32 0.0, %v750
      %v752 = vpop.f32.mrf.mxu0
      %v753 = vadd.f32 0.0, %v752
      %754 = vmatmul.bf16.gmra.mxu0 %v556
      %v755 = vpop.f32.mrf.mxu0
      %v756 = vadd.f32 0.0, %v755
      %v757 = vpop.f32.mrf.mxu0
      %v758 = vadd.f32 0.0, %v757
      %759 = vmatmul.bf16.gmra.mxu0 %v558
      %v760 = vpop.f32.mrf.mxu0
      %v761 = vadd.f32 0.0, %v760
      %v762 = vpop.f32.mrf.mxu0
      %v763 = vadd.f32 0.0, %v762
      %764 = vmatmul.bf16.gmra.mxu0 %v560
      %v765 = vpop.f32.mrf.mxu0
      %v766 = vadd.f32 0.0, %v765
      %v767 = vpop.f32.mrf.mxu0
      %v768 = vadd.f32 0.0, %v767
      %769 = vmatmul.bf16.gmra.mxu0 %v562
      %v770 = vpop.f32.mrf.mxu0
      %v771 = vadd.f32 0.0, %v770
      %v772 = vpop.f32.mrf.mxu0
      %v773 = vadd.f32 0.0, %v772
      %774 = vmatmul.bf16.gmra.mxu0 %v564
      %v775 = vpop.f32.mrf.mxu0
      %v776 = vadd.f32 0.0, %v775
      %v777 = vpop.f32.mrf.mxu0
      %v778 = vadd.f32 0.0, %v777
      %779 = vmatmul.bf16.gmra.mxu0 %v566
      %v780 = vpop.f32.mrf.mxu0
      %v781 = vadd.f32 0.0, %v780
      %v782 = vpop.f32.mrf.mxu0
      %v783 = vadd.f32 0.0, %v782
      %784 = vdwg.mxu0
      %785 = vmatpush.bf16.msra.mxu0 %v679
      %786 = vmatpush.bf16.msra.mxu0 %v678
      %787 = vmatpush.bf16.msra.mxu0 %v677
      %788 = vmatpush.bf16.msra.mxu0 %v676
      %789 = vmatpush.bf16.msra.mxu0 %v675
      %790 = vmatpush.bf16.msra.mxu0 %v674
      %791 = vmatpush.bf16.msra.mxu0 %v673
      %792 = vmatpush.bf16.msra.mxu0 %v672
      %793 = vmatmul.bf16.gmra.mxu0 %v537
      %v794 = vpop.f32.mrf.mxu0
      %v795 = vadd.f32 %v706, %v794
      %v796 = vpop.f32.mrf.mxu0
      %v797 = vadd.f32 %v708, %v796
      %798 = vmatmul.bf16.gmra.mxu0 %v539
      %v799 = vpop.f32.mrf.mxu0
      %v800 = vadd.f32 %v711, %v799
      %v801 = vpop.f32.mrf.mxu0
      %v802 = vadd.f32 %v713, %v801
      %803 = vmatmul.bf16.gmra.mxu0 %v541
      %v804 = vpop.f32.mrf.mxu0
      %v805 = vadd.f32 %v716, %v804
      %v806 = vpop.f32.mrf.mxu0
      %v807 = vadd.f32 %v718, %v806
      %808 = vmatmul.bf16.gmra.mxu0 %v543
      %v809 = vpop.f32.mrf.mxu0
      %v810 = vadd.f32 %v721, %v809
      %v811 = vpop.f32.mrf.mxu0
      %v812 = vadd.f32 %v723, %v811
      %813 = vmatmul.bf16.gmra.mxu0 %v545
      %v814 = vpop.f32.mrf.mxu0
      %v815 = vadd.f32 %v726, %v814
      %v816 = vpop.f32.mrf.mxu0
      %v817 = vadd.f32 %v728, %v816
      %818 = vmatmul.bf16.gmra.mxu0 %v547
      %v819 = vpop.f32.mrf.mxu0
      %v820 = vadd.f32 %v731, %v819
      %v821 = vpop.f32.mrf.mxu0
      %v822 = vadd.f32 %v733, %v821
      %823 = vmatmul.bf16.gmra.mxu0 %v549
      %v824 = vpop.f32.mrf.mxu0
      %v825 = vadd.f32 %v736, %v824
      %v826 = vpop.f32.mrf.mxu0
      %v827 = vadd.f32 %v738, %v826
      %828 = vmatmul.bf16.gmra.mxu0 %v551
      %v829 = vpop.f32.mrf.mxu0
      %v830 = vadd.f32 %v741, %v829
      %v831 = vpop.f32.mrf.mxu0
      %v832 = vadd.f32 %v743, %v831
      %833 = vmatmul.bf16.gmra.mxu0 %v553
      %v834 = vpop.f32.mrf.mxu0
      %v835 = vadd.f32 %v746, %v834
      %v836 = vpop.f32.mrf.mxu0
      %v837 = vadd.f32 %v748, %v836
      %838 = vmatmul.bf16.gmra.mxu0 %v555
      %v839 = vpop.f32.mrf.mxu0
      %v840 = vadd.f32 %v751, %v839
      %v841 = vpop.f32.mrf.mxu0
      %v842 = vadd.f32 %v753, %v841
      %843 = vmatmul.bf16.gmra.mxu0 %v557
      %v844 = vpop.f32.mrf.mxu0
      %v845 = vadd.f32 %v756, %v844
      %v846 = vpop.f32.mrf.mxu0
      %v847 = vadd.f32 %v758, %v846
      %848 = vmatmul.bf16.gmra.mxu0 %v559
      %v849 = vpop.f32.mrf.mxu0
      %v850 = vadd.f32 %v761, %v849
      %v851 = vpop.f32.mrf.mxu0
      %v852 = vadd.f32 %v763, %v851
      %853 = vmatmul.bf16.gmra.mxu0 %v561
      %v854 = vpop.f32.mrf.mxu0
      %v855 = vadd.f32 %v766, %v854
      %v856 = vpop.f32.mrf.mxu0
      %v857 = vadd.f32 %v768, %v856
      %858 = vmatmul.bf16.gmra.mxu0 %v563
      %v859 = vpop.f32.mrf.mxu0
      %v860 = vadd.f32 %v771, %v859
      %v861 = vpop.f32.mrf.mxu0
      %v862 = vadd.f32 %v773, %v861
      %863 = vmatmul.bf16.gmra.mxu0 %v565
      %v864 = vpop.f32.mrf.mxu0
      %v865 = vadd.f32 %v776, %v864
      %v866 = vpop.f32.mrf.mxu0
      %v867 = vadd.f32 %v778, %v866
      %868 = vmatmul.bf16.gmra.mxu0 %v567
      %v869 = vpop.f32.mrf.mxu0
      %v870 = vadd.f32 %v781, %v869
      %v871 = vpop.f32.mrf.mxu0
      %v872 = vadd.f32 %v783, %v871
      %873 = vdwg.mxu0
      %v874 = vadd.f32 %v376, %v795
      %v875 = vadd.f32 %v377, %v797
      %v876 = vadd.f32 %v378, %v800
      %v877 = vadd.f32 %v379, %v802
      %v878 = vadd.f32 %v380, %v805
      %v879 = vadd.f32 %v381, %v807
      %v880 = vadd.f32 %v382, %v810
      %v881 = vadd.f32 %v383, %v812
      %v882 = vadd.f32 %v384, %v815
      %v883 = vadd.f32 %v385, %v817
      %v884 = vadd.f32 %v386, %v820
      %v885 = vadd.f32 %v387, %v822
      %v886 = vadd.f32 %v388, %v825
      %v887 = vadd.f32 %v389, %v827
      %v888 = vadd.f32 %v390, %v830
      %v889 = vadd.f32 %v391, %v832
      %v890 = vadd.f32 %v392, %v835
      %v891 = vadd.f32 %v393, %v837
      %v892 = vadd.f32 %v394, %v840
      %v893 = vadd.f32 %v395, %v842
      %v894 = vadd.f32 %v396, %v845
      %v895 = vadd.f32 %v397, %v847
      %v896 = vadd.f32 %v398, %v850
      %v897 = vadd.f32 %v399, %v852
      %v898 = vadd.f32 %v400, %v855
      %v899 = vadd.f32 %v401, %v857
      %v900 = vadd.f32 %v402, %v860
      %v901 = vadd.f32 %v403, %v862
      %v902 = vadd.f32 %v404, %v865
      %v903 = vadd.f32 %v405, %v867
      %v904 = vadd.f32 %v406, %v870
      %v905 = vadd.f32 %v407, %v872
      %906 = vst [vmem:[#allocation2] sm:$0xff] %v874
      %907 = vst [vmem:[#allocation2 + $0x8] sm:$0xff] %v875
      %908 = vst [vmem:[#allocation2 + $0x10] sm:$0xff] %v876
      %909 = vst [vmem:[#allocation2 + $0x18] sm:$0xff] %v877
      %910 = vst [vmem:[#allocation2 + $0x20] sm:$0xff] %v878
      %911 = vst [vmem:[#allocation2 + $0x28] sm:$0xff] %v879
      %912 = vst [vmem:[#allocation2 + $0x30] sm:$0xff] %v880
      %913 = vst [vmem:[#allocation2 + $0x38] sm:$0xff] %v881
      %914 = vst [vmem:[#allocation2 + $0x40] sm:$0xff] %v882
      %915 = vst [vmem:[#allocation2 + $0x48] sm:$0xff] %v883
      %916 = vst [vmem:[#allocation2 + $0x50] sm:$0xff] %v884
      %917 = vst [vmem:[#allocation2 + $0x58] sm:$0xff] %v885
      %918 = vst [vmem:[#allocation2 + $0x60] sm:$0xff] %v886
      %919 = vst [vmem:[#allocation2 + $0x68] sm:$0xff] %v887
      %920 = vst [vmem:[#allocation2 + $0x70] sm:$0xff] %v888
      %921 = vst [vmem:[#allocation2 + $0x78] sm:$0xff] %v889
      %922 = vst [vmem:[#allocation2 + $0x80] sm:$0xff] %v890
      %923 = vst [vmem:[#allocation2 + $0x88] sm:$0xff] %v891
      %924 = vst [vmem:[#allocation2 + $0x90] sm:$0xff] %v892
      %925 = vst [vmem:[#allocation2 + $0x98] sm:$0xff] %v893
      %926 = vst [vmem:[#allocation2 + $0xa0] sm:$0xff] %v894
      %927 = vst [vmem:[#allocation2 + $0xa8] sm:$0xff] %v895
      %928 = vst [vmem:[#allocation2 + $0xb0] sm:$0xff] %v896
      %929 = vst [vmem:[#allocation2 + $0xb8] sm:$0xff] %v897
      %930 = vst [vmem:[#allocation2 + $0xc0] sm:$0xff] %v898
      %931 = vst [vmem:[#allocation2 + $0xc8] sm:$0xff] %v899
      %932 = vst [vmem:[#allocation2 + $0xd0] sm:$0xff] %v900
      %933 = vst [vmem:[#allocation2 + $0xd8] sm:$0xff] %v901
      %934 = vst [vmem:[#allocation2 + $0xe0] sm:$0xff] %v902
      %935 = vst [vmem:[#allocation2 + $0xe8] sm:$0xff] %v903
      %936 = vst [vmem:[#allocation2 + $0xf0] sm:$0xff] %v904
      %937 = vst [vmem:[#allocation2 + $0xf8] sm:$0xff] %v905
      // Predicated region
      $region41: #{densenet_forward.14} parent=35 // pred_check
        %p938 = pneg %p308
      $region42: #{densenet_forward.14} parent=35 // pred_check_branch
        %940 = sbr.rel (%p938) target = $region44
      $region43: #{densenet_forward.14} parent=35 // pred_region
        %v941 = vld [vmem:[#allocation2] sm:$0xff]
        %v942 = vld [vmem:[#allocation2 + $0x8] sm:$0xff]
        %v943 = vld [vmem:[#allocation2 + $0x10] sm:$0xff]
        %v944 = vld [vmem:[#allocation2 + $0x18] sm:$0xff]
        %v945 = vld [vmem:[#allocation2 + $0x20] sm:$0xff]
        %v946 = vld [vmem:[#allocation2 + $0x28] sm:$0xff]
        %v947 = vld [vmem:[#allocation2 + $0x30] sm:$0xff]
        %v948 = vld [vmem:[#allocation2 + $0x38] sm:$0xff]
        %v949 = vld [vmem:[#allocation2 + $0x40] sm:$0xff]
        %v950 = vld [vmem:[#allocation2 + $0x48] sm:$0xff]
        %v951 = vld [vmem:[#allocation2 + $0x50] sm:$0xff]
        %v952 = vld [vmem:[#allocation2 + $0x58] sm:$0xff]
        %v953 = vld [vmem:[#allocation2 + $0x60] sm:$0xff]
        %v954 = vld [vmem:[#allocation2 + $0x68] sm:$0xff]
        %v955 = vld [vmem:[#allocation2 + $0x70] sm:$0xff]
        %v956 = vld [vmem:[#allocation2 + $0x78] sm:$0xff]
        %v957 = vld [vmem:[#allocation2 + $0x80] sm:$0xff]
        %v958 = vld [vmem:[#allocation2 + $0x88] sm:$0xff]
        %v959 = vld [vmem:[#allocation2 + $0x90] sm:$0xff]
        %v960 = vld [vmem:[#allocation2 + $0x98] sm:$0xff]
        %v961 = vld [vmem:[#allocation2 + $0xa0] sm:$0xff]
        %v962 = vld [vmem:[#allocation2 + $0xa8] sm:$0xff]
        %v963 = vld [vmem:[#allocation2 + $0xb0] sm:$0xff]
        %v964 = vld [vmem:[#allocation2 + $0xb8] sm:$0xff]
        %v965 = vld [vmem:[#allocation2 + $0xc0] sm:$0xff]
        %v966 = vld [vmem:[#allocation2 + $0xc8] sm:$0xff]
        %v967 = vld [vmem:[#allocation2 + $0xd0] sm:$0xff]
        %v968 = vld [vmem:[#allocation2 + $0xd8] sm:$0xff]
        %v969 = vld [vmem:[#allocation2 + $0xe0] sm:$0xff]
        %v970 = vld [vmem:[#allocation2 + $0xe8] sm:$0xff]
        %v971 = vld [vmem:[#allocation2 + $0xf0] sm:$0xff]
        %v972 = vld [vmem:[#allocation2 + $0xf8] sm:$0xff]
        %v973 = vld [vmem:[%s295] sm:$0x1]
        %v975 = vperm.slane %v973, 0
        %v977 = vmul.f32 %v941, %v975
        %v978 = vmul.f32 %v942, %v975
        %v979 = vmul.f32 %v943, %v975
        %v980 = vmul.f32 %v944, %v975
        %v981 = vmul.f32 %v945, %v975
        %v982 = vmul.f32 %v946, %v975
        %v983 = vmul.f32 %v947, %v975
        %v984 = vmul.f32 %v948, %v975
        %v985 = vmul.f32 %v949, %v975
        %v986 = vmul.f32 %v950, %v975
        %v987 = vmul.f32 %v951, %v975
        %v988 = vmul.f32 %v952, %v975
        %v989 = vmul.f32 %v953, %v975
        %v990 = vmul.f32 %v954, %v975
        %v991 = vmul.f32 %v955, %v975
        %v992 = vmul.f32 %v956, %v975
        %v993 = vmul.f32 %v957, %v975
        %v994 = vmul.f32 %v958, %v975
        %v995 = vmul.f32 %v959, %v975
        %v996 = vmul.f32 %v960, %v975
        %v997 = vmul.f32 %v961, %v975
        %v998 = vmul.f32 %v962, %v975
        %v999 = vmul.f32 %v963, %v975
        %v1000 = vmul.f32 %v964, %v975
        %v1001 = vmul.f32 %v965, %v975
        %v1002 = vmul.f32 %v966, %v975
        %v1003 = vmul.f32 %v967, %v975
        %v1004 = vmul.f32 %v968, %v975
        %v1005 = vmul.f32 %v969, %v975
        %v1006 = vmul.f32 %v970, %v975
        %v1007 = vmul.f32 %v971, %v975
        %v1008 = vmul.f32 %v972, %v975
        %v1009 = vld [vmem:[%s298] sm:$0x1]
        %v1011 = vperm.slane %v1009, 0
        %v1013 = vadd.f32 %v977, %v1011
        %v1014 = vadd.f32 %v978, %v1011
        %v1015 = vadd.f32 %v979, %v1011
        %v1016 = vadd.f32 %v980, %v1011
        %v1017 = vadd.f32 %v981, %v1011
        %v1018 = vadd.f32 %v982, %v1011
        %v1019 = vadd.f32 %v983, %v1011
        %v1020 = vadd.f32 %v984, %v1011
        %v1021 = vadd.f32 %v985, %v1011
        %v1022 = vadd.f32 %v986, %v1011
        %v1023 = vadd.f32 %v987, %v1011
        %v1024 = vadd.f32 %v988, %v1011
        %v1025 = vadd.f32 %v989, %v1011
        %v1026 = vadd.f32 %v990, %v1011
        %v1027 = vadd.f32 %v991, %v1011
        %v1028 = vadd.f32 %v992, %v1011
        %v1029 = vadd.f32 %v993, %v1011
        %v1030 = vadd.f32 %v994, %v1011
        %v1031 = vadd.f32 %v995, %v1011
        %v1032 = vadd.f32 %v996, %v1011
        %v1033 = vadd.f32 %v997, %v1011
        %v1034 = vadd.f32 %v998, %v1011
        %v1035 = vadd.f32 %v999, %v1011
        %v1036 = vadd.f32 %v1000, %v1011
        %v1037 = vadd.f32 %v1001, %v1011
        %v1038 = vadd.f32 %v1002, %v1011
        %v1039 = vadd.f32 %v1003, %v1011
        %v1040 = vadd.f32 %v1004, %v1011
        %v1041 = vadd.f32 %v1005, %v1011
        %v1042 = vadd.f32 %v1006, %v1011
        %v1043 = vadd.f32 %v1007, %v1011
        %v1044 = vadd.f32 %v1008, %v1011
        %v1045 = vmax.f32 %v1013, 0.0
        %v1046 = vmax.f32 %v1014, 0.0
        %v1047 = vmax.f32 %v1015, 0.0
        %v1048 = vmax.f32 %v1016, 0.0
        %v1049 = vmax.f32 %v1017, 0.0
        %v1050 = vmax.f32 %v1018, 0.0
        %v1051 = vmax.f32 %v1019, 0.0
        %v1052 = vmax.f32 %v1020, 0.0
        %v1053 = vmax.f32 %v1021, 0.0
        %v1054 = vmax.f32 %v1022, 0.0
        %v1055 = vmax.f32 %v1023, 0.0
        %v1056 = vmax.f32 %v1024, 0.0
        %v1057 = vmax.f32 %v1025, 0.0
        %v1058 = vmax.f32 %v1026, 0.0
        %v1059 = vmax.f32 %v1027, 0.0
        %v1060 = vmax.f32 %v1028, 0.0
        %v1061 = vmax.f32 %v1029, 0.0
        %v1062 = vmax.f32 %v1030, 0.0
        %v1063 = vmax.f32 %v1031, 0.0
        %v1064 = vmax.f32 %v1032, 0.0
        %v1065 = vmax.f32 %v1033, 0.0
        %v1066 = vmax.f32 %v1034, 0.0
        %v1067 = vmax.f32 %v1035, 0.0
        %v1068 = vmax.f32 %v1036, 0.0
        %v1069 = vmax.f32 %v1037, 0.0
        %v1070 = vmax.f32 %v1038, 0.0
        %v1071 = vmax.f32 %v1039, 0.0
        %v1072 = vmax.f32 %v1040, 0.0
        %v1073 = vmax.f32 %v1041, 0.0
        %v1074 = vmax.f32 %v1042, 0.0
        %v1075 = vmax.f32 %v1043, 0.0
        %v1076 = vmax.f32 %v1044, 0.0
        %v1077 = vpack.c.bf16 %v1045, %v1045
        %v1078 = vpack.c.bf16 %v1046, %v1046
        %v1079 = vpack.c.bf16 %v1047, %v1047
        %v1080 = vpack.c.bf16 %v1048, %v1048
        %v1081 = vpack.c.bf16 %v1049, %v1049
        %v1082 = vpack.c.bf16 %v1050, %v1050
        %v1083 = vpack.c.bf16 %v1051, %v1051
        %v1084 = vpack.c.bf16 %v1052, %v1052
        %v1085 = vpack.c.bf16 %v1053, %v1053
        %v1086 = vpack.c.bf16 %v1054, %v1054
        %v1087 = vpack.c.bf16 %v1055, %v1055
        %v1088 = vpack.c.bf16 %v1056, %v1056
        %v1089 = vpack.c.bf16 %v1057, %v1057
        %v1090 = vpack.c.bf16 %v1058, %v1058
        %v1091 = vpack.c.bf16 %v1059, %v1059
        %v1092 = vpack.c.bf16 %v1060, %v1060
        %v1093 = vpack.c.bf16 %v1061, %v1061
        %v1094 = vpack.c.bf16 %v1062, %v1062
        %v1095 = vpack.c.bf16 %v1063, %v1063
        %v1096 = vpack.c.bf16 %v1064, %v1064
        %v1097 = vpack.c.bf16 %v1065, %v1065
        %v1098 = vpack.c.bf16 %v1066, %v1066
        %v1099 = vpack.c.bf16 %v1067, %v1067
        %v1100 = vpack.c.bf16 %v1068, %v1068
        %v1101 = vpack.c.bf16 %v1069, %v1069
        %v1102 = vpack.c.bf16 %v1070, %v1070
        %v1103 = vpack.c.bf16 %v1071, %v1071
        %v1104 = vpack.c.bf16 %v1072, %v1072
        %v1105 = vpack.c.bf16 %v1073, %v1073
        %v1106 = vpack.c.bf16 %v1074, %v1074
        %v1107 = vpack.c.bf16 %v1075, %v1075
        %v1108 = vpack.c.bf16 %v1076, %v1076
        %1109 = vst [vmem:[%s306] sm:$0xf] %v1077
        %1110 = vst [vmem:[%s306 + $0x4] sm:$0xf] %v1078
        %1111 = vst [vmem:[%s306 + $0x8] sm:$0xf] %v1079
        %1112 = vst [vmem:[%s306 + $0xc] sm:$0xf] %v1080
        %1113 = vst [vmem:[%s306 + $0x10] sm:$0xf] %v1081
        %1114 = vst [vmem:[%s306 + $0x14] sm:$0xf] %v1082
        %1115 = vst [vmem:[%s306 + $0x18] sm:$0xf] %v1083
        %1116 = vst [vmem:[%s306 + $0x1c] sm:$0xf] %v1084
        %1117 = vst [vmem:[%s306 + $0x20] sm:$0xf] %v1085
        %1118 = vst [vmem:[%s306 + $0x24] sm:$0xf] %v1086
        %1119 = vst [vmem:[%s306 + $0x28] sm:$0xf] %v1087
        %1120 = vst [vmem:[%s306 + $0x2c] sm:$0xf] %v1088
        %1121 = vst [vmem:[%s306 + $0x30] sm:$0xf] %v1089
        %1122 = vst [vmem:[%s306 + $0x34] sm:$0xf] %v1090
        %1123 = vst [vmem:[%s306 + $0x38] sm:$0xf] %v1091
        %1124 = vst [vmem:[%s306 + $0x3c] sm:$0xf] %v1092
        %1125 = vst [vmem:[%s306 + $0x40] sm:$0xf] %v1093
        %1126 = vst [vmem:[%s306 + $0x44] sm:$0xf] %v1094
        %1127 = vst [vmem:[%s306 + $0x48] sm:$0xf] %v1095
        %1128 = vst [vmem:[%s306 + $0x4c] sm:$0xf] %v1096
        %1129 = vst [vmem:[%s306 + $0x50] sm:$0xf] %v1097
        %1130 = vst [vmem:[%s306 + $0x54] sm:$0xf] %v1098
        %1131 = vst [vmem:[%s306 + $0x58] sm:$0xf] %v1099
        %1132 = vst [vmem:[%s306 + $0x5c] sm:$0xf] %v1100
        %1133 = vst [vmem:[%s306 + $0x60] sm:$0xf] %v1101
        %1134 = vst [vmem:[%s306 + $0x64] sm:$0xf] %v1102
        %1135 = vst [vmem:[%s306 + $0x68] sm:$0xf] %v1103
        %1136 = vst [vmem:[%s306 + $0x6c] sm:$0xf] %v1104
        %1137 = vst [vmem:[%s306 + $0x70] sm:$0xf] %v1105
        %1138 = vst [vmem:[%s306 + $0x74] sm:$0xf] %v1106
        %1139 = vst [vmem:[%s306 + $0x78] sm:$0xf] %v1107
        %1140 = vst [vmem:[%s306 + $0x7c] sm:$0xf] %v1108
      $region44: #{densenet_forward.14} parent=35 // pred_fallthru
        _
      %s1141 = smul.u32 32, %s20
      %p1142 = scmp.lt.s32.totalorder %s1141, 63
      %s1143 = scalar_select %p1142, %s1141, 63
      %p1144 = scmp.lt.s32.totalorder %s21, 0
      %s1145 = scalar_select %p1144, %s21, 0
      %s1146 = sadd.s32 %s1145, %s1143
      %s1147 = smul.addr %s1146, 4
      %s1148 = scalar_lea.vmem %s4, %s1147
      // Predicated region
      $region45: #{densenet_forward.14} parent=35 // pred_check
        %p1149 = pneg %p162
      $region46: #{densenet_forward.14} parent=35 // pred_check_branch
        %1151 = sbr.rel (%p1149) target = $region48
      $region47: #{densenet_forward.14} parent=35 // pred_region
        %s1152 = smul.u32 32, %s20
      $region48: #{densenet_forward.14} parent=35 // pred_fallthru
        _
    $region36: #{densenet_forward.14} parent=5 // pred_fallthru
      _
    %p1153 = scmp.le.s32.totalorder 2, %s10
    // Predicated region
    $region49: #{densenet_forward.14} parent=5 // pred_check
      %p1154 = pneg %p1153
    $region50: #{densenet_forward.14} parent=5 // pred_check_branch
      %1156 = sbr.rel (%p1154) target = $region52
    $region51: #{densenet_forward.14} parent=5 // pred_region
      %s1157 = ssub.s32 %s10, 2
      // Predicated region
      $region53: #{densenet_forward.14} parent=51 // pred_check
        %p1158 = pneg %p168
      $region54: #{densenet_forward.14} parent=51 // pred_check_branch
        %1160 = sbr.rel (%p1158) target = $region56
      $region55: #{densenet_forward.14} parent=51 // pred_region
        %s1161 = smul.u32 32, %s23
        %p1162 = scmp.lt.s32.totalorder %s1161, 63
        %s1163 = scalar_select %p1162, %s1161, 63
        %p1164 = scmp.lt.s32.totalorder %s24, 0
        %s1165 = scalar_select %p1164, %s24, 0
        %s1166 = sadd.s32 %s1165, %s1163
        %s1167 = smul.addr %s1166, 4
        %s1168 = scalar_lea.vmem %s4, %s1167
      $region56: #{densenet_forward.14} parent=51 // pred_fallthru
        _
    $region52: #{densenet_forward.14} parent=5 // pred_fallthru
      _
  $region6: #{densenet_forward.14} parent=0 // loop_footer
    %s14 = sadd.s32 1, %s10
  $region7: #{densenet_forward.14} parent=0 // loop_footer_branch
    %9 = sbr.rel target = $region3
  $region8: #{densenet_forward.14} parent=0 // loop_exit
    _

// kernel: densenet_forward.15
$region0: #{densenet_forward.15}
  #allocation0 [shape = 'u32[]', space=smem, size = 0x4, offset = 0x4, fixed_abs, tag = 'smem constant byte address 0x4 - core index']
  #allocation1 [shape = 'u32[72,128]{1,0:T(1,128)}', space=vmem, size = 0x9000, scoped, tag = 'internal scratch']
  %s0 = inlined_call_operand.vmem [shape: bf16[9,128,16], index: 0, kind: input, shape index: {}]
  %s1 = inlined_call_operand.vmem [shape: bf16[128,16], index: 1, kind: output, shape index: {}]
  %s2 = sld [smem:[#allocation0]]
  $region14: #{densenet_forward.15} parent=0
    _
  %s4 = ssub.s32 1, %s2
  %s5 = scalar_select 0, %s4, %s2
  // Predicated region
  $region2: #{densenet_forward.15} parent=0 // pred_check
    _
  $region3: #{densenet_forward.15} parent=0 // pred_check_branch
    %7 = sbr.rel (0) target = $region5
  $region4: #{densenet_forward.15} parent=0 // pred_region
    _
  $region5: #{densenet_forward.15} parent=0 // pred_fallthru
    _
  %v8 = vld [vmem:[%s0] sm:$0xf]
  %v9 = vld [vmem:[%s0 + $0x4] sm:$0xf]
  %v10 = vld [vmem:[%s0 + $0x8] sm:$0xf]
  %v11 = vld [vmem:[%s0 + $0xc] sm:$0xf]
  %v12 = vld [vmem:[%s0 + $0x10] sm:$0xf]
  %v13 = vld [vmem:[%s0 + $0x14] sm:$0xf]
  %v14 = vld [vmem:[%s0 + $0x18] sm:$0xf]
  %v15 = vld [vmem:[%s0 + $0x1c] sm:$0xf]
  %v16 = vld [vmem:[%s0 + $0x20] sm:$0xf]
  %v17 = vld [vmem:[%s0 + $0x24] sm:$0xf]
  %v18 = vld [vmem:[%s0 + $0x28] sm:$0xf]
  %v19 = vld [vmem:[%s0 + $0x2c] sm:$0xf]
  %v20 = vld [vmem:[%s0 + $0x30] sm:$0xf]
  %v21 = vld [vmem:[%s0 + $0x34] sm:$0xf]
  %v22 = vld [vmem:[%s0 + $0x38] sm:$0xf]
  %v23 = vld [vmem:[%s0 + $0x3c] sm:$0xf]
  %v24 = vld [vmem:[%s0 + $0x40] sm:$0xf]
  %v25 = vld [vmem:[%s0 + $0x44] sm:$0xf]
  %v26 = vld [vmem:[%s0 + $0x48] sm:$0xf]
  %v27 = vld [vmem:[%s0 + $0x4c] sm:$0xf]
  %v28 = vld [vmem:[%s0 + $0x50] sm:$0xf]
  %v29 = vld [vmem:[%s0 + $0x54] sm:$0xf]
  %v30 = vld [vmem:[%s0 + $0x58] sm:$0xf]
  %v31 = vld [vmem:[%s0 + $0x5c] sm:$0xf]
  %v32 = vld [vmem:[%s0 + $0x60] sm:$0xf]
  %v33 = vld [vmem:[%s0 + $0x64] sm:$0xf]
  %v34 = vld [vmem:[%s0 + $0x68] sm:$0xf]
  %v35 = vld [vmem:[%s0 + $0x6c] sm:$0xf]
  %v36 = vld [vmem:[%s0 + $0x70] sm:$0xf]
  %v37 = vld [vmem:[%s0 + $0x74] sm:$0xf]
  %v38 = vld [vmem:[%s0 + $0x78] sm:$0xf]
  %v39 = vld [vmem:[%s0 + $0x7c] sm:$0xf]
  %v40 = vld [vmem:[%s0 + $0x80] sm:$0xf]
  %v41 = vld [vmem:[%s0 + $0x84] sm:$0xf]
  %v42 = vld [vmem:[%s0 + $0x88] sm:$0xf]
  %v43 = vld [vmem:[%s0 + $0x8c] sm:$0xf]
  %v44 = vld [vmem:[%s0 + $0x90] sm:$0xf]
  %v45 = vld [vmem:[%s0 + $0x94] sm:$0xf]
  %v46 = vld [vmem:[%s0 + $0x98] sm:$0xf]
  %v47 = vld [vmem:[%s0 + $0x9c] sm:$0xf]
  %v48 = vld [vmem:[%s0 + $0xa0] sm:$0xf]
  %v49 = vld [vmem:[%s0 + $0xa4] sm:$0xf]
  %v50 = vld [vmem:[%s0 + $0xa8] sm:$0xf]
  %v51 = vld [vmem:[%s0 + $0xac] sm:$0xf]
  %v52 = vld [vmem:[%s0 + $0xb0] sm:$0xf]
  %v53 = vld [vmem:[%s0 + $0xb4] sm:$0xf]
  %v54 = vld [vmem:[%s0 + $0xb8] sm:$0xf]
  %v55 = vld [vmem:[%s0 + $0xbc] sm:$0xf]
  %v56 = vld [vmem:[%s0 + $0xc0] sm:$0xf]
  %v57 = vld [vmem:[%s0 + $0xc4] sm:$0xf]
  %v58 = vld [vmem:[%s0 + $0xc8] sm:$0xf]
  %v59 = vld [vmem:[%s0 + $0xcc] sm:$0xf]
  %v60 = vld [vmem:[%s0 + $0xd0] sm:$0xf]
  %v61 = vld [vmem:[%s0 + $0xd4] sm:$0xf]
  %v62 = vld [vmem:[%s0 + $0xd8] sm:$0xf]
  %v63 = vld [vmem:[%s0 + $0xdc] sm:$0xf]
  %v64 = vld [vmem:[%s0 + $0xe0] sm:$0xf]
  %v65 = vld [vmem:[%s0 + $0xe4] sm:$0xf]
  %v66 = vld [vmem:[%s0 + $0xe8] sm:$0xf]
  %v67 = vld [vmem:[%s0 + $0xec] sm:$0xf]
  %v68 = vld [vmem:[%s0 + $0xf0] sm:$0xf]
  %v69 = vld [vmem:[%s0 + $0xf4] sm:$0xf]
  %v70 = vld [vmem:[%s0 + $0xf8] sm:$0xf]
  %v71 = vld [vmem:[%s0 + $0xfc] sm:$0xf]
  %v72 = vld [vmem:[%s0 + $0x100] sm:$0xf]
  %v73 = vld [vmem:[%s0 + $0x104] sm:$0xf]
  %v74 = vld [vmem:[%s0 + $0x108] sm:$0xf]
  %v75 = vld [vmem:[%s0 + $0x10c] sm:$0xf]
  %v76 = vld [vmem:[%s0 + $0x110] sm:$0xf]
  %v77 = vld [vmem:[%s0 + $0x114] sm:$0xf]
  %v78 = vld [vmem:[%s0 + $0x118] sm:$0xf]
  %v79 = vld [vmem:[%s0 + $0x11c] sm:$0xf]
  %v80 = vld [vmem:[%s0 + $0x120] sm:$0xf]
  %v81 = vld [vmem:[%s0 + $0x124] sm:$0xf]
  %v82 = vld [vmem:[%s0 + $0x128] sm:$0xf]
  %v83 = vld [vmem:[%s0 + $0x12c] sm:$0xf]
  %v84 = vld [vmem:[%s0 + $0x130] sm:$0xf]
  %v85 = vld [vmem:[%s0 + $0x134] sm:$0xf]
  %v86 = vld [vmem:[%s0 + $0x138] sm:$0xf]
  %v87 = vld [vmem:[%s0 + $0x13c] sm:$0xf]
  %v88 = vld [vmem:[%s0 + $0x140] sm:$0xf]
  %v89 = vld [vmem:[%s0 + $0x144] sm:$0xf]
  %v90 = vld [vmem:[%s0 + $0x148] sm:$0xf]
  %v91 = vld [vmem:[%s0 + $0x14c] sm:$0xf]
  %v92 = vld [vmem:[%s0 + $0x150] sm:$0xf]
  %v93 = vld [vmem:[%s0 + $0x154] sm:$0xf]
  %v94 = vld [vmem:[%s0 + $0x158] sm:$0xf]
  %v95 = vld [vmem:[%s0 + $0x15c] sm:$0xf]
  %v96 = vld [vmem:[%s0 + $0x160] sm:$0xf]
  %v97 = vld [vmem:[%s0 + $0x164] sm:$0xf]
  %v98 = vld [vmem:[%s0 + $0x168] sm:$0xf]
  %v99 = vld [vmem:[%s0 + $0x16c] sm:$0xf]
  %v100 = vld [vmem:[%s0 + $0x170] sm:$0xf]
  %v101 = vld [vmem:[%s0 + $0x174] sm:$0xf]
  %v102 = vld [vmem:[%s0 + $0x178] sm:$0xf]
  %v103 = vld [vmem:[%s0 + $0x17c] sm:$0xf]
  %v104 = vld [vmem:[%s0 + $0x180] sm:$0xf]
  %v105 = vld [vmem:[%s0 + $0x184] sm:$0xf]
  %v106 = vld [vmem:[%s0 + $0x188] sm:$0xf]
  %v107 = vld [vmem:[%s0 + $0x18c] sm:$0xf]
  %v108 = vld [vmem:[%s0 + $0x190] sm:$0xf]
  %v109 = vld [vmem:[%s0 + $0x194] sm:$0xf]
  %v110 = vld [vmem:[%s0 + $0x198] sm:$0xf]
  %v111 = vld [vmem:[%s0 + $0x19c] sm:$0xf]
  %v112 = vld [vmem:[%s0 + $0x1a0] sm:$0xf]
  %v113 = vld [vmem:[%s0 + $0x1a4] sm:$0xf]
  %v114 = vld [vmem:[%s0 + $0x1a8] sm:$0xf]
  %v115 = vld [vmem:[%s0 + $0x1ac] sm:$0xf]
  %v116 = vld [vmem:[%s0 + $0x1b0] sm:$0xf]
  %v117 = vld [vmem:[%s0 + $0x1b4] sm:$0xf]
  %v118 = vld [vmem:[%s0 + $0x1b8] sm:$0xf]
  %v119 = vld [vmem:[%s0 + $0x1bc] sm:$0xf]
  %v120 = vld [vmem:[%s0 + $0x1c0] sm:$0xf]
  %v121 = vld [vmem:[%s0 + $0x1c4] sm:$0xf]
  %v122 = vld [vmem:[%s0 + $0x1c8] sm:$0xf]
  %v123 = vld [vmem:[%s0 + $0x1cc] sm:$0xf]
  %v124 = vld [vmem:[%s0 + $0x1d0] sm:$0xf]
  %v125 = vld [vmem:[%s0 + $0x1d4] sm:$0xf]
  %v126 = vld [vmem:[%s0 + $0x1d8] sm:$0xf]
  %v127 = vld [vmem:[%s0 + $0x1dc] sm:$0xf]
  %v128 = vld [vmem:[%s0 + $0x1e0] sm:$0xf]
  %v129 = vld [vmem:[%s0 + $0x1e4] sm:$0xf]
  %v130 = vld [vmem:[%s0 + $0x1e8] sm:$0xf]
  %v131 = vld [vmem:[%s0 + $0x1ec] sm:$0xf]
  %v132 = vld [vmem:[%s0 + $0x1f0] sm:$0xf]
  %v133 = vld [vmem:[%s0 + $0x1f4] sm:$0xf]
  %v134 = vld [vmem:[%s0 + $0x1f8] sm:$0xf]
  %v135 = vld [vmem:[%s0 + $0x1fc] sm:$0xf]
  %v136 = vld [vmem:[%s0 + $0x200] sm:$0xf]
  %v137 = vld [vmem:[%s0 + $0x204] sm:$0xf]
  %v138 = vld [vmem:[%s0 + $0x208] sm:$0xf]
  %v139 = vld [vmem:[%s0 + $0x20c] sm:$0xf]
  %v140 = vld [vmem:[%s0 + $0x210] sm:$0xf]
  %v141 = vld [vmem:[%s0 + $0x214] sm:$0xf]
  %v142 = vld [vmem:[%s0 + $0x218] sm:$0xf]
  %v143 = vld [vmem:[%s0 + $0x21c] sm:$0xf]
  %v144 = vld [vmem:[%s0 + $0x220] sm:$0xf]
  %v145 = vld [vmem:[%s0 + $0x224] sm:$0xf]
  %v146 = vld [vmem:[%s0 + $0x228] sm:$0xf]
  %v147 = vld [vmem:[%s0 + $0x22c] sm:$0xf]
  %v148 = vld [vmem:[%s0 + $0x230] sm:$0xf]
  %v149 = vld [vmem:[%s0 + $0x234] sm:$0xf]
  %v150 = vld [vmem:[%s0 + $0x238] sm:$0xf]
  %v151 = vld [vmem:[%s0 + $0x23c] sm:$0xf]
  %v152 = vunpack.c.l.bf16 %v8
  %v153 = vunpack.c.l.bf16 %v9
  %v154 = vunpack.c.l.bf16 %v10
  %v155 = vunpack.c.l.bf16 %v11
  %v156 = vunpack.c.l.bf16 %v12
  %v157 = vunpack.c.l.bf16 %v13
  %v158 = vunpack.c.l.bf16 %v14
  %v159 = vunpack.c.l.bf16 %v15
  %v160 = vunpack.c.l.bf16 %v16
  %v161 = vunpack.c.l.bf16 %v17
  %v162 = vunpack.c.l.bf16 %v18
  %v163 = vunpack.c.l.bf16 %v19
  %v164 = vunpack.c.l.bf16 %v20
  %v165 = vunpack.c.l.bf16 %v21
  %v166 = vunpack.c.l.bf16 %v22
  %v167 = vunpack.c.l.bf16 %v23
  %v168 = vunpack.c.l.bf16 %v24
  %v169 = vunpack.c.l.bf16 %v25
  %v170 = vunpack.c.l.bf16 %v26
  %v171 = vunpack.c.l.bf16 %v27
  %v172 = vunpack.c.l.bf16 %v28
  %v173 = vunpack.c.l.bf16 %v29
  %v174 = vunpack.c.l.bf16 %v30
  %v175 = vunpack.c.l.bf16 %v31
  %v176 = vunpack.c.l.bf16 %v32
  %v177 = vunpack.c.l.bf16 %v33
  %v178 = vunpack.c.l.bf16 %v34
  %v179 = vunpack.c.l.bf16 %v35
  %v180 = vunpack.c.l.bf16 %v36
  %v181 = vunpack.c.l.bf16 %v37
  %v182 = vunpack.c.l.bf16 %v38
  %v183 = vunpack.c.l.bf16 %v39
  %v184 = vunpack.c.l.bf16 %v40
  %v185 = vunpack.c.l.bf16 %v41
  %v186 = vunpack.c.l.bf16 %v42
  %v187 = vunpack.c.l.bf16 %v43
  %v188 = vunpack.c.l.bf16 %v44
  %v189 = vunpack.c.l.bf16 %v45
  %v190 = vunpack.c.l.bf16 %v46
  %v191 = vunpack.c.l.bf16 %v47
  %v192 = vunpack.c.l.bf16 %v48
  %v193 = vunpack.c.l.bf16 %v49
  %v194 = vunpack.c.l.bf16 %v50
  %v195 = vunpack.c.l.bf16 %v51
  %v196 = vunpack.c.l.bf16 %v52
  %v197 = vunpack.c.l.bf16 %v53
  %v198 = vunpack.c.l.bf16 %v54
  %v199 = vunpack.c.l.bf16 %v55
  %v200 = vunpack.c.l.bf16 %v56
  %v201 = vunpack.c.l.bf16 %v57
  %v202 = vunpack.c.l.bf16 %v58
  %v203 = vunpack.c.l.bf16 %v59
  %v204 = vunpack.c.l.bf16 %v60
  %v205 = vunpack.c.l.bf16 %v61
  %v206 = vunpack.c.l.bf16 %v62
  %v207 = vunpack.c.l.bf16 %v63
  %v208 = vunpack.c.l.bf16 %v64
  %v209 = vunpack.c.l.bf16 %v65
  %v210 = vunpack.c.l.bf16 %v66
  %v211 = vunpack.c.l.bf16 %v67
  %v212 = vunpack.c.l.bf16 %v68
  %v213 = vunpack.c.l.bf16 %v69
  %v214 = vunpack.c.l.bf16 %v70
  %v215 = vunpack.c.l.bf16 %v71
  %v216 = vunpack.c.l.bf16 %v72
  %v217 = vunpack.c.l.bf16 %v73
  %v218 = vunpack.c.l.bf16 %v74
  %v219 = vunpack.c.l.bf16 %v75
  %v220 = vunpack.c.l.bf16 %v76
  %v221 = vunpack.c.l.bf16 %v77
  %v222 = vunpack.c.l.bf16 %v78
  %v223 = vunpack.c.l.bf16 %v79
  %v224 = vunpack.c.l.bf16 %v80
  %v225 = vunpack.c.l.bf16 %v81
  %v226 = vunpack.c.l.bf16 %v82
  %v227 = vunpack.c.l.bf16 %v83
  %v228 = vunpack.c.l.bf16 %v84
  %v229 = vunpack.c.l.bf16 %v85
  %v230 = vunpack.c.l.bf16 %v86
  %v231 = vunpack.c.l.bf16 %v87
  %v232 = vunpack.c.l.bf16 %v88
  %v233 = vunpack.c.l.bf16 %v89
  %v234 = vunpack.c.l.bf16 %v90
  %v235 = vunpack.c.l.bf16 %v91
  %v236 = vunpack.c.l.bf16 %v92
  %v237 = vunpack.c.l.bf16 %v93
  %v238 = vunpack.c.l.bf16 %v94
  %v239 = vunpack.c.l.bf16 %v95
  %v240 = vunpack.c.l.bf16 %v96
  %v241 = vunpack.c.l.bf16 %v97
  %v242 = vunpack.c.l.bf16 %v98
  %v243 = vunpack.c.l.bf16 %v99
  %v244 = vunpack.c.l.bf16 %v100
  %v245 = vunpack.c.l.bf16 %v101
  %v246 = vunpack.c.l.bf16 %v102
  %v247 = vunpack.c.l.bf16 %v103
  %v248 = vunpack.c.l.bf16 %v104
  %v249 = vunpack.c.l.bf16 %v105
  %v250 = vunpack.c.l.bf16 %v106
  %v251 = vunpack.c.l.bf16 %v107
  %v252 = vunpack.c.l.bf16 %v108
  %v253 = vunpack.c.l.bf16 %v109
  %v254 = vunpack.c.l.bf16 %v110
  %v255 = vunpack.c.l.bf16 %v111
  %v256 = vunpack.c.l.bf16 %v112
  %v257 = vunpack.c.l.bf16 %v113
  %v258 = vunpack.c.l.bf16 %v114
  %v259 = vunpack.c.l.bf16 %v115
  %v260 = vunpack.c.l.bf16 %v116
  %v261 = vunpack.c.l.bf16 %v117
  %v262 = vunpack.c.l.bf16 %v118
  %v263 = vunpack.c.l.bf16 %v119
  %v264 = vunpack.c.l.bf16 %v120
  %v265 = vunpack.c.l.bf16 %v121
  %v266 = vunpack.c.l.bf16 %v122
  %v267 = vunpack.c.l.bf16 %v123
  %v268 = vunpack.c.l.bf16 %v124
  %v269 = vunpack.c.l.bf16 %v125
  %v270 = vunpack.c.l.bf16 %v126
  %v271 = vunpack.c.l.bf16 %v127
  %v272 = vunpack.c.l.bf16 %v128
  %v273 = vunpack.c.l.bf16 %v129
  %v274 = vunpack.c.l.bf16 %v130
  %v275 = vunpack.c.l.bf16 %v131
  %v276 = vunpack.c.l.bf16 %v132
  %v277 = vunpack.c.l.bf16 %v133
  %v278 = vunpack.c.l.bf16 %v134
  %v279 = vunpack.c.l.bf16 %v135
  %v280 = vunpack.c.l.bf16 %v136
  %v281 = vunpack.c.l.bf16 %v137
  %v282 = vunpack.c.l.bf16 %v138
  %v283 = vunpack.c.l.bf16 %v139
  %v284 = vunpack.c.l.bf16 %v140
  %v285 = vunpack.c.l.bf16 %v141
  %v286 = vunpack.c.l.bf16 %v142
  %v287 = vunpack.c.l.bf16 %v143
  %v288 = vunpack.c.l.bf16 %v144
  %v289 = vunpack.c.l.bf16 %v145
  %v290 = vunpack.c.l.bf16 %v146
  %v291 = vunpack.c.l.bf16 %v147
  %v292 = vunpack.c.l.bf16 %v148
  %v293 = vunpack.c.l.bf16 %v149
  %v294 = vunpack.c.l.bf16 %v150
  %v295 = vunpack.c.l.bf16 %v151
  %vm296 = vcmask 130048
  %v297 = vsel %vm296, %v152, -inf
  %v298 = vsel %vm296, %v168, -inf
  %v299 = vmax.f32 %v297, %v298
  %v300 = vsel %vm296, %v184, -inf
  %v301 = vmax.f32 %v299, %v300
  %v302 = vsel %vm296, %v200, -inf
  %v303 = vmax.f32 %v301, %v302
  %v304 = vsel %vm296, %v216, -inf
  %v305 = vmax.f32 %v303, %v304
  %v306 = vsel %vm296, %v232, -inf
  %v307 = vmax.f32 %v305, %v306
  %v308 = vsel %vm296, %v248, -inf
  %v309 = vmax.f32 %v307, %v308
  %v310 = vsel %vm296, %v264, -inf
  %v311 = vmax.f32 %v309, %v310
  %v312 = vsel %vm296, %v280, -inf
  %v313 = vmax.f32 %v311, %v312
  %v314 = vsel %vm296, %v153, -inf
  %v315 = vsel %vm296, %v169, -inf
  %v316 = vmax.f32 %v314, %v315
  %v317 = vsel %vm296, %v185, -inf
  %v318 = vmax.f32 %v316, %v317
  %v319 = vsel %vm296, %v201, -inf
  %v320 = vmax.f32 %v318, %v319
  %v321 = vsel %vm296, %v217, -inf
  %v322 = vmax.f32 %v320, %v321
  %v323 = vsel %vm296, %v233, -inf
  %v324 = vmax.f32 %v322, %v323
  %v325 = vsel %vm296, %v249, -inf
  %v326 = vmax.f32 %v324, %v325
  %v327 = vsel %vm296, %v265, -inf
  %v328 = vmax.f32 %v326, %v327
  %v329 = vsel %vm296, %v281, -inf
  %v330 = vmax.f32 %v328, %v329
  %v331 = vsel %vm296, %v154, -inf
  %v332 = vsel %vm296, %v170, -inf
  %v333 = vmax.f32 %v331, %v332
  %v334 = vsel %vm296, %v186, -inf
  %v335 = vmax.f32 %v333, %v334
  %v336 = vsel %vm296, %v202, -inf
  %v337 = vmax.f32 %v335, %v336
  %v338 = vsel %vm296, %v218, -inf
  %v339 = vmax.f32 %v337, %v338
  %v340 = vsel %vm296, %v234, -inf
  %v341 = vmax.f32 %v339, %v340
  %v342 = vsel %vm296, %v250, -inf
  %v343 = vmax.f32 %v341, %v342
  %v344 = vsel %vm296, %v266, -inf
  %v345 = vmax.f32 %v343, %v344
  %v346 = vsel %vm296, %v282, -inf
  %v347 = vmax.f32 %v345, %v346
  %v348 = vsel %vm296, %v155, -inf
  %v349 = vsel %vm296, %v171, -inf
  %v350 = vmax.f32 %v348, %v349
  %v351 = vsel %vm296, %v187, -inf
  %v352 = vmax.f32 %v350, %v351
  %v353 = vsel %vm296, %v203, -inf
  %v354 = vmax.f32 %v352, %v353
  %v355 = vsel %vm296, %v219, -inf
  %v356 = vmax.f32 %v354, %v355
  %v357 = vsel %vm296, %v235, -inf
  %v358 = vmax.f32 %v356, %v357
  %v359 = vsel %vm296, %v251, -inf
  %v360 = vmax.f32 %v358, %v359
  %v361 = vsel %vm296, %v267, -inf
  %v362 = vmax.f32 %v360, %v361
  %v363 = vsel %vm296, %v283, -inf
  %v364 = vmax.f32 %v362, %v363
  %v365 = vsel %vm296, %v156, -inf
  %v366 = vsel %vm296, %v172, -inf
  %v367 = vmax.f32 %v365, %v366
  %v368 = vsel %vm296, %v188, -inf
  %v369 = vmax.f32 %v367, %v368
  %v370 = vsel %vm296, %v204, -inf
  %v371 = vmax.f32 %v369, %v370
  %v372 = vsel %vm296, %v220, -inf
  %v373 = vmax.f32 %v371, %v372
  %v374 = vsel %vm296, %v236, -inf
  %v375 = vmax.f32 %v373, %v374
  %v376 = vsel %vm296, %v252, -inf
  %v377 = vmax.f32 %v375, %v376
  %v378 = vsel %vm296, %v268, -inf
  %v379 = vmax.f32 %v377, %v378
  %v380 = vsel %vm296, %v284, -inf
  %v381 = vmax.f32 %v379, %v380
  %v382 = vsel %vm296, %v157, -inf
  %v383 = vsel %vm296, %v173, -inf
  %v384 = vmax.f32 %v382, %v383
  %v385 = vsel %vm296, %v189, -inf
  %v386 = vmax.f32 %v384, %v385
  %v387 = vsel %vm296, %v205, -inf
  %v388 = vmax.f32 %v386, %v387
  %v389 = vsel %vm296, %v221, -inf
  %v390 = vmax.f32 %v388, %v389
  %v391 = vsel %vm296, %v237, -inf
  %v392 = vmax.f32 %v390, %v391
  %v393 = vsel %vm296, %v253, -inf
  %v394 = vmax.f32 %v392, %v393
  %v395 = vsel %vm296, %v269, -inf
  %v396 = vmax.f32 %v394, %v395
  %v397 = vsel %vm296, %v285, -inf
  %v398 = vmax.f32 %v396, %v397
  %v399 = vsel %vm296, %v158, -inf
  %v400 = vsel %vm296, %v174, -inf
  %v401 = vmax.f32 %v399, %v400
  %v402 = vsel %vm296, %v190, -inf
  %v403 = vmax.f32 %v401, %v402
  %v404 = vsel %vm296, %v206, -inf
  %v405 = vmax.f32 %v403, %v404
  %v406 = vsel %vm296, %v222, -inf
  %v407 = vmax.f32 %v405, %v406
  %v408 = vsel %vm296, %v238, -inf
  %v409 = vmax.f32 %v407, %v408
  %v410 = vsel %vm296, %v254, -inf
  %v411 = vmax.f32 %v409, %v410
  %v412 = vsel %vm296, %v270, -inf
  %v413 = vmax.f32 %v411, %v412
  %v414 = vsel %vm296, %v286, -inf
  %v415 = vmax.f32 %v413, %v414
  %v416 = vsel %vm296, %v159, -inf
  %v417 = vsel %vm296, %v175, -inf
  %v418 = vmax.f32 %v416, %v417
  %v419 = vsel %vm296, %v191, -inf
  %v420 = vmax.f32 %v418, %v419
  %v421 = vsel %vm296, %v207, -inf
  %v422 = vmax.f32 %v420, %v421
  %v423 = vsel %vm296, %v223, -inf
  %v424 = vmax.f32 %v422, %v423
  %v425 = vsel %vm296, %v239, -inf
  %v426 = vmax.f32 %v424, %v425
  %v427 = vsel %vm296, %v255, -inf
  %v428 = vmax.f32 %v426, %v427
  %v429 = vsel %vm296, %v271, -inf
  %v430 = vmax.f32 %v428, %v429
  %v431 = vsel %vm296, %v287, -inf
  %v432 = vmax.f32 %v430, %v431
  %v433 = vsel %vm296, %v160, -inf
  %v434 = vsel %vm296, %v176, -inf
  %v435 = vmax.f32 %v433, %v434
  %v436 = vsel %vm296, %v192, -inf
  %v437 = vmax.f32 %v435, %v436
  %v438 = vsel %vm296, %v208, -inf
  %v439 = vmax.f32 %v437, %v438
  %v440 = vsel %vm296, %v224, -inf
  %v441 = vmax.f32 %v439, %v440
  %v442 = vsel %vm296, %v240, -inf
  %v443 = vmax.f32 %v441, %v442
  %v444 = vsel %vm296, %v256, -inf
  %v445 = vmax.f32 %v443, %v444
  %v446 = vsel %vm296, %v272, -inf
  %v447 = vmax.f32 %v445, %v446
  %v448 = vsel %vm296, %v288, -inf
  %v449 = vmax.f32 %v447, %v448
  %v450 = vsel %vm296, %v161, -inf
  %v451 = vsel %vm296, %v177, -inf
  %v452 = vmax.f32 %v450, %v451
  %v453 = vsel %vm296, %v193, -inf
  %v454 = vmax.f32 %v452, %v453
  %v455 = vsel %vm296, %v209, -inf
  %v456 = vmax.f32 %v454, %v455
  %v457 = vsel %vm296, %v225, -inf
  %v458 = vmax.f32 %v456, %v457
  %v459 = vsel %vm296, %v241, -inf
  %v460 = vmax.f32 %v458, %v459
  %v461 = vsel %vm296, %v257, -inf
  %v462 = vmax.f32 %v460, %v461
  %v463 = vsel %vm296, %v273, -inf
  %v464 = vmax.f32 %v462, %v463
  %v465 = vsel %vm296, %v289, -inf
  %v466 = vmax.f32 %v464, %v465
  %v467 = vsel %vm296, %v162, -inf
  %v468 = vsel %vm296, %v178, -inf
  %v469 = vmax.f32 %v467, %v468
  %v470 = vsel %vm296, %v194, -inf
  %v471 = vmax.f32 %v469, %v470
  %v472 = vsel %vm296, %v210, -inf
  %v473 = vmax.f32 %v471, %v472
  %v474 = vsel %vm296, %v226, -inf
  %v475 = vmax.f32 %v473, %v474
  %v476 = vsel %vm296, %v242, -inf
  %v477 = vmax.f32 %v475, %v476
  %v478 = vsel %vm296, %v258, -inf
  %v479 = vmax.f32 %v477, %v478
  %v480 = vsel %vm296, %v274, -inf
  %v481 = vmax.f32 %v479, %v480
  %v482 = vsel %vm296, %v290, -inf
  %v483 = vmax.f32 %v481, %v482
  %v484 = vsel %vm296, %v163, -inf
  %v485 = vsel %vm296, %v179, -inf
  %v486 = vmax.f32 %v484, %v485
  %v487 = vsel %vm296, %v195, -inf
  %v488 = vmax.f32 %v486, %v487
  %v489 = vsel %vm296, %v211, -inf
  %v490 = vmax.f32 %v488, %v489
  %v491 = vsel %vm296, %v227, -inf
  %v492 = vmax.f32 %v490, %v491
  %v493 = vsel %vm296, %v243, -inf
  %v494 = vmax.f32 %v492, %v493
  %v495 = vsel %vm296, %v259, -inf
  %v496 = vmax.f32 %v494, %v495
  %v497 = vsel %vm296, %v275, -inf
  %v498 = vmax.f32 %v496, %v497
  %v499 = vsel %vm296, %v291, -inf
  %v500 = vmax.f32 %v498, %v499
  %v501 = vsel %vm296, %v164, -inf
  %v502 = vsel %vm296, %v180, -inf
  %v503 = vmax.f32 %v501, %v502
  %v504 = vsel %vm296, %v196, -inf
  %v505 = vmax.f32 %v503, %v504
  %v506 = vsel %vm296, %v212, -inf
  %v507 = vmax.f32 %v505, %v506
  %v508 = vsel %vm296, %v228, -inf
  %v509 = vmax.f32 %v507, %v508
  %v510 = vsel %vm296, %v244, -inf
  %v511 = vmax.f32 %v509, %v510
  %v512 = vsel %vm296, %v260, -inf
  %v513 = vmax.f32 %v511, %v512
  %v514 = vsel %vm296, %v276, -inf
  %v515 = vmax.f32 %v513, %v514
  %v516 = vsel %vm296, %v292, -inf
  %v517 = vmax.f32 %v515, %v516
  %v518 = vsel %vm296, %v165, -inf
  %v519 = vsel %vm296, %v181, -inf
  %v520 = vmax.f32 %v518, %v519
  %v521 = vsel %vm296, %v197, -inf
  %v522 = vmax.f32 %v520, %v521
  %v523 = vsel %vm296, %v213, -inf
  %v524 = vmax.f32 %v522, %v523
  %v525 = vsel %vm296, %v229, -inf
  %v526 = vmax.f32 %v524, %v525
  %v527 = vsel %vm296, %v245, -inf
  %v528 = vmax.f32 %v526, %v527
  %v529 = vsel %vm296, %v261, -inf
  %v530 = vmax.f32 %v528, %v529
  %v531 = vsel %vm296, %v277, -inf
  %v532 = vmax.f32 %v530, %v531
  %v533 = vsel %vm296, %v293, -inf
  %v534 = vmax.f32 %v532, %v533
  %v535 = vsel %vm296, %v166, -inf
  %v536 = vsel %vm296, %v182, -inf
  %v537 = vmax.f32 %v535, %v536
  %v538 = vsel %vm296, %v198, -inf
  %v539 = vmax.f32 %v537, %v538
  %v540 = vsel %vm296, %v214, -inf
  %v541 = vmax.f32 %v539, %v540
  %v542 = vsel %vm296, %v230, -inf
  %v543 = vmax.f32 %v541, %v542
  %v544 = vsel %vm296, %v246, -inf
  %v545 = vmax.f32 %v543, %v544
  %v546 = vsel %vm296, %v262, -inf
  %v547 = vmax.f32 %v545, %v546
  %v548 = vsel %vm296, %v278, -inf
  %v549 = vmax.f32 %v547, %v548
  %v550 = vsel %vm296, %v294, -inf
  %v551 = vmax.f32 %v549, %v550
  %v552 = vsel %vm296, %v167, -inf
  %v553 = vsel %vm296, %v183, -inf
  %v554 = vmax.f32 %v552, %v553
  %v555 = vsel %vm296, %v199, -inf
  %v556 = vmax.f32 %v554, %v555
  %v557 = vsel %vm296, %v215, -inf
  %v558 = vmax.f32 %v556, %v557
  %v559 = vsel %vm296, %v231, -inf
  %v560 = vmax.f32 %v558, %v559
  %v561 = vsel %vm296, %v247, -inf
  %v562 = vmax.f32 %v560, %v561
  %v563 = vsel %vm296, %v263, -inf
  %v564 = vmax.f32 %v562, %v563
  %v565 = vsel %vm296, %v279, -inf
  %v566 = vmax.f32 %v564, %v565
  %v567 = vsel %vm296, %v295, -inf
  %v568 = vmax.f32 %v566, %v567
  %v569 = vpack.c.bf16 %v313, %v313
  %v570 = vpack.c.bf16 %v330, %v330
  %v571 = vpack.c.bf16 %v347, %v347
  %v572 = vpack.c.bf16 %v364, %v364
  %v573 = vpack.c.bf16 %v381, %v381
  %v574 = vpack.c.bf16 %v398, %v398
  %v575 = vpack.c.bf16 %v415, %v415
  %v576 = vpack.c.bf16 %v432, %v432
  %v577 = vpack.c.bf16 %v449, %v449
  %v578 = vpack.c.bf16 %v466, %v466
  %v579 = vpack.c.bf16 %v483, %v483
  %v580 = vpack.c.bf16 %v500, %v500
  %v581 = vpack.c.bf16 %v517, %v517
  %v582 = vpack.c.bf16 %v534, %v534
  %v583 = vpack.c.bf16 %v551, %v551
  %v584 = vpack.c.bf16 %v568, %v568
  %vm585 = vcmask 125952
  %586 = vst.msk [vmem:[%s1] sm:$0xf] %vm585, %v569
  %587 = vst.msk [vmem:[%s1 + $0x4] sm:$0xf] %vm585, %v570
  %588 = vst.msk [vmem:[%s1 + $0x8] sm:$0xf] %vm585, %v571
  %589 = vst.msk [vmem:[%s1 + $0xc] sm:$0xf] %vm585, %v572
  %590 = vst.msk [vmem:[%s1 + $0x10] sm:$0xf] %vm585, %v573
  %591 = vst.msk [vmem:[%s1 + $0x14] sm:$0xf] %vm585, %v574
  %592 = vst.msk [vmem:[%s1 + $0x18] sm:$0xf] %vm585, %v575
  %593 = vst.msk [vmem:[%s1 + $0x1c] sm:$0xf] %vm585, %v576
  %594 = vst.msk [vmem:[%s1 + $0x20] sm:$0xf] %vm585, %v577
  %595 = vst.msk [vmem:[%s1 + $0x24] sm:$0xf] %vm585, %v578
  %596 = vst.msk [vmem:[%s1 + $0x28] sm:$0xf] %vm585, %v579
  %597 = vst.msk [vmem:[%s1 + $0x2c] sm:$0xf] %vm585, %v580
  %598 = vst.msk [vmem:[%s1 + $0x30] sm:$0xf] %vm585, %v581
  %599 = vst.msk [vmem:[%s1 + $0x34] sm:$0xf] %vm585, %v582
  %600 = vst.msk [vmem:[%s1 + $0x38] sm:$0xf] %vm585, %v583
  %601 = vst.msk [vmem:[%s1 + $0x3c] sm:$0xf] %vm585, %v584
  // Predicated region
  $region6: #{densenet_forward.15} parent=0 // pred_check
    _
  $region7: #{densenet_forward.15} parent=0 // pred_check_branch
    %603 = sbr.rel (0) target = $region9
  $region8: #{densenet_forward.15} parent=0 // pred_region
    _
  $region9: #{densenet_forward.15} parent=0 // pred_fallthru
    _
  // Predicated region
  $region10: #{densenet_forward.15} parent=0 // pred_check
    _
  $region11: #{densenet_forward.15} parent=0 // pred_check_branch
    %605 = sbr.rel (0) target = $region13
  $region12: #{densenet_forward.15} parent=0 // pred_region
    _
  $region13: #{densenet_forward.15} parent=0 // pred_fallthru
    _

// kernel: densenet_forward.16
$region0: #{densenet_forward.16}
  #allocation0 [shape = 'u32[]', space=smem, size = 0x4, offset = 0x4, fixed_abs, tag = 'smem constant byte address 0x4 - core index']
  #allocation1 [shape = 'u32[72,128]{1,0:T(1,128)}', space=vmem, size = 0x9000, scoped, tag = 'internal scratch']
  #allocation2 [shape = 'f32[128,128]{1,0:T(8,128)}', space=vmem, size = 0x10000, scoped, tag = 'scratch operand']
  %s0 = inlined_call_operand.vmem [shape: bf16[128,128], index: 0, kind: input, shape index: {}]
  %s1 = inlined_call_operand.vmem [shape: f32[1,128], index: 1, kind: input, shape index: {}]
  %s2 = inlined_call_operand.vmem [shape: f32[1,128], index: 2, kind: input, shape index: {}]
  %s3 = inlined_call_operand.vmem [shape: bf16[128,128], index: 3, kind: input, shape index: {}]
  %s4 = inlined_call_operand.vmem [shape: f32[1,128], index: 4, kind: input, shape index: {}]
  %s5 = inlined_call_operand.vmem [shape: f32[1,128], index: 5, kind: input, shape index: {}]
  %s6 = inlined_call_operand.vmem [shape: bf16[128,128], index: 6, kind: output, shape index: {}]
  %s7 = sld [smem:[#allocation0]]
  $region42: #{densenet_forward.16} parent=0
    _
  %s9 = ssub.s32 1, %s7
  %s10 = scalar_select 0, %s9, %s7
  // Predicated region
  $region2: #{densenet_forward.16} parent=0 // pred_check
    _
  $region3: #{densenet_forward.16} parent=0 // pred_check_branch
    %12 = sbr.rel (0) target = $region5
  $region4: #{densenet_forward.16} parent=0 // pred_region
    _
  $region5: #{densenet_forward.16} parent=0 // pred_fallthru
    _
  // Predicated region
  $region6: #{densenet_forward.16} parent=0 // pred_check
    _
  $region7: #{densenet_forward.16} parent=0 // pred_check_branch
    %14 = sbr.rel (0) target = $region9
  $region8: #{densenet_forward.16} parent=0 // pred_region
    _
  $region9: #{densenet_forward.16} parent=0 // pred_fallthru
    _
  // Predicated region
  $region10: #{densenet_forward.16} parent=0 // pred_check
    _
  $region11: #{densenet_forward.16} parent=0 // pred_check_branch
    %16 = sbr.rel (0) target = $region13
  $region12: #{densenet_forward.16} parent=0 // pred_region
    _
  $region13: #{densenet_forward.16} parent=0 // pred_fallthru
    _
  // Predicated region
  $region14: #{densenet_forward.16} parent=0 // pred_check
    _
  $region15: #{densenet_forward.16} parent=0 // pred_check_branch
    %18 = sbr.rel (0) target = $region17
  $region16: #{densenet_forward.16} parent=0 // pred_region
    _
  $region17: #{densenet_forward.16} parent=0 // pred_fallthru
    _
  // Predicated region
  $region18: #{densenet_forward.16} parent=0 // pred_check
    _
  $region19: #{densenet_forward.16} parent=0 // pred_check_branch
    %20 = sbr.rel (0) target = $region21
  $region20: #{densenet_forward.16} parent=0 // pred_region
    _
  $region21: #{densenet_forward.16} parent=0 // pred_fallthru
    _
  // Predicated region
  $region22: #{densenet_forward.16} parent=0 // pred_check
    _
  $region23: #{densenet_forward.16} parent=0 // pred_check_branch
    %22 = sbr.rel (0) target = $region25
  $region24: #{densenet_forward.16} parent=0 // pred_region
    _
  $region25: #{densenet_forward.16} parent=0 // pred_fallthru
    _
  %p23 = scmp.eq.s32.totalorder 0, 0
  // Predicated region
  $region26: #{densenet_forward.16} parent=0 // pred_check
    %p24 = pneg %p23
  $region27: #{densenet_forward.16} parent=0 // pred_check_branch
    %26 = sbr.rel (%p24) target = $region29
  $region28: #{densenet_forward.16} parent=0 // pred_region
    %27 = vst [vmem:[#allocation2] sm:$0xff] 0.0
    %28 = vst [vmem:[#allocation2 + $0x8] sm:$0xff] 0.0
    %29 = vst [vmem:[#allocation2 + $0x10] sm:$0xff] 0.0
    %30 = vst [vmem:[#allocation2 + $0x18] sm:$0xff] 0.0
    %31 = vst [vmem:[#allocation2 + $0x20] sm:$0xff] 0.0
    %32 = vst [vmem:[#allocation2 + $0x28] sm:$0xff] 0.0
    %33 = vst [vmem:[#allocation2 + $0x30] sm:$0xff] 0.0
    %34 = vst [vmem:[#allocation2 + $0x38] sm:$0xff] 0.0
    %35 = vst [vmem:[#allocation2 + $0x40] sm:$0xff] 0.0
    %36 = vst [vmem:[#allocation2 + $0x48] sm:$0xff] 0.0
    %37 = vst [vmem:[#allocation2 + $0x50] sm:$0xff] 0.0
    %38 = vst [vmem:[#allocation2 + $0x58] sm:$0xff] 0.0
    %39 = vst [vmem:[#allocation2 + $0x60] sm:$0xff] 0.0
    %40 = vst [vmem:[#allocation2 + $0x68] sm:$0xff] 0.0
    %41 = vst [vmem:[#allocation2 + $0x70] sm:$0xff] 0.0
    %42 = vst [vmem:[#allocation2 + $0x78] sm:$0xff] 0.0
  $region29: #{densenet_forward.16} parent=0 // pred_fallthru
    _
  %v43 = vld [vmem:[%s0] sm:$0xf]
  %v44 = vld [vmem:[%s0 + $0x4] sm:$0xf]
  %v45 = vld [vmem:[%s0 + $0x8] sm:$0xf]
  %v46 = vld [vmem:[%s0 + $0xc] sm:$0xf]
  %v47 = vld [vmem:[%s0 + $0x10] sm:$0xf]
  %v48 = vld [vmem:[%s0 + $0x14] sm:$0xf]
  %v49 = vld [vmem:[%s0 + $0x18] sm:$0xf]
  %v50 = vld [vmem:[%s0 + $0x1c] sm:$0xf]
  %v51 = vld [vmem:[%s0 + $0x20] sm:$0xf]
  %v52 = vld [vmem:[%s0 + $0x24] sm:$0xf]
  %v53 = vld [vmem:[%s0 + $0x28] sm:$0xf]
  %v54 = vld [vmem:[%s0 + $0x2c] sm:$0xf]
  %v55 = vld [vmem:[%s0 + $0x30] sm:$0xf]
  %v56 = vld [vmem:[%s0 + $0x34] sm:$0xf]
  %v57 = vld [vmem:[%s0 + $0x38] sm:$0xf]
  %v58 = vld [vmem:[%s0 + $0x3c] sm:$0xf]
  %v59 = vunpack.c.l.bf16 %v43
  %v60 = vunpack.c.l.bf16 %v44
  %v61 = vunpack.c.l.bf16 %v45
  %v62 = vunpack.c.l.bf16 %v46
  %v63 = vunpack.c.l.bf16 %v47
  %v64 = vunpack.c.l.bf16 %v48
  %v65 = vunpack.c.l.bf16 %v49
  %v66 = vunpack.c.l.bf16 %v50
  %v67 = vunpack.c.l.bf16 %v51
  %v68 = vunpack.c.l.bf16 %v52
  %v69 = vunpack.c.l.bf16 %v53
  %v70 = vunpack.c.l.bf16 %v54
  %v71 = vunpack.c.l.bf16 %v55
  %v72 = vunpack.c.l.bf16 %v56
  %v73 = vunpack.c.l.bf16 %v57
  %v74 = vunpack.c.l.bf16 %v58
  %v75 = vld [vmem:[%s1] sm:$0x1]
  %v77 = vperm.slane %v75, 0
  %v79 = vmul.f32 %v59, %v77
  %v80 = vmul.f32 %v60, %v77
  %v81 = vmul.f32 %v61, %v77
  %v82 = vmul.f32 %v62, %v77
  %v83 = vmul.f32 %v63, %v77
  %v84 = vmul.f32 %v64, %v77
  %v85 = vmul.f32 %v65, %v77
  %v86 = vmul.f32 %v66, %v77
  %v87 = vmul.f32 %v67, %v77
  %v88 = vmul.f32 %v68, %v77
  %v89 = vmul.f32 %v69, %v77
  %v90 = vmul.f32 %v70, %v77
  %v91 = vmul.f32 %v71, %v77
  %v92 = vmul.f32 %v72, %v77
  %v93 = vmul.f32 %v73, %v77
  %v94 = vmul.f32 %v74, %v77
  %v95 = vld [vmem:[%s2] sm:$0x1]
  %v97 = vperm.slane %v95, 0
  %v99 = vadd.f32 %v79, %v97
  %v100 = vadd.f32 %v80, %v97
  %v101 = vadd.f32 %v81, %v97
  %v102 = vadd.f32 %v82, %v97
  %v103 = vadd.f32 %v83, %v97
  %v104 = vadd.f32 %v84, %v97
  %v105 = vadd.f32 %v85, %v97
  %v106 = vadd.f32 %v86, %v97
  %v107 = vadd.f32 %v87, %v97
  %v108 = vadd.f32 %v88, %v97
  %v109 = vadd.f32 %v89, %v97
  %v110 = vadd.f32 %v90, %v97
  %v111 = vadd.f32 %v91, %v97
  %v112 = vadd.f32 %v92, %v97
  %v113 = vadd.f32 %v93, %v97
  %v114 = vadd.f32 %v94, %v97
  %v115 = vmax.f32 %v99, 0.0
  %v116 = vmax.f32 %v100, 0.0
  %v117 = vmax.f32 %v101, 0.0
  %v118 = vmax.f32 %v102, 0.0
  %v119 = vmax.f32 %v103, 0.0
  %v120 = vmax.f32 %v104, 0.0
  %v121 = vmax.f32 %v105, 0.0
  %v122 = vmax.f32 %v106, 0.0
  %v123 = vmax.f32 %v107, 0.0
  %v124 = vmax.f32 %v108, 0.0
  %v125 = vmax.f32 %v109, 0.0
  %v126 = vmax.f32 %v110, 0.0
  %v127 = vmax.f32 %v111, 0.0
  %v128 = vmax.f32 %v112, 0.0
  %v129 = vmax.f32 %v113, 0.0
  %v130 = vmax.f32 %v114, 0.0
  %v131 = vpack.c.bf16 %v116, %v115
  %v132 = vpack.c.bf16 %v118, %v117
  %v133 = vpack.c.bf16 %v120, %v119
  %v134 = vpack.c.bf16 %v122, %v121
  %v135 = vpack.c.bf16 %v124, %v123
  %v136 = vpack.c.bf16 %v126, %v125
  %v137 = vpack.c.bf16 %v128, %v127
  %v138 = vpack.c.bf16 %v130, %v129
  %v139 = vld [vmem:[#allocation2] sm:$0xff]
  %v140 = vld [vmem:[#allocation2 + $0x8] sm:$0xff]
  %v141 = vld [vmem:[#allocation2 + $0x10] sm:$0xff]
  %v142 = vld [vmem:[#allocation2 + $0x18] sm:$0xff]
  %v143 = vld [vmem:[#allocation2 + $0x20] sm:$0xff]
  %v144 = vld [vmem:[#allocation2 + $0x28] sm:$0xff]
  %v145 = vld [vmem:[#allocation2 + $0x30] sm:$0xff]
  %v146 = vld [vmem:[#allocation2 + $0x38] sm:$0xff]
  %v147 = vld [vmem:[#allocation2 + $0x40] sm:$0xff]
  %v148 = vld [vmem:[#allocation2 + $0x48] sm:$0xff]
  %v149 = vld [vmem:[#allocation2 + $0x50] sm:$0xff]
  %v150 = vld [vmem:[#allocation2 + $0x58] sm:$0xff]
  %v151 = vld [vmem:[#allocation2 + $0x60] sm:$0xff]
  %v152 = vld [vmem:[#allocation2 + $0x68] sm:$0xff]
  %v153 = vld [vmem:[#allocation2 + $0x70] sm:$0xff]
  %v154 = vld [vmem:[#allocation2 + $0x78] sm:$0xff]
  %v155 = vld [vmem:[%s3] sm:$0xf]
  %v156 = vld [vmem:[%s3 + $0x4] sm:$0xf]
  %v157 = vld [vmem:[%s3 + $0x8] sm:$0xf]
  %v158 = vld [vmem:[%s3 + $0xc] sm:$0xf]
  %v159 = vld [vmem:[%s3 + $0x10] sm:$0xf]
  %v160 = vld [vmem:[%s3 + $0x14] sm:$0xf]
  %v161 = vld [vmem:[%s3 + $0x18] sm:$0xf]
  %v162 = vld [vmem:[%s3 + $0x1c] sm:$0xf]
  %v163 = vld [vmem:[%s3 + $0x20] sm:$0xf]
  %v164 = vld [vmem:[%s3 + $0x24] sm:$0xf]
  %v165 = vld [vmem:[%s3 + $0x28] sm:$0xf]
  %v166 = vld [vmem:[%s3 + $0x2c] sm:$0xf]
  %v167 = vld [vmem:[%s3 + $0x30] sm:$0xf]
  %v168 = vld [vmem:[%s3 + $0x34] sm:$0xf]
  %v169 = vld [vmem:[%s3 + $0x38] sm:$0xf]
  %v170 = vld [vmem:[%s3 + $0x3c] sm:$0xf]
  %v187 = vunpack.c.l.b16 %v155
  %v188 = vunpack.c.l.b16 %v156
  %v189 = vunpack.c.l.b16 %v157
  %v190 = vunpack.c.l.b16 %v158
  %v191 = vunpack.c.l.b16 %v159
  %v192 = vunpack.c.l.b16 %v160
  %v193 = vunpack.c.l.b16 %v161
  %v194 = vunpack.c.l.b16 %v162
  %v195 = vunpack.c.l.b16 %v163
  %v196 = vunpack.c.l.b16 %v164
  %v197 = vunpack.c.l.b16 %v165
  %v198 = vunpack.c.l.b16 %v166
  %v199 = vunpack.c.l.b16 %v167
  %v200 = vunpack.c.l.b16 %v168
  %v201 = vunpack.c.l.b16 %v169
  %v202 = vunpack.c.l.b16 %v170
  %v203 = vpack.c.b16 %v188, %v187
  %v204 = vpack.c.b16 %v190, %v189
  %v205 = vpack.c.b16 %v192, %v191
  %v206 = vpack.c.b16 %v194, %v193
  %v207 = vpack.c.b16 %v196, %v195
  %v208 = vpack.c.b16 %v198, %v197
  %v209 = vpack.c.b16 %v200, %v199
  %v210 = vpack.c.b16 %v202, %v201
  %219 = vmatpush.bf16.msra.mxu0 %v210
  %220 = vmatpush.bf16.msra.mxu0 %v209
  %221 = vmatpush.bf16.msra.mxu0 %v208
  %222 = vmatpush.bf16.msra.mxu0 %v207
  %223 = vmatpush.bf16.msra.mxu0 %v206
  %224 = vmatpush.bf16.msra.mxu0 %v205
  %225 = vmatpush.bf16.msra.mxu0 %v204
  %226 = vmatpush.bf16.msra.mxu0 %v203
  %227 = vmatmul.bf16.gmra.mxu0 %v131
  %v228 = vpop.f32.mrf.mxu0
  %v229 = vadd.f32 0.0, %v228
  %v230 = vpop.f32.mrf.mxu0
  %v231 = vadd.f32 0.0, %v230
  %232 = vmatmul.bf16.gmra.mxu0 %v132
  %v233 = vpop.f32.mrf.mxu0
  %v234 = vadd.f32 0.0, %v233
  %v235 = vpop.f32.mrf.mxu0
  %v236 = vadd.f32 0.0, %v235
  %237 = vmatmul.bf16.gmra.mxu0 %v133
  %v238 = vpop.f32.mrf.mxu0
  %v239 = vadd.f32 0.0, %v238
  %v240 = vpop.f32.mrf.mxu0
  %v241 = vadd.f32 0.0, %v240
  %242 = vmatmul.bf16.gmra.mxu0 %v134
  %v243 = vpop.f32.mrf.mxu0
  %v244 = vadd.f32 0.0, %v243
  %v245 = vpop.f32.mrf.mxu0
  %v246 = vadd.f32 0.0, %v245
  %247 = vmatmul.bf16.gmra.mxu0 %v135
  %v248 = vpop.f32.mrf.mxu0
  %v249 = vadd.f32 0.0, %v248
  %v250 = vpop.f32.mrf.mxu0
  %v251 = vadd.f32 0.0, %v250
  %252 = vmatmul.bf16.gmra.mxu0 %v136
  %v253 = vpop.f32.mrf.mxu0
  %v254 = vadd.f32 0.0, %v253
  %v255 = vpop.f32.mrf.mxu0
  %v256 = vadd.f32 0.0, %v255
  %257 = vmatmul.bf16.gmra.mxu0 %v137
  %v258 = vpop.f32.mrf.mxu0
  %v259 = vadd.f32 0.0, %v258
  %v260 = vpop.f32.mrf.mxu0
  %v261 = vadd.f32 0.0, %v260
  %262 = vmatmul.bf16.gmra.mxu0 %v138
  %v263 = vpop.f32.mrf.mxu0
  %v264 = vadd.f32 0.0, %v263
  %v265 = vpop.f32.mrf.mxu0
  %v266 = vadd.f32 0.0, %v265
  %267 = vdwg.mxu0
  %v268 = vadd.f32 %v139, %v229
  %v269 = vadd.f32 %v140, %v231
  %v270 = vadd.f32 %v141, %v234
  %v271 = vadd.f32 %v142, %v236
  %v272 = vadd.f32 %v143, %v239
  %v273 = vadd.f32 %v144, %v241
  %v274 = vadd.f32 %v145, %v244
  %v275 = vadd.f32 %v146, %v246
  %v276 = vadd.f32 %v147, %v249
  %v277 = vadd.f32 %v148, %v251
  %v278 = vadd.f32 %v149, %v254
  %v279 = vadd.f32 %v150, %v256
  %v280 = vadd.f32 %v151, %v259
  %v281 = vadd.f32 %v152, %v261
  %v282 = vadd.f32 %v153, %v264
  %v283 = vadd.f32 %v154, %v266
  %284 = vst [vmem:[#allocation2] sm:$0xff] %v268
  %285 = vst [vmem:[#allocation2 + $0x8] sm:$0xff] %v269
  %286 = vst [vmem:[#allocation2 + $0x10] sm:$0xff] %v270
  %287 = vst [vmem:[#allocation2 + $0x18] sm:$0xff] %v271
  %288 = vst [vmem:[#allocation2 + $0x20] sm:$0xff] %v272
  %289 = vst [vmem:[#allocation2 + $0x28] sm:$0xff] %v273
  %290 = vst [vmem:[#allocation2 + $0x30] sm:$0xff] %v274
  %291 = vst [vmem:[#allocation2 + $0x38] sm:$0xff] %v275
  %292 = vst [vmem:[#allocation2 + $0x40] sm:$0xff] %v276
  %293 = vst [vmem:[#allocation2 + $0x48] sm:$0xff] %v277
  %294 = vst [vmem:[#allocation2 + $0x50] sm:$0xff] %v278
  %295 = vst [vmem:[#allocation2 + $0x58] sm:$0xff] %v279
  %296 = vst [vmem:[#allocation2 + $0x60] sm:$0xff] %v280
  %297 = vst [vmem:[#allocation2 + $0x68] sm:$0xff] %v281
  %298 = vst [vmem:[#allocation2 + $0x70] sm:$0xff] %v282
  %299 = vst [vmem:[#allocation2 + $0x78] sm:$0xff] %v283
  // Predicated region
  $region30: #{densenet_forward.16} parent=0 // pred_check
    %p300 = pneg %p23
  $region31: #{densenet_forward.16} parent=0 // pred_check_branch
    %302 = sbr.rel (%p300) target = $region33
  $region32: #{densenet_forward.16} parent=0 // pred_region
    %v303 = vld [vmem:[#allocation2] sm:$0xff]
    %v304 = vld [vmem:[#allocation2 + $0x8] sm:$0xff]
    %v305 = vld [vmem:[#allocation2 + $0x10] sm:$0xff]
    %v306 = vld [vmem:[#allocation2 + $0x18] sm:$0xff]
    %v307 = vld [vmem:[#allocation2 + $0x20] sm:$0xff]
    %v308 = vld [vmem:[#allocation2 + $0x28] sm:$0xff]
    %v309 = vld [vmem:[#allocation2 + $0x30] sm:$0xff]
    %v310 = vld [vmem:[#allocation2 + $0x38] sm:$0xff]
    %v311 = vld [vmem:[#allocation2 + $0x40] sm:$0xff]
    %v312 = vld [vmem:[#allocation2 + $0x48] sm:$0xff]
    %v313 = vld [vmem:[#allocation2 + $0x50] sm:$0xff]
    %v314 = vld [vmem:[#allocation2 + $0x58] sm:$0xff]
    %v315 = vld [vmem:[#allocation2 + $0x60] sm:$0xff]
    %v316 = vld [vmem:[#allocation2 + $0x68] sm:$0xff]
    %v317 = vld [vmem:[#allocation2 + $0x70] sm:$0xff]
    %v318 = vld [vmem:[#allocation2 + $0x78] sm:$0xff]
    %v319 = vld [vmem:[%s4] sm:$0x1]
    %v321 = vperm.slane %v319, 0
    %v323 = vmul.f32 %v303, %v321
    %v324 = vmul.f32 %v304, %v321
    %v325 = vmul.f32 %v305, %v321
    %v326 = vmul.f32 %v306, %v321
    %v327 = vmul.f32 %v307, %v321
    %v328 = vmul.f32 %v308, %v321
    %v329 = vmul.f32 %v309, %v321
    %v330 = vmul.f32 %v310, %v321
    %v331 = vmul.f32 %v311, %v321
    %v332 = vmul.f32 %v312, %v321
    %v333 = vmul.f32 %v313, %v321
    %v334 = vmul.f32 %v314, %v321
    %v335 = vmul.f32 %v315, %v321
    %v336 = vmul.f32 %v316, %v321
    %v337 = vmul.f32 %v317, %v321
    %v338 = vmul.f32 %v318, %v321
    %v339 = vld [vmem:[%s5] sm:$0x1]
    %v341 = vperm.slane %v339, 0
    %v343 = vadd.f32 %v323, %v341
    %v344 = vadd.f32 %v324, %v341
    %v345 = vadd.f32 %v325, %v341
    %v346 = vadd.f32 %v326, %v341
    %v347 = vadd.f32 %v327, %v341
    %v348 = vadd.f32 %v328, %v341
    %v349 = vadd.f32 %v329, %v341
    %v350 = vadd.f32 %v330, %v341
    %v351 = vadd.f32 %v331, %v341
    %v352 = vadd.f32 %v332, %v341
    %v353 = vadd.f32 %v333, %v341
    %v354 = vadd.f32 %v334, %v341
    %v355 = vadd.f32 %v335, %v341
    %v356 = vadd.f32 %v336, %v341
    %v357 = vadd.f32 %v337, %v341
    %v358 = vadd.f32 %v338, %v341
    %v359 = vmax.f32 %v343, 0.0
    %v360 = vmax.f32 %v344, 0.0
    %v361 = vmax.f32 %v345, 0.0
    %v362 = vmax.f32 %v346, 0.0
    %v363 = vmax.f32 %v347, 0.0
    %v364 = vmax.f32 %v348, 0.0
    %v365 = vmax.f32 %v349, 0.0
    %v366 = vmax.f32 %v350, 0.0
    %v367 = vmax.f32 %v351, 0.0
    %v368 = vmax.f32 %v352, 0.0
    %v369 = vmax.f32 %v353, 0.0
    %v370 = vmax.f32 %v354, 0.0
    %v371 = vmax.f32 %v355, 0.0
    %v372 = vmax.f32 %v356, 0.0
    %v373 = vmax.f32 %v357, 0.0
    %v374 = vmax.f32 %v358, 0.0
    %v375 = vpack.c.bf16 %v359, %v359
    %v376 = vpack.c.bf16 %v360, %v360
    %v377 = vpack.c.bf16 %v361, %v361
    %v378 = vpack.c.bf16 %v362, %v362
    %v379 = vpack.c.bf16 %v363, %v363
    %v380 = vpack.c.bf16 %v364, %v364
    %v381 = vpack.c.bf16 %v365, %v365
    %v382 = vpack.c.bf16 %v366, %v366
    %v383 = vpack.c.bf16 %v367, %v367
    %v384 = vpack.c.bf16 %v368, %v368
    %v385 = vpack.c.bf16 %v369, %v369
    %v386 = vpack.c.bf16 %v370, %v370
    %v387 = vpack.c.bf16 %v371, %v371
    %v388 = vpack.c.bf16 %v372, %v372
    %v389 = vpack.c.bf16 %v373, %v373
    %v390 = vpack.c.bf16 %v374, %v374
    %391 = vst [vmem:[%s6] sm:$0xf] %v375
    %392 = vst [vmem:[%s6 + $0x4] sm:$0xf] %v376
    %393 = vst [vmem:[%s6 + $0x8] sm:$0xf] %v377
    %394 = vst [vmem:[%s6 + $0xc] sm:$0xf] %v378
    %395 = vst [vmem:[%s6 + $0x10] sm:$0xf] %v379
    %396 = vst [vmem:[%s6 + $0x14] sm:$0xf] %v380
    %397 = vst [vmem:[%s6 + $0x18] sm:$0xf] %v381
    %398 = vst [vmem:[%s6 + $0x1c] sm:$0xf] %v382
    %399 = vst [vmem:[%s6 + $0x20] sm:$0xf] %v383
    %400 = vst [vmem:[%s6 + $0x24] sm:$0xf] %v384
    %401 = vst [vmem:[%s6 + $0x28] sm:$0xf] %v385
    %402 = vst [vmem:[%s6 + $0x2c] sm:$0xf] %v386
    %403 = vst [vmem:[%s6 + $0x30] sm:$0xf] %v387
    %404 = vst [vmem:[%s6 + $0x34] sm:$0xf] %v388
    %405 = vst [vmem:[%s6 + $0x38] sm:$0xf] %v389
    %406 = vst [vmem:[%s6 + $0x3c] sm:$0xf] %v390
  $region33: #{densenet_forward.16} parent=0 // pred_fallthru
    _
  // Predicated region
  $region34: #{densenet_forward.16} parent=0 // pred_check
    _
  $region35: #{densenet_forward.16} parent=0 // pred_check_branch
    %408 = sbr.rel (0) target = $region37
  $region36: #{densenet_forward.16} parent=0 // pred_region
    _
  $region37: #{densenet_forward.16} parent=0 // pred_fallthru
    _
  // Predicated region
  $region38: #{densenet_forward.16} parent=0 // pred_check
    _
  $region39: #{densenet_forward.16} parent=0 // pred_check_branch
    %410 = sbr.rel (0) target = $region41
  $region40: #{densenet_forward.16} parent=0 // pred_region
    _
  $region41: #{densenet_forward.16} parent=0 // pred_fallthru
    _

// kernel: densenet_forward.17
$region0: #{densenet_forward.17}
  #allocation0 [shape = 'u32[]', space=smem, size = 0x4, offset = 0x4, fixed_abs, tag = 'smem constant byte address 0x4 - core index']
  #allocation1 [shape = 'u32[72,128]{1,0:T(1,128)}', space=vmem, size = 0x9000, scoped, tag = 'internal scratch']
  #allocation2 [shape = 'f32[128,128]{1,0:T(8,128)}', space=vmem, size = 0x10000, scoped, tag = 'scratch operand']
  %s0 = inlined_call_operand.vmem [shape: bf16[128,384], index: 0, kind: input, shape index: {}]
  %s1 = inlined_call_operand.vmem [shape: bf16[384,128], index: 1, kind: input, shape index: {}]
  %s2 = inlined_call_operand.vmem [shape: bf16[128,128], index: 2, kind: output, shape index: {}]
  %s3 = sld [smem:[#allocation0]]
  $region26: #{densenet_forward.17} parent=0
    _
  %s5 = ssub.s32 1, %s3
  %s6 = scalar_select 0, %s5, %s3
  // Predicated region
  $region2: #{densenet_forward.17} parent=0 // pred_check
    _
  $region3: #{densenet_forward.17} parent=0 // pred_check_branch
    %8 = sbr.rel (0) target = $region5
  $region4: #{densenet_forward.17} parent=0 // pred_region
    _
  $region5: #{densenet_forward.17} parent=0 // pred_fallthru
    _
  // Predicated region
  $region6: #{densenet_forward.17} parent=0 // pred_check
    _
  $region7: #{densenet_forward.17} parent=0 // pred_check_branch
    %10 = sbr.rel (0) target = $region9
  $region8: #{densenet_forward.17} parent=0 // pred_region
    _
  $region9: #{densenet_forward.17} parent=0 // pred_fallthru
    _
  %p11 = scmp.eq.s32.totalorder 0, 0
  // Predicated region
  $region10: #{densenet_forward.17} parent=0 // pred_check
    %p12 = pneg %p11
  $region11: #{densenet_forward.17} parent=0 // pred_check_branch
    %14 = sbr.rel (%p12) target = $region13
  $region12: #{densenet_forward.17} parent=0 // pred_region
    %15 = vst [vmem:[#allocation2] sm:$0xff] 0.0
    %16 = vst [vmem:[#allocation2 + $0x8] sm:$0xff] 0.0
    %17 = vst [vmem:[#allocation2 + $0x10] sm:$0xff] 0.0
    %18 = vst [vmem:[#allocation2 + $0x18] sm:$0xff] 0.0
    %19 = vst [vmem:[#allocation2 + $0x20] sm:$0xff] 0.0
    %20 = vst [vmem:[#allocation2 + $0x28] sm:$0xff] 0.0
    %21 = vst [vmem:[#allocation2 + $0x30] sm:$0xff] 0.0
    %22 = vst [vmem:[#allocation2 + $0x38] sm:$0xff] 0.0
    %23 = vst [vmem:[#allocation2 + $0x40] sm:$0xff] 0.0
    %24 = vst [vmem:[#allocation2 + $0x48] sm:$0xff] 0.0
    %25 = vst [vmem:[#allocation2 + $0x50] sm:$0xff] 0.0
    %26 = vst [vmem:[#allocation2 + $0x58] sm:$0xff] 0.0
    %27 = vst [vmem:[#allocation2 + $0x60] sm:$0xff] 0.0
    %28 = vst [vmem:[#allocation2 + $0x68] sm:$0xff] 0.0
    %29 = vst [vmem:[#allocation2 + $0x70] sm:$0xff] 0.0
    %30 = vst [vmem:[#allocation2 + $0x78] sm:$0xff] 0.0
  $region13: #{densenet_forward.17} parent=0 // pred_fallthru
    _
  %v31 = vld [vmem:[%s0] sm:$0xff]
  %v32 = vld [vmem:[%s0 + $0x8] sm:$0xf]
  %v33 = vld [vmem:[%s0 + $0xc] sm:$0xff]
  %v34 = vld [vmem:[%s0 + $0x14] sm:$0xf]
  %v35 = vld [vmem:[%s0 + $0x18] sm:$0xff]
  %v36 = vld [vmem:[%s0 + $0x20] sm:$0xf]
  %v37 = vld [vmem:[%s0 + $0x24] sm:$0xff]
  %v38 = vld [vmem:[%s0 + $0x2c] sm:$0xf]
  %v39 = vld [vmem:[%s0 + $0x30] sm:$0xff]
  %v40 = vld [vmem:[%s0 + $0x38] sm:$0xf]
  %v41 = vld [vmem:[%s0 + $0x3c] sm:$0xff]
  %v42 = vld [vmem:[%s0 + $0x44] sm:$0xf]
  %v43 = vld [vmem:[%s0 + $0x48] sm:$0xff]
  %v44 = vld [vmem:[%s0 + $0x50] sm:$0xf]
  %v45 = vld [vmem:[%s0 + $0x54] sm:$0xff]
  %v46 = vld [vmem:[%s0 + $0x5c] sm:$0xf]
  %v47 = vld [vmem:[%s0 + $0x60] sm:$0xff]
  %v48 = vld [vmem:[%s0 + $0x68] sm:$0xf]
  %v49 = vld [vmem:[%s0 + $0x6c] sm:$0xff]
  %v50 = vld [vmem:[%s0 + $0x74] sm:$0xf]
  %v51 = vld [vmem:[%s0 + $0x78] sm:$0xff]
  %v52 = vld [vmem:[%s0 + $0x80] sm:$0xf]
  %v53 = vld [vmem:[%s0 + $0x84] sm:$0xff]
  %v54 = vld [vmem:[%s0 + $0x8c] sm:$0xf]
  %v55 = vld [vmem:[%s0 + $0x90] sm:$0xff]
  %v56 = vld [vmem:[%s0 + $0x98] sm:$0xf]
  %v57 = vld [vmem:[%s0 + $0x9c] sm:$0xff]
  %v58 = vld [vmem:[%s0 + $0xa4] sm:$0xf]
  %v59 = vld [vmem:[%s0 + $0xa8] sm:$0xff]
  %v60 = vld [vmem:[%s0 + $0xb0] sm:$0xf]
  %v61 = vld [vmem:[%s0 + $0xb4] sm:$0xff]
  %v62 = vld [vmem:[%s0 + $0xbc] sm:$0xf]
  %v63 = vld [vmem:[#allocation2] sm:$0xff]
  %v64 = vld [vmem:[#allocation2 + $0x8] sm:$0xff]
  %v65 = vld [vmem:[#allocation2 + $0x10] sm:$0xff]
  %v66 = vld [vmem:[#allocation2 + $0x18] sm:$0xff]
  %v67 = vld [vmem:[#allocation2 + $0x20] sm:$0xff]
  %v68 = vld [vmem:[#allocation2 + $0x28] sm:$0xff]
  %v69 = vld [vmem:[#allocation2 + $0x30] sm:$0xff]
  %v70 = vld [vmem:[#allocation2 + $0x38] sm:$0xff]
  %v71 = vld [vmem:[#allocation2 + $0x40] sm:$0xff]
  %v72 = vld [vmem:[#allocation2 + $0x48] sm:$0xff]
  %v73 = vld [vmem:[#allocation2 + $0x50] sm:$0xff]
  %v74 = vld [vmem:[#allocation2 + $0x58] sm:$0xff]
  %v75 = vld [vmem:[#allocation2 + $0x60] sm:$0xff]
  %v76 = vld [vmem:[#allocation2 + $0x68] sm:$0xff]
  %v77 = vld [vmem:[#allocation2 + $0x70] sm:$0xff]
  %v78 = vld [vmem:[#allocation2 + $0x78] sm:$0xff]
  %v79 = vld [vmem:[%s1] sm:$0xf]
  %v80 = vld [vmem:[%s1 + $0x4] sm:$0xf]
  %v81 = vld [vmem:[%s1 + $0x8] sm:$0xf]
  %v82 = vld [vmem:[%s1 + $0xc] sm:$0xf]
  %v83 = vld [vmem:[%s1 + $0x10] sm:$0xf]
  %v84 = vld [vmem:[%s1 + $0x14] sm:$0xf]
  %v85 = vld [vmem:[%s1 + $0x18] sm:$0xf]
  %v86 = vld [vmem:[%s1 + $0x1c] sm:$0xf]
  %v87 = vld [vmem:[%s1 + $0x20] sm:$0xf]
  %v88 = vld [vmem:[%s1 + $0x24] sm:$0xf]
  %v89 = vld [vmem:[%s1 + $0x28] sm:$0xf]
  %v90 = vld [vmem:[%s1 + $0x2c] sm:$0xf]
  %v91 = vld [vmem:[%s1 + $0x30] sm:$0xf]
  %v92 = vld [vmem:[%s1 + $0x34] sm:$0xf]
  %v93 = vld [vmem:[%s1 + $0x38] sm:$0xf]
  %v94 = vld [vmem:[%s1 + $0x3c] sm:$0xf]
  %v95 = vld [vmem:[%s1 + $0x40] sm:$0xf]
  %v96 = vld [vmem:[%s1 + $0x44] sm:$0xf]
  %v97 = vld [vmem:[%s1 + $0x48] sm:$0xf]
  %v98 = vld [vmem:[%s1 + $0x4c] sm:$0xf]
  %v99 = vld [vmem:[%s1 + $0x50] sm:$0xf]
  %v100 = vld [vmem:[%s1 + $0x54] sm:$0xf]
  %v101 = vld [vmem:[%s1 + $0x58] sm:$0xf]
  %v102 = vld [vmem:[%s1 + $0x5c] sm:$0xf]
  %v103 = vld [vmem:[%s1 + $0x60] sm:$0xf]
  %v104 = vld [vmem:[%s1 + $0x64] sm:$0xf]
  %v105 = vld [vmem:[%s1 + $0x68] sm:$0xf]
  %v106 = vld [vmem:[%s1 + $0x6c] sm:$0xf]
  %v107 = vld [vmem:[%s1 + $0x70] sm:$0xf]
  %v108 = vld [vmem:[%s1 + $0x74] sm:$0xf]
  %v109 = vld [vmem:[%s1 + $0x78] sm:$0xf]
  %v110 = vld [vmem:[%s1 + $0x7c] sm:$0xf]
  %v111 = vld [vmem:[%s1 + $0x80] sm:$0xf]
  %v112 = vld [vmem:[%s1 + $0x84] sm:$0xf]
  %v113 = vld [vmem:[%s1 + $0x88] sm:$0xf]
  %v114 = vld [vmem:[%s1 + $0x8c] sm:$0xf]
  %v115 = vld [vmem:[%s1 + $0x90] sm:$0xf]
  %v116 = vld [vmem:[%s1 + $0x94] sm:$0xf]
  %v117 = vld [vmem:[%s1 + $0x98] sm:$0xf]
  %v118 = vld [vmem:[%s1 + $0x9c] sm:$0xf]
  %v119 = vld [vmem:[%s1 + $0xa0] sm:$0xf]
  %v120 = vld [vmem:[%s1 + $0xa4] sm:$0xf]
  %v121 = vld [vmem:[%s1 + $0xa8] sm:$0xf]
  %v122 = vld [vmem:[%s1 + $0xac] sm:$0xf]
  %v123 = vld [vmem:[%s1 + $0xb0] sm:$0xf]
  %v124 = vld [vmem:[%s1 + $0xb4] sm:$0xf]
  %v125 = vld [vmem:[%s1 + $0xb8] sm:$0xf]
  %v126 = vld [vmem:[%s1 + $0xbc] sm:$0xf]
  %v159 = vunpack.c.l.b16 %v31
  %v160 = vunpack.c.h.b16 %v31
  %v161 = vunpack.c.l.b16 %v32
  %v162 = vunpack.c.l.b16 %v33
  %v163 = vunpack.c.h.b16 %v33
  %v164 = vunpack.c.l.b16 %v34
  %v165 = vunpack.c.l.b16 %v35
  %v166 = vunpack.c.h.b16 %v35
  %v167 = vunpack.c.l.b16 %v36
  %v168 = vunpack.c.l.b16 %v37
  %v169 = vunpack.c.h.b16 %v37
  %v170 = vunpack.c.l.b16 %v38
  %v171 = vunpack.c.l.b16 %v39
  %v172 = vunpack.c.h.b16 %v39
  %v173 = vunpack.c.l.b16 %v40
  %v174 = vunpack.c.l.b16 %v41
  %v175 = vunpack.c.h.b16 %v41
  %v176 = vunpack.c.l.b16 %v42
  %v177 = vunpack.c.l.b16 %v43
  %v178 = vunpack.c.h.b16 %v43
  %v179 = vunpack.c.l.b16 %v44
  %v180 = vunpack.c.l.b16 %v45
  %v181 = vunpack.c.h.b16 %v45
  %v182 = vunpack.c.l.b16 %v46
  %v183 = vunpack.c.l.b16 %v47
  %v184 = vunpack.c.h.b16 %v47
  %v185 = vunpack.c.l.b16 %v48
  %v186 = vunpack.c.l.b16 %v49
  %v187 = vunpack.c.h.b16 %v49
  %v188 = vunpack.c.l.b16 %v50
  %v189 = vunpack.c.l.b16 %v51
  %v190 = vunpack.c.h.b16 %v51
  %v191 = vunpack.c.l.b16 %v52
  %v192 = vunpack.c.l.b16 %v53
  %v193 = vunpack.c.h.b16 %v53
  %v194 = vunpack.c.l.b16 %v54
  %v195 = vunpack.c.l.b16 %v55
  %v196 = vunpack.c.h.b16 %v55
  %v197 = vunpack.c.l.b16 %v56
  %v198 = vunpack.c.l.b16 %v57
  %v199 = vunpack.c.h.b16 %v57
  %v200 = vunpack.c.l.b16 %v58
  %v201 = vunpack.c.l.b16 %v59
  %v202 = vunpack.c.h.b16 %v59
  %v203 = vunpack.c.l.b16 %v60
  %v204 = vunpack.c.l.b16 %v61
  %v205 = vunpack.c.h.b16 %v61
  %v206 = vunpack.c.l.b16 %v62
  %v207 = vpack.c.b16 %v162, %v159
  %v208 = vpack.c.b16 %v163, %v160
  %v209 = vpack.c.b16 %v164, %v161
  %v210 = vpack.c.b16 %v168, %v165
  %v211 = vpack.c.b16 %v169, %v166
  %v212 = vpack.c.b16 %v170, %v167
  %v213 = vpack.c.b16 %v174, %v171
  %v214 = vpack.c.b16 %v175, %v172
  %v215 = vpack.c.b16 %v176, %v173
  %v216 = vpack.c.b16 %v180, %v177
  %v217 = vpack.c.b16 %v181, %v178
  %v218 = vpack.c.b16 %v182, %v179
  %v219 = vpack.c.b16 %v186, %v183
  %v220 = vpack.c.b16 %v187, %v184
  %v221 = vpack.c.b16 %v188, %v185
  %v222 = vpack.c.b16 %v192, %v189
  %v223 = vpack.c.b16 %v193, %v190
  %v224 = vpack.c.b16 %v194, %v191
  %v225 = vpack.c.b16 %v198, %v195
  %v226 = vpack.c.b16 %v199, %v196
  %v227 = vpack.c.b16 %v200, %v197
  %v228 = vpack.c.b16 %v204, %v201
  %v229 = vpack.c.b16 %v205, %v202
  %v230 = vpack.c.b16 %v206, %v203
  %v303 = vunpack.c.l.b16 %v79
  %v304 = vunpack.c.l.b16 %v80
  %v305 = vunpack.c.l.b16 %v81
  %v306 = vunpack.c.l.b16 %v82
  %v307 = vunpack.c.l.b16 %v83
  %v308 = vunpack.c.l.b16 %v84
  %v309 = vunpack.c.l.b16 %v85
  %v310 = vunpack.c.l.b16 %v86
  %v311 = vunpack.c.l.b16 %v87
  %v312 = vunpack.c.l.b16 %v88
  %v313 = vunpack.c.l.b16 %v89
  %v314 = vunpack.c.l.b16 %v90
  %v315 = vunpack.c.l.b16 %v91
  %v316 = vunpack.c.l.b16 %v92
  %v317 = vunpack.c.l.b16 %v93
  %v318 = vunpack.c.l.b16 %v94
  %v319 = vunpack.c.l.b16 %v95
  %v320 = vunpack.c.l.b16 %v96
  %v321 = vunpack.c.l.b16 %v97
  %v322 = vunpack.c.l.b16 %v98
  %v323 = vunpack.c.l.b16 %v99
  %v324 = vunpack.c.l.b16 %v100
  %v325 = vunpack.c.l.b16 %v101
  %v326 = vunpack.c.l.b16 %v102
  %v327 = vunpack.c.l.b16 %v103
  %v328 = vunpack.c.l.b16 %v104
  %v329 = vunpack.c.l.b16 %v105
  %v330 = vunpack.c.l.b16 %v106
  %v331 = vunpack.c.l.b16 %v107
  %v332 = vunpack.c.l.b16 %v108
  %v333 = vunpack.c.l.b16 %v109
  %v334 = vunpack.c.l.b16 %v110
  %v335 = vunpack.c.l.b16 %v111
  %v336 = vunpack.c.l.b16 %v112
  %v337 = vunpack.c.l.b16 %v113
  %v338 = vunpack.c.l.b16 %v114
  %v339 = vunpack.c.l.b16 %v115
  %v340 = vunpack.c.l.b16 %v116
  %v341 = vunpack.c.l.b16 %v117
  %v342 = vunpack.c.l.b16 %v118
  %v343 = vunpack.c.l.b16 %v119
  %v344 = vunpack.c.l.b16 %v120
  %v345 = vunpack.c.l.b16 %v121
  %v346 = vunpack.c.l.b16 %v122
  %v347 = vunpack.c.l.b16 %v123
  %v348 = vunpack.c.l.b16 %v124
  %v349 = vunpack.c.l.b16 %v125
  %v350 = vunpack.c.l.b16 %v126
  %v351 = vpack.c.b16 %v304, %v303
  %v352 = vpack.c.b16 %v306, %v305
  %v353 = vpack.c.b16 %v308, %v307
  %v354 = vpack.c.b16 %v310, %v309
  %v355 = vpack.c.b16 %v312, %v311
  %v356 = vpack.c.b16 %v314, %v313
  %v357 = vpack.c.b16 %v316, %v315
  %v358 = vpack.c.b16 %v318, %v317
  %v359 = vpack.c.b16 %v320, %v319
  %v360 = vpack.c.b16 %v322, %v321
  %v361 = vpack.c.b16 %v324, %v323
  %v362 = vpack.c.b16 %v326, %v325
  %v363 = vpack.c.b16 %v328, %v327
  %v364 = vpack.c.b16 %v330, %v329
  %v365 = vpack.c.b16 %v332, %v331
  %v366 = vpack.c.b16 %v334, %v333
  %v367 = vpack.c.b16 %v336, %v335
  %v368 = vpack.c.b16 %v338, %v337
  %v369 = vpack.c.b16 %v340, %v339
  %v370 = vpack.c.b16 %v342, %v341
  %v371 = vpack.c.b16 %v344, %v343
  %v372 = vpack.c.b16 %v346, %v345
  %v373 = vpack.c.b16 %v348, %v347
  %v374 = vpack.c.b16 %v350, %v349
  %399 = vmatpush.bf16.msra.mxu0 %v358
  %400 = vmatpush.bf16.msra.mxu0 %v357
  %401 = vmatpush.bf16.msra.mxu0 %v356
  %402 = vmatpush.bf16.msra.mxu0 %v355
  %403 = vmatpush.bf16.msra.mxu0 %v354
  %404 = vmatpush.bf16.msra.mxu0 %v353
  %405 = vmatpush.bf16.msra.mxu0 %v352
  %406 = vmatpush.bf16.msra.mxu0 %v351
  %407 = vmatmul.bf16.gmra.mxu0 %v207
  %v408 = vpop.f32.mrf.mxu0
  %v409 = vadd.f32 0.0, %v408
  %v410 = vpop.f32.mrf.mxu0
  %v411 = vadd.f32 0.0, %v410
  %412 = vmatmul.bf16.gmra.mxu0 %v210
  %v413 = vpop.f32.mrf.mxu0
  %v414 = vadd.f32 0.0, %v413
  %v415 = vpop.f32.mrf.mxu0
  %v416 = vadd.f32 0.0, %v415
  %417 = vmatmul.bf16.gmra.mxu0 %v213
  %v418 = vpop.f32.mrf.mxu0
  %v419 = vadd.f32 0.0, %v418
  %v420 = vpop.f32.mrf.mxu0
  %v421 = vadd.f32 0.0, %v420
  %422 = vmatmul.bf16.gmra.mxu0 %v216
  %v423 = vpop.f32.mrf.mxu0
  %v424 = vadd.f32 0.0, %v423
  %v425 = vpop.f32.mrf.mxu0
  %v426 = vadd.f32 0.0, %v425
  %427 = vmatmul.bf16.gmra.mxu0 %v219
  %v428 = vpop.f32.mrf.mxu0
  %v429 = vadd.f32 0.0, %v428
  %v430 = vpop.f32.mrf.mxu0
  %v431 = vadd.f32 0.0, %v430
  %432 = vmatmul.bf16.gmra.mxu0 %v222
  %v433 = vpop.f32.mrf.mxu0
  %v434 = vadd.f32 0.0, %v433
  %v435 = vpop.f32.mrf.mxu0
  %v436 = vadd.f32 0.0, %v435
  %437 = vmatmul.bf16.gmra.mxu0 %v225
  %v438 = vpop.f32.mrf.mxu0
  %v439 = vadd.f32 0.0, %v438
  %v440 = vpop.f32.mrf.mxu0
  %v441 = vadd.f32 0.0, %v440
  %442 = vmatmul.bf16.gmra.mxu0 %v228
  %v443 = vpop.f32.mrf.mxu0
  %v444 = vadd.f32 0.0, %v443
  %v445 = vpop.f32.mrf.mxu0
  %v446 = vadd.f32 0.0, %v445
  %447 = vdwg.mxu0
  %448 = vmatpush.bf16.msra.mxu0 %v366
  %449 = vmatpush.bf16.msra.mxu0 %v365
  %450 = vmatpush.bf16.msra.mxu0 %v364
  %451 = vmatpush.bf16.msra.mxu0 %v363
  %452 = vmatpush.bf16.msra.mxu0 %v362
  %453 = vmatpush.bf16.msra.mxu0 %v361
  %454 = vmatpush.bf16.msra.mxu0 %v360
  %455 = vmatpush.bf16.msra.mxu0 %v359
  %456 = vmatmul.bf16.gmra.mxu0 %v208
  %v457 = vpop.f32.mrf.mxu0
  %v458 = vadd.f32 %v409, %v457
  %v459 = vpop.f32.mrf.mxu0
  %v460 = vadd.f32 %v411, %v459
  %461 = vmatmul.bf16.gmra.mxu0 %v211
  %v462 = vpop.f32.mrf.mxu0
  %v463 = vadd.f32 %v414, %v462
  %v464 = vpop.f32.mrf.mxu0
  %v465 = vadd.f32 %v416, %v464
  %466 = vmatmul.bf16.gmra.mxu0 %v214
  %v467 = vpop.f32.mrf.mxu0
  %v468 = vadd.f32 %v419, %v467
  %v469 = vpop.f32.mrf.mxu0
  %v470 = vadd.f32 %v421, %v469
  %471 = vmatmul.bf16.gmra.mxu0 %v217
  %v472 = vpop.f32.mrf.mxu0
  %v473 = vadd.f32 %v424, %v472
  %v474 = vpop.f32.mrf.mxu0
  %v475 = vadd.f32 %v426, %v474
  %476 = vmatmul.bf16.gmra.mxu0 %v220
  %v477 = vpop.f32.mrf.mxu0
  %v478 = vadd.f32 %v429, %v477
  %v479 = vpop.f32.mrf.mxu0
  %v480 = vadd.f32 %v431, %v479
  %481 = vmatmul.bf16.gmra.mxu0 %v223
  %v482 = vpop.f32.mrf.mxu0
  %v483 = vadd.f32 %v434, %v482
  %v484 = vpop.f32.mrf.mxu0
  %v485 = vadd.f32 %v436, %v484
  %486 = vmatmul.bf16.gmra.mxu0 %v226
  %v487 = vpop.f32.mrf.mxu0
  %v488 = vadd.f32 %v439, %v487
  %v489 = vpop.f32.mrf.mxu0
  %v490 = vadd.f32 %v441, %v489
  %491 = vmatmul.bf16.gmra.mxu0 %v229
  %v492 = vpop.f32.mrf.mxu0
  %v493 = vadd.f32 %v444, %v492
  %v494 = vpop.f32.mrf.mxu0
  %v495 = vadd.f32 %v446, %v494
  %496 = vdwg.mxu0
  %497 = vmatpush.bf16.msra.mxu0 %v374
  %498 = vmatpush.bf16.msra.mxu0 %v373
  %499 = vmatpush.bf16.msra.mxu0 %v372
  %500 = vmatpush.bf16.msra.mxu0 %v371
  %501 = vmatpush.bf16.msra.mxu0 %v370
  %502 = vmatpush.bf16.msra.mxu0 %v369
  %503 = vmatpush.bf16.msra.mxu0 %v368
  %504 = vmatpush.bf16.msra.mxu0 %v367
  %505 = vmatmul.bf16.gmra.mxu0 %v209
  %v506 = vpop.f32.mrf.mxu0
  %v507 = vadd.f32 %v458, %v506
  %v508 = vpop.f32.mrf.mxu0
  %v509 = vadd.f32 %v460, %v508
  %510 = vmatmul.bf16.gmra.mxu0 %v212
  %v511 = vpop.f32.mrf.mxu0
  %v512 = vadd.f32 %v463, %v511
  %v513 = vpop.f32.mrf.mxu0
  %v514 = vadd.f32 %v465, %v513
  %515 = vmatmul.bf16.gmra.mxu0 %v215
  %v516 = vpop.f32.mrf.mxu0
  %v517 = vadd.f32 %v468, %v516
  %v518 = vpop.f32.mrf.mxu0
  %v519 = vadd.f32 %v470, %v518
  %520 = vmatmul.bf16.gmra.mxu0 %v218
  %v521 = vpop.f32.mrf.mxu0
  %v522 = vadd.f32 %v473, %v521
  %v523 = vpop.f32.mrf.mxu0
  %v524 = vadd.f32 %v475, %v523
  %525 = vmatmul.bf16.gmra.mxu0 %v221
  %v526 = vpop.f32.mrf.mxu0
  %v527 = vadd.f32 %v478, %v526
  %v528 = vpop.f32.mrf.mxu0
  %v529 = vadd.f32 %v480, %v528
  %530 = vmatmul.bf16.gmra.mxu0 %v224
  %v531 = vpop.f32.mrf.mxu0
  %v532 = vadd.f32 %v483, %v531
  %v533 = vpop.f32.mrf.mxu0
  %v534 = vadd.f32 %v485, %v533
  %535 = vmatmul.bf16.gmra.mxu0 %v227
  %v536 = vpop.f32.mrf.mxu0
  %v537 = vadd.f32 %v488, %v536
  %v538 = vpop.f32.mrf.mxu0
  %v539 = vadd.f32 %v490, %v538
  %540 = vmatmul.bf16.gmra.mxu0 %v230
  %v541 = vpop.f32.mrf.mxu0
  %v542 = vadd.f32 %v493, %v541
  %v543 = vpop.f32.mrf.mxu0
  %v544 = vadd.f32 %v495, %v543
  %545 = vdwg.mxu0
  %v546 = vadd.f32 %v63, %v507
  %v547 = vadd.f32 %v64, %v509
  %v548 = vadd.f32 %v65, %v512
  %v549 = vadd.f32 %v66, %v514
  %v550 = vadd.f32 %v67, %v517
  %v551 = vadd.f32 %v68, %v519
  %v552 = vadd.f32 %v69, %v522
  %v553 = vadd.f32 %v70, %v524
  %v554 = vadd.f32 %v71, %v527
  %v555 = vadd.f32 %v72, %v529
  %v556 = vadd.f32 %v73, %v532
  %v557 = vadd.f32 %v74, %v534
  %v558 = vadd.f32 %v75, %v537
  %v559 = vadd.f32 %v76, %v539
  %v560 = vadd.f32 %v77, %v542
  %v561 = vadd.f32 %v78, %v544
  %562 = vst [vmem:[#allocation2] sm:$0xff] %v546
  %563 = vst [vmem:[#allocation2 + $0x8] sm:$0xff] %v547
  %564 = vst [vmem:[#allocation2 + $0x10] sm:$0xff] %v548
  %565 = vst [vmem:[#allocation2 + $0x18] sm:$0xff] %v549
  %566 = vst [vmem:[#allocation2 + $0x20] sm:$0xff] %v550
  %567 = vst [vmem:[#allocation2 + $0x28] sm:$0xff] %v551
  %568 = vst [vmem:[#allocation2 + $0x30] sm:$0xff] %v552
  %569 = vst [vmem:[#allocation2 + $0x38] sm:$0xff] %v553
  %570 = vst [vmem:[#allocation2 + $0x40] sm:$0xff] %v554
  %571 = vst [vmem:[#allocation2 + $0x48] sm:$0xff] %v555
  %572 = vst [vmem:[#allocation2 + $0x50] sm:$0xff] %v556
  %573 = vst [vmem:[#allocation2 + $0x58] sm:$0xff] %v557
  %574 = vst [vmem:[#allocation2 + $0x60] sm:$0xff] %v558
  %575 = vst [vmem:[#allocation2 + $0x68] sm:$0xff] %v559
  %576 = vst [vmem:[#allocation2 + $0x70] sm:$0xff] %v560
  %577 = vst [vmem:[#allocation2 + $0x78] sm:$0xff] %v561
  // Predicated region
  $region14: #{densenet_forward.17} parent=0 // pred_check
    %p578 = pneg %p11
  $region15: #{densenet_forward.17} parent=0 // pred_check_branch
    %580 = sbr.rel (%p578) target = $region17
  $region16: #{densenet_forward.17} parent=0 // pred_region
    %v581 = vld [vmem:[#allocation2] sm:$0xff]
    %v582 = vld [vmem:[#allocation2 + $0x8] sm:$0xff]
    %v583 = vld [vmem:[#allocation2 + $0x10] sm:$0xff]
    %v584 = vld [vmem:[#allocation2 + $0x18] sm:$0xff]
    %v585 = vld [vmem:[#allocation2 + $0x20] sm:$0xff]
    %v586 = vld [vmem:[#allocation2 + $0x28] sm:$0xff]
    %v587 = vld [vmem:[#allocation2 + $0x30] sm:$0xff]
    %v588 = vld [vmem:[#allocation2 + $0x38] sm:$0xff]
    %v589 = vld [vmem:[#allocation2 + $0x40] sm:$0xff]
    %v590 = vld [vmem:[#allocation2 + $0x48] sm:$0xff]
    %v591 = vld [vmem:[#allocation2 + $0x50] sm:$0xff]
    %v592 = vld [vmem:[#allocation2 + $0x58] sm:$0xff]
    %v593 = vld [vmem:[#allocation2 + $0x60] sm:$0xff]
    %v594 = vld [vmem:[#allocation2 + $0x68] sm:$0xff]
    %v595 = vld [vmem:[#allocation2 + $0x70] sm:$0xff]
    %v596 = vld [vmem:[#allocation2 + $0x78] sm:$0xff]
    %v597 = vpack.c.bf16 %v581, %v581
    %v598 = vpack.c.bf16 %v582, %v582
    %v599 = vpack.c.bf16 %v583, %v583
    %v600 = vpack.c.bf16 %v584, %v584
    %v601 = vpack.c.bf16 %v585, %v585
    %v602 = vpack.c.bf16 %v586, %v586
    %v603 = vpack.c.bf16 %v587, %v587
    %v604 = vpack.c.bf16 %v588, %v588
    %v605 = vpack.c.bf16 %v589, %v589
    %v606 = vpack.c.bf16 %v590, %v590
    %v607 = vpack.c.bf16 %v591, %v591
    %v608 = vpack.c.bf16 %v592, %v592
    %v609 = vpack.c.bf16 %v593, %v593
    %v610 = vpack.c.bf16 %v594, %v594
    %v611 = vpack.c.bf16 %v595, %v595
    %v612 = vpack.c.bf16 %v596, %v596
    %613 = vst [vmem:[%s2] sm:$0xf] %v597
    %614 = vst [vmem:[%s2 + $0x4] sm:$0xf] %v598
    %615 = vst [vmem:[%s2 + $0x8] sm:$0xf] %v599
    %616 = vst [vmem:[%s2 + $0xc] sm:$0xf] %v600
    %617 = vst [vmem:[%s2 + $0x10] sm:$0xf] %v601
    %618 = vst [vmem:[%s2 + $0x14] sm:$0xf] %v602
    %619 = vst [vmem:[%s2 + $0x18] sm:$0xf] %v603
    %620 = vst [vmem:[%s2 + $0x1c] sm:$0xf] %v604
    %621 = vst [vmem:[%s2 + $0x20] sm:$0xf] %v605
    %622 = vst [vmem:[%s2 + $0x24] sm:$0xf] %v606
    %623 = vst [vmem:[%s2 + $0x28] sm:$0xf] %v607
    %624 = vst [vmem:[%s2 + $0x2c] sm:$0xf] %v608
    %625 = vst [vmem:[%s2 + $0x30] sm:$0xf] %v609
    %626 = vst [vmem:[%s2 + $0x34] sm:$0xf] %v610
    %627 = vst [vmem:[%s2 + $0x38] sm:$0xf] %v611
    %628 = vst [vmem:[%s2 + $0x3c] sm:$0xf] %v612
  $region17: #{densenet_forward.17} parent=0 // pred_fallthru
    _
  // Predicated region
  $region18: #{densenet_forward.17} parent=0 // pred_check
    _
  $region19: #{densenet_forward.17} parent=0 // pred_check_branch
    %630 = sbr.rel (0) target = $region21
  $region20: #{densenet_forward.17} parent=0 // pred_region
    _
  $region21: #{densenet_forward.17} parent=0 // pred_fallthru
    _
  // Predicated region
  $region22: #{densenet_forward.17} parent=0 // pred_check
    _
  $region23: #{densenet_forward.17} parent=0 // pred_check_branch
    %632 = sbr.rel (0) target = $region25
  $region24: #{densenet_forward.17} parent=0 // pred_region
    _
  $region25: #{densenet_forward.17} parent=0 // pred_fallthru
    _

// kernel: densenet_forward.20
$region0: #{densenet_forward.20}
  #allocation0 [shape = 'u32[]', space=smem, size = 0x4, offset = 0x4, fixed_abs, tag = 'smem constant byte address 0x4 - core index']
  #allocation1 [shape = 'u32[72,128]{1,0:T(1,128)}', space=vmem, size = 0x9000, scoped, tag = 'internal scratch']
  #allocation2 [shape = 'f32[128,128]{1,0:T(8,128)}', space=vmem, size = 0x10000, scoped, tag = 'scratch operand']
  %s0 = inlined_call_operand.vmem [shape: bf16[128,128], index: 0, kind: input, shape index: {}]
  %s1 = inlined_call_operand.vmem [shape: f32[1,128], index: 1, kind: input, shape index: {}]
  %s2 = inlined_call_operand.vmem [shape: f32[1,128], index: 2, kind: input, shape index: {}]
  %s3 = inlined_call_operand.vmem [shape: bf16[128,128], index: 3, kind: input, shape index: {}]
  %s4 = inlined_call_operand.vmem [shape: bf16[128,128], index: 4, kind: output, shape index: {}]
  %s5 = sld [smem:[#allocation0]]
  $region34: #{densenet_forward.20} parent=0
    _
  %s7 = ssub.s32 1, %s5
  %s8 = scalar_select 0, %s7, %s5
  // Predicated region
  $region2: #{densenet_forward.20} parent=0 // pred_check
    _
  $region3: #{densenet_forward.20} parent=0 // pred_check_branch
    %10 = sbr.rel (0) target = $region5
  $region4: #{densenet_forward.20} parent=0 // pred_region
    _
  $region5: #{densenet_forward.20} parent=0 // pred_fallthru
    _
  // Predicated region
  $region6: #{densenet_forward.20} parent=0 // pred_check
    _
  $region7: #{densenet_forward.20} parent=0 // pred_check_branch
    %12 = sbr.rel (0) target = $region9
  $region8: #{densenet_forward.20} parent=0 // pred_region
    _
  $region9: #{densenet_forward.20} parent=0 // pred_fallthru
    _
  // Predicated region
  $region10: #{densenet_forward.20} parent=0 // pred_check
    _
  $region11: #{densenet_forward.20} parent=0 // pred_check_branch
    %14 = sbr.rel (0) target = $region13
  $region12: #{densenet_forward.20} parent=0 // pred_region
    _
  $region13: #{densenet_forward.20} parent=0 // pred_fallthru
    _
  // Predicated region
  $region14: #{densenet_forward.20} parent=0 // pred_check
    _
  $region15: #{densenet_forward.20} parent=0 // pred_check_branch
    %16 = sbr.rel (0) target = $region17
  $region16: #{densenet_forward.20} parent=0 // pred_region
    _
  $region17: #{densenet_forward.20} parent=0 // pred_fallthru
    _
  %p17 = scmp.eq.s32.totalorder 0, 0
  // Predicated region
  $region18: #{densenet_forward.20} parent=0 // pred_check
    %p18 = pneg %p17
  $region19: #{densenet_forward.20} parent=0 // pred_check_branch
    %20 = sbr.rel (%p18) target = $region21
  $region20: #{densenet_forward.20} parent=0 // pred_region
    %21 = vst [vmem:[#allocation2] sm:$0xff] 0.0
    %22 = vst [vmem:[#allocation2 + $0x8] sm:$0xff] 0.0
    %23 = vst [vmem:[#allocation2 + $0x10] sm:$0xff] 0.0
    %24 = vst [vmem:[#allocation2 + $0x18] sm:$0xff] 0.0
    %25 = vst [vmem:[#allocation2 + $0x20] sm:$0xff] 0.0
    %26 = vst [vmem:[#allocation2 + $0x28] sm:$0xff] 0.0
    %27 = vst [vmem:[#allocation2 + $0x30] sm:$0xff] 0.0
    %28 = vst [vmem:[#allocation2 + $0x38] sm:$0xff] 0.0
    %29 = vst [vmem:[#allocation2 + $0x40] sm:$0xff] 0.0
    %30 = vst [vmem:[#allocation2 + $0x48] sm:$0xff] 0.0
    %31 = vst [vmem:[#allocation2 + $0x50] sm:$0xff] 0.0
    %32 = vst [vmem:[#allocation2 + $0x58] sm:$0xff] 0.0
    %33 = vst [vmem:[#allocation2 + $0x60] sm:$0xff] 0.0
    %34 = vst [vmem:[#allocation2 + $0x68] sm:$0xff] 0.0
    %35 = vst [vmem:[#allocation2 + $0x70] sm:$0xff] 0.0
    %36 = vst [vmem:[#allocation2 + $0x78] sm:$0xff] 0.0
  $region21: #{densenet_forward.20} parent=0 // pred_fallthru
    _
  %v37 = vld [vmem:[%s0] sm:$0xf]
  %v38 = vld [vmem:[%s0 + $0x4] sm:$0xf]
  %v39 = vld [vmem:[%s0 + $0x8] sm:$0xf]
  %v40 = vld [vmem:[%s0 + $0xc] sm:$0xf]
  %v41 = vld [vmem:[%s0 + $0x10] sm:$0xf]
  %v42 = vld [vmem:[%s0 + $0x14] sm:$0xf]
  %v43 = vld [vmem:[%s0 + $0x18] sm:$0xf]
  %v44 = vld [vmem:[%s0 + $0x1c] sm:$0xf]
  %v45 = vld [vmem:[%s0 + $0x20] sm:$0xf]
  %v46 = vld [vmem:[%s0 + $0x24] sm:$0xf]
  %v47 = vld [vmem:[%s0 + $0x28] sm:$0xf]
  %v48 = vld [vmem:[%s0 + $0x2c] sm:$0xf]
  %v49 = vld [vmem:[%s0 + $0x30] sm:$0xf]
  %v50 = vld [vmem:[%s0 + $0x34] sm:$0xf]
  %v51 = vld [vmem:[%s0 + $0x38] sm:$0xf]
  %v52 = vld [vmem:[%s0 + $0x3c] sm:$0xf]
  %v53 = vunpack.c.l.bf16 %v37
  %v54 = vunpack.c.l.bf16 %v38
  %v55 = vunpack.c.l.bf16 %v39
  %v56 = vunpack.c.l.bf16 %v40
  %v57 = vunpack.c.l.bf16 %v41
  %v58 = vunpack.c.l.bf16 %v42
  %v59 = vunpack.c.l.bf16 %v43
  %v60 = vunpack.c.l.bf16 %v44
  %v61 = vunpack.c.l.bf16 %v45
  %v62 = vunpack.c.l.bf16 %v46
  %v63 = vunpack.c.l.bf16 %v47
  %v64 = vunpack.c.l.bf16 %v48
  %v65 = vunpack.c.l.bf16 %v49
  %v66 = vunpack.c.l.bf16 %v50
  %v67 = vunpack.c.l.bf16 %v51
  %v68 = vunpack.c.l.bf16 %v52
  %v69 = vld [vmem:[%s1] sm:$0x1]
  %v71 = vperm.slane %v69, 0
  %v73 = vmul.f32 %v53, %v71
  %v74 = vmul.f32 %v54, %v71
  %v75 = vmul.f32 %v55, %v71
  %v76 = vmul.f32 %v56, %v71
  %v77 = vmul.f32 %v57, %v71
  %v78 = vmul.f32 %v58, %v71
  %v79 = vmul.f32 %v59, %v71
  %v80 = vmul.f32 %v60, %v71
  %v81 = vmul.f32 %v61, %v71
  %v82 = vmul.f32 %v62, %v71
  %v83 = vmul.f32 %v63, %v71
  %v84 = vmul.f32 %v64, %v71
  %v85 = vmul.f32 %v65, %v71
  %v86 = vmul.f32 %v66, %v71
  %v87 = vmul.f32 %v67, %v71
  %v88 = vmul.f32 %v68, %v71
  %v89 = vld [vmem:[%s2] sm:$0x1]
  %v91 = vperm.slane %v89, 0
  %v93 = vadd.f32 %v73, %v91
  %v94 = vadd.f32 %v74, %v91
  %v95 = vadd.f32 %v75, %v91
  %v96 = vadd.f32 %v76, %v91
  %v97 = vadd.f32 %v77, %v91
  %v98 = vadd.f32 %v78, %v91
  %v99 = vadd.f32 %v79, %v91
  %v100 = vadd.f32 %v80, %v91
  %v101 = vadd.f32 %v81, %v91
  %v102 = vadd.f32 %v82, %v91
  %v103 = vadd.f32 %v83, %v91
  %v104 = vadd.f32 %v84, %v91
  %v105 = vadd.f32 %v85, %v91
  %v106 = vadd.f32 %v86, %v91
  %v107 = vadd.f32 %v87, %v91
  %v108 = vadd.f32 %v88, %v91
  %v109 = vmax.f32 %v93, 0.0
  %v110 = vmax.f32 %v94, 0.0
  %v111 = vmax.f32 %v95, 0.0
  %v112 = vmax.f32 %v96, 0.0
  %v113 = vmax.f32 %v97, 0.0
  %v114 = vmax.f32 %v98, 0.0
  %v115 = vmax.f32 %v99, 0.0
  %v116 = vmax.f32 %v100, 0.0
  %v117 = vmax.f32 %v101, 0.0
  %v118 = vmax.f32 %v102, 0.0
  %v119 = vmax.f32 %v103, 0.0
  %v120 = vmax.f32 %v104, 0.0
  %v121 = vmax.f32 %v105, 0.0
  %v122 = vmax.f32 %v106, 0.0
  %v123 = vmax.f32 %v107, 0.0
  %v124 = vmax.f32 %v108, 0.0
  %v125 = vpack.c.bf16 %v110, %v109
  %v126 = vpack.c.bf16 %v112, %v111
  %v127 = vpack.c.bf16 %v114, %v113
  %v128 = vpack.c.bf16 %v116, %v115
  %v129 = vpack.c.bf16 %v118, %v117
  %v130 = vpack.c.bf16 %v120, %v119
  %v131 = vpack.c.bf16 %v122, %v121
  %v132 = vpack.c.bf16 %v124, %v123
  %v133 = vld [vmem:[#allocation2] sm:$0xff]
  %v134 = vld [vmem:[#allocation2 + $0x8] sm:$0xff]
  %v135 = vld [vmem:[#allocation2 + $0x10] sm:$0xff]
  %v136 = vld [vmem:[#allocation2 + $0x18] sm:$0xff]
  %v137 = vld [vmem:[#allocation2 + $0x20] sm:$0xff]
  %v138 = vld [vmem:[#allocation2 + $0x28] sm:$0xff]
  %v139 = vld [vmem:[#allocation2 + $0x30] sm:$0xff]
  %v140 = vld [vmem:[#allocation2 + $0x38] sm:$0xff]
  %v141 = vld [vmem:[#allocation2 + $0x40] sm:$0xff]
  %v142 = vld [vmem:[#allocation2 + $0x48] sm:$0xff]
  %v143 = vld [vmem:[#allocation2 + $0x50] sm:$0xff]
  %v144 = vld [vmem:[#allocation2 + $0x58] sm:$0xff]
  %v145 = vld [vmem:[#allocation2 + $0x60] sm:$0xff]
  %v146 = vld [vmem:[#allocation2 + $0x68] sm:$0xff]
  %v147 = vld [vmem:[#allocation2 + $0x70] sm:$0xff]
  %v148 = vld [vmem:[#allocation2 + $0x78] sm:$0xff]
  %v149 = vld [vmem:[%s3] sm:$0xf]
  %v150 = vld [vmem:[%s3 + $0x4] sm:$0xf]
  %v151 = vld [vmem:[%s3 + $0x8] sm:$0xf]
  %v152 = vld [vmem:[%s3 + $0xc] sm:$0xf]
  %v153 = vld [vmem:[%s3 + $0x10] sm:$0xf]
  %v154 = vld [vmem:[%s3 + $0x14] sm:$0xf]
  %v155 = vld [vmem:[%s3 + $0x18] sm:$0xf]
  %v156 = vld [vmem:[%s3 + $0x1c] sm:$0xf]
  %v157 = vld [vmem:[%s3 + $0x20] sm:$0xf]
  %v158 = vld [vmem:[%s3 + $0x24] sm:$0xf]
  %v159 = vld [vmem:[%s3 + $0x28] sm:$0xf]
  %v160 = vld [vmem:[%s3 + $0x2c] sm:$0xf]
  %v161 = vld [vmem:[%s3 + $0x30] sm:$0xf]
  %v162 = vld [vmem:[%s3 + $0x34] sm:$0xf]
  %v163 = vld [vmem:[%s3 + $0x38] sm:$0xf]
  %v164 = vld [vmem:[%s3 + $0x3c] sm:$0xf]
  %v181 = vunpack.c.l.b16 %v149
  %v182 = vunpack.c.l.b16 %v150
  %v183 = vunpack.c.l.b16 %v151
  %v184 = vunpack.c.l.b16 %v152
  %v185 = vunpack.c.l.b16 %v153
  %v186 = vunpack.c.l.b16 %v154
  %v187 = vunpack.c.l.b16 %v155
  %v188 = vunpack.c.l.b16 %v156
  %v189 = vunpack.c.l.b16 %v157
  %v190 = vunpack.c.l.b16 %v158
  %v191 = vunpack.c.l.b16 %v159
  %v192 = vunpack.c.l.b16 %v160
  %v193 = vunpack.c.l.b16 %v161
  %v194 = vunpack.c.l.b16 %v162
  %v195 = vunpack.c.l.b16 %v163
  %v196 = vunpack.c.l.b16 %v164
  %v197 = vpack.c.b16 %v182, %v181
  %v198 = vpack.c.b16 %v184, %v183
  %v199 = vpack.c.b16 %v186, %v185
  %v200 = vpack.c.b16 %v188, %v187
  %v201 = vpack.c.b16 %v190, %v189
  %v202 = vpack.c.b16 %v192, %v191
  %v203 = vpack.c.b16 %v194, %v193
  %v204 = vpack.c.b16 %v196, %v195
  %213 = vmatpush.bf16.msra.mxu0 %v204
  %214 = vmatpush.bf16.msra.mxu0 %v203
  %215 = vmatpush.bf16.msra.mxu0 %v202
  %216 = vmatpush.bf16.msra.mxu0 %v201
  %217 = vmatpush.bf16.msra.mxu0 %v200
  %218 = vmatpush.bf16.msra.mxu0 %v199
  %219 = vmatpush.bf16.msra.mxu0 %v198
  %220 = vmatpush.bf16.msra.mxu0 %v197
  %221 = vmatmul.bf16.gmra.mxu0 %v125
  %v222 = vpop.f32.mrf.mxu0
  %v223 = vadd.f32 0.0, %v222
  %v224 = vpop.f32.mrf.mxu0
  %v225 = vadd.f32 0.0, %v224
  %226 = vmatmul.bf16.gmra.mxu0 %v126
  %v227 = vpop.f32.mrf.mxu0
  %v228 = vadd.f32 0.0, %v227
  %v229 = vpop.f32.mrf.mxu0
  %v230 = vadd.f32 0.0, %v229
  %231 = vmatmul.bf16.gmra.mxu0 %v127
  %v232 = vpop.f32.mrf.mxu0
  %v233 = vadd.f32 0.0, %v232
  %v234 = vpop.f32.mrf.mxu0
  %v235 = vadd.f32 0.0, %v234
  %236 = vmatmul.bf16.gmra.mxu0 %v128
  %v237 = vpop.f32.mrf.mxu0
  %v238 = vadd.f32 0.0, %v237
  %v239 = vpop.f32.mrf.mxu0
  %v240 = vadd.f32 0.0, %v239
  %241 = vmatmul.bf16.gmra.mxu0 %v129
  %v242 = vpop.f32.mrf.mxu0
  %v243 = vadd.f32 0.0, %v242
  %v244 = vpop.f32.mrf.mxu0
  %v245 = vadd.f32 0.0, %v244
  %246 = vmatmul.bf16.gmra.mxu0 %v130
  %v247 = vpop.f32.mrf.mxu0
  %v248 = vadd.f32 0.0, %v247
  %v249 = vpop.f32.mrf.mxu0
  %v250 = vadd.f32 0.0, %v249
  %251 = vmatmul.bf16.gmra.mxu0 %v131
  %v252 = vpop.f32.mrf.mxu0
  %v253 = vadd.f32 0.0, %v252
  %v254 = vpop.f32.mrf.mxu0
  %v255 = vadd.f32 0.0, %v254
  %256 = vmatmul.bf16.gmra.mxu0 %v132
  %v257 = vpop.f32.mrf.mxu0
  %v258 = vadd.f32 0.0, %v257
  %v259 = vpop.f32.mrf.mxu0
  %v260 = vadd.f32 0.0, %v259
  %261 = vdwg.mxu0
  %v262 = vadd.f32 %v133, %v223
  %v263 = vadd.f32 %v134, %v225
  %v264 = vadd.f32 %v135, %v228
  %v265 = vadd.f32 %v136, %v230
  %v266 = vadd.f32 %v137, %v233
  %v267 = vadd.f32 %v138, %v235
  %v268 = vadd.f32 %v139, %v238
  %v269 = vadd.f32 %v140, %v240
  %v270 = vadd.f32 %v141, %v243
  %v271 = vadd.f32 %v142, %v245
  %v272 = vadd.f32 %v143, %v248
  %v273 = vadd.f32 %v144, %v250
  %v274 = vadd.f32 %v145, %v253
  %v275 = vadd.f32 %v146, %v255
  %v276 = vadd.f32 %v147, %v258
  %v277 = vadd.f32 %v148, %v260
  %278 = vst [vmem:[#allocation2] sm:$0xff] %v262
  %279 = vst [vmem:[#allocation2 + $0x8] sm:$0xff] %v263
  %280 = vst [vmem:[#allocation2 + $0x10] sm:$0xff] %v264
  %281 = vst [vmem:[#allocation2 + $0x18] sm:$0xff] %v265
  %282 = vst [vmem:[#allocation2 + $0x20] sm:$0xff] %v266
  %283 = vst [vmem:[#allocation2 + $0x28] sm:$0xff] %v267
  %284 = vst [vmem:[#allocation2 + $0x30] sm:$0xff] %v268
  %285 = vst [vmem:[#allocation2 + $0x38] sm:$0xff] %v269
  %286 = vst [vmem:[#allocation2 + $0x40] sm:$0xff] %v270
  %287 = vst [vmem:[#allocation2 + $0x48] sm:$0xff] %v271
  %288 = vst [vmem:[#allocation2 + $0x50] sm:$0xff] %v272
  %289 = vst [vmem:[#allocation2 + $0x58] sm:$0xff] %v273
  %290 = vst [vmem:[#allocation2 + $0x60] sm:$0xff] %v274
  %291 = vst [vmem:[#allocation2 + $0x68] sm:$0xff] %v275
  %292 = vst [vmem:[#allocation2 + $0x70] sm:$0xff] %v276
  %293 = vst [vmem:[#allocation2 + $0x78] sm:$0xff] %v277
  // Predicated region
  $region22: #{densenet_forward.20} parent=0 // pred_check
    %p294 = pneg %p17
  $region23: #{densenet_forward.20} parent=0 // pred_check_branch
    %296 = sbr.rel (%p294) target = $region25
  $region24: #{densenet_forward.20} parent=0 // pred_region
    %v297 = vld [vmem:[#allocation2] sm:$0xff]
    %v298 = vld [vmem:[#allocation2 + $0x8] sm:$0xff]
    %v299 = vld [vmem:[#allocation2 + $0x10] sm:$0xff]
    %v300 = vld [vmem:[#allocation2 + $0x18] sm:$0xff]
    %v301 = vld [vmem:[#allocation2 + $0x20] sm:$0xff]
    %v302 = vld [vmem:[#allocation2 + $0x28] sm:$0xff]
    %v303 = vld [vmem:[#allocation2 + $0x30] sm:$0xff]
    %v304 = vld [vmem:[#allocation2 + $0x38] sm:$0xff]
    %v305 = vld [vmem:[#allocation2 + $0x40] sm:$0xff]
    %v306 = vld [vmem:[#allocation2 + $0x48] sm:$0xff]
    %v307 = vld [vmem:[#allocation2 + $0x50] sm:$0xff]
    %v308 = vld [vmem:[#allocation2 + $0x58] sm:$0xff]
    %v309 = vld [vmem:[#allocation2 + $0x60] sm:$0xff]
    %v310 = vld [vmem:[#allocation2 + $0x68] sm:$0xff]
    %v311 = vld [vmem:[#allocation2 + $0x70] sm:$0xff]
    %v312 = vld [vmem:[#allocation2 + $0x78] sm:$0xff]
    %v313 = vpack.c.bf16 %v297, %v297
    %v314 = vpack.c.bf16 %v298, %v298
    %v315 = vpack.c.bf16 %v299, %v299
    %v316 = vpack.c.bf16 %v300, %v300
    %v317 = vpack.c.bf16 %v301, %v301
    %v318 = vpack.c.bf16 %v302, %v302
    %v319 = vpack.c.bf16 %v303, %v303
    %v320 = vpack.c.bf16 %v304, %v304
    %v321 = vpack.c.bf16 %v305, %v305
    %v322 = vpack.c.bf16 %v306, %v306
    %v323 = vpack.c.bf16 %v307, %v307
    %v324 = vpack.c.bf16 %v308, %v308
    %v325 = vpack.c.bf16 %v309, %v309
    %v326 = vpack.c.bf16 %v310, %v310
    %v327 = vpack.c.bf16 %v311, %v311
    %v328 = vpack.c.bf16 %v312, %v312
    %329 = vst [vmem:[%s4] sm:$0xf] %v313
    %330 = vst [vmem:[%s4 + $0x4] sm:$0xf] %v314
    %331 = vst [vmem:[%s4 + $0x8] sm:$0xf] %v315
    %332 = vst [vmem:[%s4 + $0xc] sm:$0xf] %v316
    %333 = vst [vmem:[%s4 + $0x10] sm:$0xf] %v317
    %334 = vst [vmem:[%s4 + $0x14] sm:$0xf] %v318
    %335 = vst [vmem:[%s4 + $0x18] sm:$0xf] %v319
    %336 = vst [vmem:[%s4 + $0x1c] sm:$0xf] %v320
    %337 = vst [vmem:[%s4 + $0x20] sm:$0xf] %v321
    %338 = vst [vmem:[%s4 + $0x24] sm:$0xf] %v322
    %339 = vst [vmem:[%s4 + $0x28] sm:$0xf] %v323
    %340 = vst [vmem:[%s4 + $0x2c] sm:$0xf] %v324
    %341 = vst [vmem:[%s4 + $0x30] sm:$0xf] %v325
    %342 = vst [vmem:[%s4 + $0x34] sm:$0xf] %v326
    %343 = vst [vmem:[%s4 + $0x38] sm:$0xf] %v327
    %344 = vst [vmem:[%s4 + $0x3c] sm:$0xf] %v328
  $region25: #{densenet_forward.20} parent=0 // pred_fallthru
    _
  // Predicated region
  $region26: #{densenet_forward.20} parent=0 // pred_check
    _
  $region27: #{densenet_forward.20} parent=0 // pred_check_branch
    %346 = sbr.rel (0) target = $region29
  $region28: #{densenet_forward.20} parent=0 // pred_region
    _
  $region29: #{densenet_forward.20} parent=0 // pred_fallthru
    _
  // Predicated region
  $region30: #{densenet_forward.20} parent=0 // pred_check
    _
  $region31: #{densenet_forward.20} parent=0 // pred_check_branch
    %348 = sbr.rel (0) target = $region33
  $region32: #{densenet_forward.20} parent=0 // pred_region
    _
  $region33: #{densenet_forward.20} parent=0 // pred_fallthru
    _

// kernel: densenet_forward.21
$region0: #{densenet_forward.21}
  #allocation0 [shape = 'u32[]', space=smem, size = 0x4, offset = 0x4, fixed_abs, tag = 'smem constant byte address 0x4 - core index']
  #allocation1 [shape = 'u32[72,128]{1,0:T(1,128)}', space=vmem, size = 0x9000, scoped, tag = 'internal scratch']
  %s0 = inlined_call_operand.vmem [shape: bf16[4,32,16], index: 0, kind: input, shape index: {}]
  %s1 = inlined_call_operand.vmem [shape: bf16[32,16], index: 1, kind: output, shape index: {}]
  %s2 = sld [smem:[#allocation0]]
  $region14: #{densenet_forward.21} parent=0
    _
  %s4 = ssub.s32 1, %s2
  %s5 = scalar_select 0, %s4, %s2
  // Predicated region
  $region2: #{densenet_forward.21} parent=0 // pred_check
    _
  $region3: #{densenet_forward.21} parent=0 // pred_check_branch
    %7 = sbr.rel (0) target = $region5
  $region4: #{densenet_forward.21} parent=0 // pred_region
    _
  $region5: #{densenet_forward.21} parent=0 // pred_fallthru
    _
  %v8 = vld [vmem:[%s0] sm:$0xf]
  %v9 = vld [vmem:[%s0 + $0x4] sm:$0xf]
  %v10 = vld [vmem:[%s0 + $0x8] sm:$0xf]
  %v11 = vld [vmem:[%s0 + $0xc] sm:$0xf]
  %v12 = vld [vmem:[%s0 + $0x10] sm:$0xf]
  %v13 = vld [vmem:[%s0 + $0x14] sm:$0xf]
  %v14 = vld [vmem:[%s0 + $0x18] sm:$0xf]
  %v15 = vld [vmem:[%s0 + $0x1c] sm:$0xf]
  %v16 = vld [vmem:[%s0 + $0x20] sm:$0xf]
  %v17 = vld [vmem:[%s0 + $0x24] sm:$0xf]
  %v18 = vld [vmem:[%s0 + $0x28] sm:$0xf]
  %v19 = vld [vmem:[%s0 + $0x2c] sm:$0xf]
  %v20 = vld [vmem:[%s0 + $0x30] sm:$0xf]
  %v21 = vld [vmem:[%s0 + $0x34] sm:$0xf]
  %v22 = vld [vmem:[%s0 + $0x38] sm:$0xf]
  %v23 = vld [vmem:[%s0 + $0x3c] sm:$0xf]
  %v24 = vunpack.c.l.bf16 %v8
  %v25 = vunpack.c.l.bf16 %v9
  %v26 = vunpack.c.l.bf16 %v10
  %v27 = vunpack.c.l.bf16 %v11
  %v28 = vunpack.c.l.bf16 %v12
  %v29 = vunpack.c.l.bf16 %v13
  %v30 = vunpack.c.l.bf16 %v14
  %v31 = vunpack.c.l.bf16 %v15
  %v32 = vunpack.c.l.bf16 %v16
  %v33 = vunpack.c.l.bf16 %v17
  %v34 = vunpack.c.l.bf16 %v18
  %v35 = vunpack.c.l.bf16 %v19
  %v36 = vunpack.c.l.bf16 %v20
  %v37 = vunpack.c.l.bf16 %v21
  %v38 = vunpack.c.l.bf16 %v22
  %v39 = vunpack.c.l.bf16 %v23
  %vm40 = vcmask 130048
  %v41 = vsel %vm40, %v24, 0.0
  %v42 = vsel %vm40, %v28, 0.0
  %v43 = vadd.f32 %v41, %v42
  %v44 = vsel %vm40, %v32, 0.0
  %v45 = vadd.f32 %v43, %v44
  %v46 = vsel %vm40, %v36, 0.0
  %v47 = vadd.f32 %v45, %v46
  %v48 = vsel %vm40, %v25, 0.0
  %v49 = vsel %vm40, %v29, 0.0
  %v50 = vadd.f32 %v48, %v49
  %v51 = vsel %vm40, %v33, 0.0
  %v52 = vadd.f32 %v50, %v51
  %v53 = vsel %vm40, %v37, 0.0
  %v54 = vadd.f32 %v52, %v53
  %v55 = vsel %vm40, %v26, 0.0
  %v56 = vsel %vm40, %v30, 0.0
  %v57 = vadd.f32 %v55, %v56
  %v58 = vsel %vm40, %v34, 0.0
  %v59 = vadd.f32 %v57, %v58
  %v60 = vsel %vm40, %v38, 0.0
  %v61 = vadd.f32 %v59, %v60
  %v62 = vsel %vm40, %v27, 0.0
  %v63 = vsel %vm40, %v31, 0.0
  %v64 = vadd.f32 %v62, %v63
  %v65 = vsel %vm40, %v35, 0.0
  %v66 = vadd.f32 %v64, %v65
  %v67 = vsel %vm40, %v39, 0.0
  %v68 = vadd.f32 %v66, %v67
  %v69 = vrcp.pop 4.0
  %v70 = vmul.f32 4.0, %v69
  %v71 = vsub.f32 1.0, %v70
  %v72 = vmul.f32 %v69, %v71
  %v73 = vadd.f32 %v69, %v72
  %vm74 = vweird.f32 %v69
  %v75 = vsel %vm74, %v69, %v73
  %v76 = vmul.f32 %v47, %v75
  %v77 = vmul.f32 %v54, %v75
  %v78 = vmul.f32 %v61, %v75
  %v79 = vmul.f32 %v68, %v75
  %v80 = vpack.c.bf16 %v76, %v76
  %v81 = vpack.c.bf16 %v77, %v77
  %v82 = vpack.c.bf16 %v78, %v78
  %v83 = vpack.c.bf16 %v79, %v79
  %vm84 = vcmask 125952
  %85 = vst.msk [vmem:[%s1] sm:$0xf] %vm84, %v80
  %86 = vst.msk [vmem:[%s1 + $0x4] sm:$0xf] %vm84, %v81
  %87 = vst.msk [vmem:[%s1 + $0x8] sm:$0xf] %vm84, %v82
  %88 = vst.msk [vmem:[%s1 + $0xc] sm:$0xf] %vm84, %v83
  // Predicated region
  $region6: #{densenet_forward.21} parent=0 // pred_check
    _
  $region7: #{densenet_forward.21} parent=0 // pred_check_branch
    %90 = sbr.rel (0) target = $region9
  $region8: #{densenet_forward.21} parent=0 // pred_region
    _
  $region9: #{densenet_forward.21} parent=0 // pred_fallthru
    _
  // Predicated region
  $region10: #{densenet_forward.21} parent=0 // pred_check
    _
  $region11: #{densenet_forward.21} parent=0 // pred_check_branch
    %92 = sbr.rel (0) target = $region13
  $region12: #{densenet_forward.21} parent=0 // pred_region
    _
  $region13: #{densenet_forward.21} parent=0 // pred_fallthru
    _

// kernel: densenet_forward.22
$region0: #{densenet_forward.22}
  #allocation0 [shape = 'u32[]', space=smem, size = 0x4, offset = 0x4, fixed_abs, tag = 'smem constant byte address 0x4 - core index']
  #allocation1 [shape = 'u32[72,128]{1,0:T(1,128)}', space=vmem, size = 0x9000, scoped, tag = 'internal scratch']
  #allocation2 [shape = 'f32[32,128]{1,0:T(8,128)}', space=vmem, size = 0x4000, scoped, tag = 'scratch operand']
  %s0 = inlined_call_operand.vmem [shape: bf16[32,128], index: 0, kind: input, shape index: {}]
  %s1 = inlined_call_operand.vmem [shape: f32[1,128], index: 1, kind: input, shape index: {}]
  %s2 = inlined_call_operand.vmem [shape: f32[1,128], index: 2, kind: input, shape index: {}]
  %s3 = inlined_call_operand.vmem [shape: bf16[128,128], index: 3, kind: input, shape index: {}]
  %s4 = inlined_call_operand.vmem [shape: f32[1,128], index: 4, kind: input, shape index: {}]
  %s5 = inlined_call_operand.vmem [shape: f32[1,128], index: 5, kind: input, shape index: {}]
  %s6 = inlined_call_operand.vmem [shape: bf16[32,128], index: 6, kind: output, shape index: {}]
  %s7 = sld [smem:[#allocation0]]
  $region42: #{densenet_forward.22} parent=0
    _
  %s9 = ssub.s32 1, %s7
  %s10 = scalar_select 0, %s9, %s7
  // Predicated region
  $region2: #{densenet_forward.22} parent=0 // pred_check
    _
  $region3: #{densenet_forward.22} parent=0 // pred_check_branch
    %12 = sbr.rel (0) target = $region5
  $region4: #{densenet_forward.22} parent=0 // pred_region
    _
  $region5: #{densenet_forward.22} parent=0 // pred_fallthru
    _
  // Predicated region
  $region6: #{densenet_forward.22} parent=0 // pred_check
    _
  $region7: #{densenet_forward.22} parent=0 // pred_check_branch
    %14 = sbr.rel (0) target = $region9
  $region8: #{densenet_forward.22} parent=0 // pred_region
    _
  $region9: #{densenet_forward.22} parent=0 // pred_fallthru
    _
  // Predicated region
  $region10: #{densenet_forward.22} parent=0 // pred_check
    _
  $region11: #{densenet_forward.22} parent=0 // pred_check_branch
    %16 = sbr.rel (0) target = $region13
  $region12: #{densenet_forward.22} parent=0 // pred_region
    _
  $region13: #{densenet_forward.22} parent=0 // pred_fallthru
    _
  // Predicated region
  $region14: #{densenet_forward.22} parent=0 // pred_check
    _
  $region15: #{densenet_forward.22} parent=0 // pred_check_branch
    %18 = sbr.rel (0) target = $region17
  $region16: #{densenet_forward.22} parent=0 // pred_region
    _
  $region17: #{densenet_forward.22} parent=0 // pred_fallthru
    _
  // Predicated region
  $region18: #{densenet_forward.22} parent=0 // pred_check
    _
  $region19: #{densenet_forward.22} parent=0 // pred_check_branch
    %20 = sbr.rel (0) target = $region21
  $region20: #{densenet_forward.22} parent=0 // pred_region
    _
  $region21: #{densenet_forward.22} parent=0 // pred_fallthru
    _
  // Predicated region
  $region22: #{densenet_forward.22} parent=0 // pred_check
    _
  $region23: #{densenet_forward.22} parent=0 // pred_check_branch
    %22 = sbr.rel (0) target = $region25
  $region24: #{densenet_forward.22} parent=0 // pred_region
    _
  $region25: #{densenet_forward.22} parent=0 // pred_fallthru
    _
  %p23 = scmp.eq.s32.totalorder 0, 0
  // Predicated region
  $region26: #{densenet_forward.22} parent=0 // pred_check
    %p24 = pneg %p23
  $region27: #{densenet_forward.22} parent=0 // pred_check_branch
    %26 = sbr.rel (%p24) target = $region29
  $region28: #{densenet_forward.22} parent=0 // pred_region
    %27 = vst [vmem:[#allocation2] sm:$0xff] 0.0
    %28 = vst [vmem:[#allocation2 + $0x8] sm:$0xff] 0.0
    %29 = vst [vmem:[#allocation2 + $0x10] sm:$0xff] 0.0
    %30 = vst [vmem:[#allocation2 + $0x18] sm:$0xff] 0.0
  $region29: #{densenet_forward.22} parent=0 // pred_fallthru
    _
  %v31 = vld [vmem:[%s0] sm:$0xf]
  %v32 = vld [vmem:[%s0 + $0x4] sm:$0xf]
  %v33 = vld [vmem:[%s0 + $0x8] sm:$0xf]
  %v34 = vld [vmem:[%s0 + $0xc] sm:$0xf]
  %v35 = vunpack.c.l.bf16 %v31
  %v36 = vunpack.c.l.bf16 %v32
  %v37 = vunpack.c.l.bf16 %v33
  %v38 = vunpack.c.l.bf16 %v34
  %v39 = vld [vmem:[%s1] sm:$0x1]
  %v41 = vperm.slane %v39, 0
  %v43 = vmul.f32 %v35, %v41
  %v44 = vmul.f32 %v36, %v41
  %v45 = vmul.f32 %v37, %v41
  %v46 = vmul.f32 %v38, %v41
  %v47 = vld [vmem:[%s2] sm:$0x1]
  %v49 = vperm.slane %v47, 0
  %v51 = vadd.f32 %v43, %v49
  %v52 = vadd.f32 %v44, %v49
  %v53 = vadd.f32 %v45, %v49
  %v54 = vadd.f32 %v46, %v49
  %v55 = vmax.f32 %v51, 0.0
  %v56 = vmax.f32 %v52, 0.0
  %v57 = vmax.f32 %v53, 0.0
  %v58 = vmax.f32 %v54, 0.0
  %v59 = vpack.c.bf16 %v56, %v55
  %v60 = vpack.c.bf16 %v58, %v57
  %v61 = vld [vmem:[#allocation2] sm:$0xff]
  %v62 = vld [vmem:[#allocation2 + $0x8] sm:$0xff]
  %v63 = vld [vmem:[#allocation2 + $0x10] sm:$0xff]
  %v64 = vld [vmem:[#allocation2 + $0x18] sm:$0xff]
  %v65 = vld [vmem:[%s3] sm:$0xf]
  %v66 = vld [vmem:[%s3 + $0x4] sm:$0xf]
  %v67 = vld [vmem:[%s3 + $0x8] sm:$0xf]
  %v68 = vld [vmem:[%s3 + $0xc] sm:$0xf]
  %v69 = vld [vmem:[%s3 + $0x10] sm:$0xf]
  %v70 = vld [vmem:[%s3 + $0x14] sm:$0xf]
  %v71 = vld [vmem:[%s3 + $0x18] sm:$0xf]
  %v72 = vld [vmem:[%s3 + $0x1c] sm:$0xf]
  %v73 = vld [vmem:[%s3 + $0x20] sm:$0xf]
  %v74 = vld [vmem:[%s3 + $0x24] sm:$0xf]
  %v75 = vld [vmem:[%s3 + $0x28] sm:$0xf]
  %v76 = vld [vmem:[%s3 + $0x2c] sm:$0xf]
  %v77 = vld [vmem:[%s3 + $0x30] sm:$0xf]
  %v78 = vld [vmem:[%s3 + $0x34] sm:$0xf]
  %v79 = vld [vmem:[%s3 + $0x38] sm:$0xf]
  %v80 = vld [vmem:[%s3 + $0x3c] sm:$0xf]
  %v97 = vunpack.c.l.b16 %v65
  %v98 = vunpack.c.l.b16 %v66
  %v99 = vunpack.c.l.b16 %v67
  %v100 = vunpack.c.l.b16 %v68
  %v101 = vunpack.c.l.b16 %v69
  %v102 = vunpack.c.l.b16 %v70
  %v103 = vunpack.c.l.b16 %v71
  %v104 = vunpack.c.l.b16 %v72
  %v105 = vunpack.c.l.b16 %v73
  %v106 = vunpack.c.l.b16 %v74
  %v107 = vunpack.c.l.b16 %v75
  %v108 = vunpack.c.l.b16 %v76
  %v109 = vunpack.c.l.b16 %v77
  %v110 = vunpack.c.l.b16 %v78
  %v111 = vunpack.c.l.b16 %v79
  %v112 = vunpack.c.l.b16 %v80
  %v113 = vpack.c.b16 %v98, %v97
  %v114 = vpack.c.b16 %v100, %v99
  %v115 = vpack.c.b16 %v102, %v101
  %v116 = vpack.c.b16 %v104, %v103
  %v117 = vpack.c.b16 %v106, %v105
  %v118 = vpack.c.b16 %v108, %v107
  %v119 = vpack.c.b16 %v110, %v109
  %v120 = vpack.c.b16 %v112, %v111
  %129 = vmatpush.bf16.msra.mxu0 %v120
  %130 = vmatpush.bf16.msra.mxu0 %v119
  %131 = vmatpush.bf16.msra.mxu0 %v118
  %132 = vmatpush.bf16.msra.mxu0 %v117
  %133 = vmatpush.bf16.msra.mxu0 %v116
  %134 = vmatpush.bf16.msra.mxu0 %v115
  %135 = vmatpush.bf16.msra.mxu0 %v114
  %136 = vmatpush.bf16.msra.mxu0 %v113
  %137 = vmatmul.bf16.gmra.mxu0 %v59
  %v138 = vpop.f32.mrf.mxu0
  %v139 = vadd.f32 0.0, %v138
  %v140 = vpop.f32.mrf.mxu0
  %v141 = vadd.f32 0.0, %v140
  %142 = vmatmul.bf16.gmra.mxu0 %v60
  %v143 = vpop.f32.mrf.mxu0
  %v144 = vadd.f32 0.0, %v143
  %v145 = vpop.f32.mrf.mxu0
  %v146 = vadd.f32 0.0, %v145
  %147 = vdwg.mxu0
  %v148 = vadd.f32 %v61, %v139
  %v149 = vadd.f32 %v62, %v141
  %v150 = vadd.f32 %v63, %v144
  %v151 = vadd.f32 %v64, %v146
  %152 = vst [vmem:[#allocation2] sm:$0xff] %v148
  %153 = vst [vmem:[#allocation2 + $0x8] sm:$0xff] %v149
  %154 = vst [vmem:[#allocation2 + $0x10] sm:$0xff] %v150
  %155 = vst [vmem:[#allocation2 + $0x18] sm:$0xff] %v151
  // Predicated region
  $region30: #{densenet_forward.22} parent=0 // pred_check
    %p156 = pneg %p23
  $region31: #{densenet_forward.22} parent=0 // pred_check_branch
    %158 = sbr.rel (%p156) target = $region33
  $region32: #{densenet_forward.22} parent=0 // pred_region
    %v159 = vld [vmem:[#allocation2] sm:$0xff]
    %v160 = vld [vmem:[#allocation2 + $0x8] sm:$0xff]
    %v161 = vld [vmem:[#allocation2 + $0x10] sm:$0xff]
    %v162 = vld [vmem:[#allocation2 + $0x18] sm:$0xff]
    %v163 = vld [vmem:[%s4] sm:$0x1]
    %v165 = vperm.slane %v163, 0
    %v167 = vmul.f32 %v159, %v165
    %v168 = vmul.f32 %v160, %v165
    %v169 = vmul.f32 %v161, %v165
    %v170 = vmul.f32 %v162, %v165
    %v171 = vld [vmem:[%s5] sm:$0x1]
    %v173 = vperm.slane %v171, 0
    %v175 = vadd.f32 %v167, %v173
    %v176 = vadd.f32 %v168, %v173
    %v177 = vadd.f32 %v169, %v173
    %v178 = vadd.f32 %v170, %v173
    %v179 = vmax.f32 %v175, 0.0
    %v180 = vmax.f32 %v176, 0.0
    %v181 = vmax.f32 %v177, 0.0
    %v182 = vmax.f32 %v178, 0.0
    %v183 = vpack.c.bf16 %v179, %v179
    %v184 = vpack.c.bf16 %v180, %v180
    %v185 = vpack.c.bf16 %v181, %v181
    %v186 = vpack.c.bf16 %v182, %v182
    %187 = vst [vmem:[%s6] sm:$0xf] %v183
    %188 = vst [vmem:[%s6 + $0x4] sm:$0xf] %v184
    %189 = vst [vmem:[%s6 + $0x8] sm:$0xf] %v185
    %190 = vst [vmem:[%s6 + $0xc] sm:$0xf] %v186
  $region33: #{densenet_forward.22} parent=0 // pred_fallthru
    _
  // Predicated region
  $region34: #{densenet_forward.22} parent=0 // pred_check
    _
  $region35: #{densenet_forward.22} parent=0 // pred_check_branch
    %192 = sbr.rel (0) target = $region37
  $region36: #{densenet_forward.22} parent=0 // pred_region
    _
  $region37: #{densenet_forward.22} parent=0 // pred_fallthru
    _
  // Predicated region
  $region38: #{densenet_forward.22} parent=0 // pred_check
    _
  $region39: #{densenet_forward.22} parent=0 // pred_check_branch
    %194 = sbr.rel (0) target = $region41
  $region40: #{densenet_forward.22} parent=0 // pred_region
    _
  $region41: #{densenet_forward.22} parent=0 // pred_fallthru
    _

// kernel: densenet_forward.26
$region0: #{densenet_forward.26}
  #allocation0 [shape = 'u32[]', space=smem, size = 0x4, offset = 0x4, fixed_abs, tag = 'smem constant byte address 0x4 - core index']
  #allocation1 [shape = 'u32[72,128]{1,0:T(1,128)}', space=vmem, size = 0x9000, scoped, tag = 'internal scratch']
  #allocation2 [shape = 'f32[2,32]{1,0:T(2,128)}', space=vmem, size = 0x400, scoped, tag = 'scratch operand']
  %s0 = inlined_call_operand.vmem [shape: bf16[2,16,32], index: 0, kind: input, shape index: {}]
  %s1 = inlined_call_operand.vmem [shape: f32[1,32], index: 1, kind: input, shape index: {}]
  %s2 = inlined_call_operand.vmem [shape: f32[1,32], index: 2, kind: input, shape index: {}]
  %s3 = inlined_call_operand.vmem [shape: f32[2,32], index: 3, kind: output, shape index: {}]
  %s4 = sld [smem:[#allocation0]]
  $region30: #{densenet_forward.26} parent=0
    _
  %s6 = ssub.s32 1, %s4
  %s7 = scalar_select 0, %s6, %s4
  // Predicated region
  $region2: #{densenet_forward.26} parent=0 // pred_check
    _
  $region3: #{densenet_forward.26} parent=0 // pred_check_branch
    %9 = sbr.rel (0) target = $region5
  $region4: #{densenet_forward.26} parent=0 // pred_region
    _
  $region5: #{densenet_forward.26} parent=0 // pred_fallthru
    _
  // Predicated region
  $region6: #{densenet_forward.26} parent=0 // pred_check
    _
  $region7: #{densenet_forward.26} parent=0 // pred_check_branch
    %11 = sbr.rel (0) target = $region9
  $region8: #{densenet_forward.26} parent=0 // pred_region
    _
  $region9: #{densenet_forward.26} parent=0 // pred_fallthru
    _
  // Predicated region
  $region10: #{densenet_forward.26} parent=0 // pred_check
    _
  $region11: #{densenet_forward.26} parent=0 // pred_check_branch
    %13 = sbr.rel (0) target = $region13
  $region12: #{densenet_forward.26} parent=0 // pred_region
    _
  $region13: #{densenet_forward.26} parent=0 // pred_fallthru
    _
  %p14 = scmp.eq.s32.totalorder 0, 0
  // Predicated region
  $region14: #{densenet_forward.26} parent=0 // pred_check
    %p15 = pneg %p14
  $region15: #{densenet_forward.26} parent=0 // pred_check_branch
    %17 = sbr.rel (%p15) target = $region17
  $region16: #{densenet_forward.26} parent=0 // pred_region
    %vm18 = vcmask 254976
    %19 = vst.msk [vmem:[#allocation2] sm:$0x3] %vm18, 0.0
  $region17: #{densenet_forward.26} parent=0 // pred_fallthru
    _
  %v20 = vld [vmem:[%s0] sm:$0xf]
  %v21 = vld [vmem:[%s0 + $0x4] sm:$0xf]
  %v22 = vld [vmem:[%s0 + $0x8] sm:$0xf]
  %v23 = vld [vmem:[%s0 + $0xc] sm:$0xf]
  %v24 = vunpack.c.l.bf16 %v20
  %v25 = vunpack.c.l.bf16 %v21
  %v26 = vunpack.c.l.bf16 %v22
  %v27 = vunpack.c.l.bf16 %v23
  %v28 = vld [vmem:[%s1] sm:$0x1]
  %v30 = vperm.slane %v28, 0
  %v32 = vmul.f32 %v24, %v30
  %v33 = vmul.f32 %v25, %v30
  %v34 = vmul.f32 %v26, %v30
  %v35 = vmul.f32 %v27, %v30
  %v36 = vld [vmem:[%s2] sm:$0x1]
  %v38 = vperm.slane %v36, 0
  %v40 = vadd.f32 %v32, %v38
  %v41 = vadd.f32 %v33, %v38
  %v42 = vadd.f32 %v34, %v38
  %v43 = vadd.f32 %v35, %v38
  %v44 = vmax.f32 %v40, 0.0
  %v45 = vmax.f32 %v41, 0.0
  %v46 = vmax.f32 %v42, 0.0
  %v47 = vmax.f32 %v43, 0.0
  %v48 = vld [vmem:[#allocation2] sm:$0x3]
  %vm49 = vcmask 261120
  %v50 = vsel %vm49, %v44, 0.0
  %v51 = vsel %vm49, %v45, 0.0
  %v52 = vadd.f32 %v50, %v51
  %v53 = vrot.slane %v52, 4
  %v54 = vadd.f32 %v52, %v53
  %v55 = vrot.slane %v54, 2
  %v56 = vadd.f32 %v54, %v55
  %v57 = vrot.slane %v56, 1
  %v58 = vadd.f32 %v56, %v57
  %v59 = vsel %vm49, %v46, 0.0
  %v60 = vsel %vm49, %v47, 0.0
  %v61 = vadd.f32 %v59, %v60
  %v62 = vrot.slane %v61, 4
  %v63 = vadd.f32 %v61, %v62
  %v64 = vrot.slane %v63, 2
  %v65 = vadd.f32 %v63, %v64
  %v66 = vrot.slane %v65, 1
  %v67 = vadd.f32 %v65, %v66
  %vm70 = vcmask 1041409
  %v71 = vsel %vm70, %v67, %v58
  %v73 = vadd.f32 %v48, %v71
  %vm74 = vcmask 254976
  %75 = vst.msk [vmem:[#allocation2] sm:$0x3] %vm74, %v73
  // Predicated region
  $region18: #{densenet_forward.26} parent=0 // pred_check
    %p76 = pneg %p14
  $region19: #{densenet_forward.26} parent=0 // pred_check_branch
    %78 = sbr.rel (%p76) target = $region21
  $region20: #{densenet_forward.26} parent=0 // pred_region
    %v79 = vld [vmem:[#allocation2] sm:$0x3]
    %v80 = vmul.f32 %v79, 0.0625
    %81 = vst.msk [vmem:[%s3] sm:$0x3] %vm74, %v80
  $region21: #{densenet_forward.26} parent=0 // pred_fallthru
    _
  // Predicated region
  $region22: #{densenet_forward.26} parent=0 // pred_check
    _
  $region23: #{densenet_forward.26} parent=0 // pred_check_branch
    %83 = sbr.rel (0) target = $region25
  $region24: #{densenet_forward.26} parent=0 // pred_region
    _
  $region25: #{densenet_forward.26} parent=0 // pred_fallthru
    _
  // Predicated region
  $region26: #{densenet_forward.26} parent=0 // pred_check
    _
  $region27: #{densenet_forward.26} parent=0 // pred_check_branch
    %85 = sbr.rel (0) target = $region29
  $region28: #{densenet_forward.26} parent=0 // pred_region
    _
  $region29: #{densenet_forward.26} parent=0 // pred_fallthru
    _

// kernel: densenet_forward.23
$region0: #{densenet_forward.23}
  #allocation0 [shape = 'u32[]', space=smem, size = 0x4, offset = 0x4, fixed_abs, tag = 'smem constant byte address 0x4 - core index']
  #allocation1 [shape = 'u32[72,128]{1,0:T(1,128)}', space=vmem, size = 0x9000, scoped, tag = 'internal scratch']
  #allocation2 [shape = 'f32[32,128]{1,0:T(8,128)}', space=vmem, size = 0x4000, scoped, tag = 'scratch operand']
  %s0 = inlined_call_operand.vmem [shape: bf16[32,384], index: 0, kind: input, shape index: {}]
  %s1 = inlined_call_operand.vmem [shape: bf16[384,128], index: 1, kind: input, shape index: {}]
  %s2 = inlined_call_operand.vmem [shape: bf16[32,128], index: 2, kind: output, shape index: {}]
  %s3 = sld [smem:[#allocation0]]
  $region26: #{densenet_forward.23} parent=0
    _
  %s5 = ssub.s32 1, %s3
  %s6 = scalar_select 0, %s5, %s3
  // Predicated region
  $region2: #{densenet_forward.23} parent=0 // pred_check
    _
  $region3: #{densenet_forward.23} parent=0 // pred_check_branch
    %8 = sbr.rel (0) target = $region5
  $region4: #{densenet_forward.23} parent=0 // pred_region
    _
  $region5: #{densenet_forward.23} parent=0 // pred_fallthru
    _
  // Predicated region
  $region6: #{densenet_forward.23} parent=0 // pred_check
    _
  $region7: #{densenet_forward.23} parent=0 // pred_check_branch
    %10 = sbr.rel (0) target = $region9
  $region8: #{densenet_forward.23} parent=0 // pred_region
    _
  $region9: #{densenet_forward.23} parent=0 // pred_fallthru
    _
  %p11 = scmp.eq.s32.totalorder 0, 0
  // Predicated region
  $region10: #{densenet_forward.23} parent=0 // pred_check
    %p12 = pneg %p11
  $region11: #{densenet_forward.23} parent=0 // pred_check_branch
    %14 = sbr.rel (%p12) target = $region13
  $region12: #{densenet_forward.23} parent=0 // pred_region
    %15 = vst [vmem:[#allocation2] sm:$0xff] 0.0
    %16 = vst [vmem:[#allocation2 + $0x8] sm:$0xff] 0.0
    %17 = vst [vmem:[#allocation2 + $0x10] sm:$0xff] 0.0
    %18 = vst [vmem:[#allocation2 + $0x18] sm:$0xff] 0.0
  $region13: #{densenet_forward.23} parent=0 // pred_fallthru
    _
  %v19 = vld [vmem:[%s0] sm:$0xff]
  %v20 = vld [vmem:[%s0 + $0x8] sm:$0xf]
  %v21 = vld [vmem:[%s0 + $0xc] sm:$0xff]
  %v22 = vld [vmem:[%s0 + $0x14] sm:$0xf]
  %v23 = vld [vmem:[%s0 + $0x18] sm:$0xff]
  %v24 = vld [vmem:[%s0 + $0x20] sm:$0xf]
  %v25 = vld [vmem:[%s0 + $0x24] sm:$0xff]
  %v26 = vld [vmem:[%s0 + $0x2c] sm:$0xf]
  %v27 = vld [vmem:[#allocation2] sm:$0xff]
  %v28 = vld [vmem:[#allocation2 + $0x8] sm:$0xff]
  %v29 = vld [vmem:[#allocation2 + $0x10] sm:$0xff]
  %v30 = vld [vmem:[#allocation2 + $0x18] sm:$0xff]
  %v31 = vld [vmem:[%s1] sm:$0xf]
  %v32 = vld [vmem:[%s1 + $0x4] sm:$0xf]
  %v33 = vld [vmem:[%s1 + $0x8] sm:$0xf]
  %v34 = vld [vmem:[%s1 + $0xc] sm:$0xf]
  %v35 = vld [vmem:[%s1 + $0x10] sm:$0xf]
  %v36 = vld [vmem:[%s1 + $0x14] sm:$0xf]
  %v37 = vld [vmem:[%s1 + $0x18] sm:$0xf]
  %v38 = vld [vmem:[%s1 + $0x1c] sm:$0xf]
  %v39 = vld [vmem:[%s1 + $0x20] sm:$0xf]
  %v40 = vld [vmem:[%s1 + $0x24] sm:$0xf]
  %v41 = vld [vmem:[%s1 + $0x28] sm:$0xf]
  %v42 = vld [vmem:[%s1 + $0x2c] sm:$0xf]
  %v43 = vld [vmem:[%s1 + $0x30] sm:$0xf]
  %v44 = vld [vmem:[%s1 + $0x34] sm:$0xf]
  %v45 = vld [vmem:[%s1 + $0x38] sm:$0xf]
  %v46 = vld [vmem:[%s1 + $0x3c] sm:$0xf]
  %v47 = vld [vmem:[%s1 + $0x40] sm:$0xf]
  %v48 = vld [vmem:[%s1 + $0x44] sm:$0xf]
  %v49 = vld [vmem:[%s1 + $0x48] sm:$0xf]
  %v50 = vld [vmem:[%s1 + $0x4c] sm:$0xf]
  %v51 = vld [vmem:[%s1 + $0x50] sm:$0xf]
  %v52 = vld [vmem:[%s1 + $0x54] sm:$0xf]
  %v53 = vld [vmem:[%s1 + $0x58] sm:$0xf]
  %v54 = vld [vmem:[%s1 + $0x5c] sm:$0xf]
  %v55 = vld [vmem:[%s1 + $0x60] sm:$0xf]
  %v56 = vld [vmem:[%s1 + $0x64] sm:$0xf]
  %v57 = vld [vmem:[%s1 + $0x68] sm:$0xf]
  %v58 = vld [vmem:[%s1 + $0x6c] sm:$0xf]
  %v59 = vld [vmem:[%s1 + $0x70] sm:$0xf]
  %v60 = vld [vmem:[%s1 + $0x74] sm:$0xf]
  %v61 = vld [vmem:[%s1 + $0x78] sm:$0xf]
  %v62 = vld [vmem:[%s1 + $0x7c] sm:$0xf]
  %v63 = vld [vmem:[%s1 + $0x80] sm:$0xf]
  %v64 = vld [vmem:[%s1 + $0x84] sm:$0xf]
  %v65 = vld [vmem:[%s1 + $0x88] sm:$0xf]
  %v66 = vld [vmem:[%s1 + $0x8c] sm:$0xf]
  %v67 = vld [vmem:[%s1 + $0x90] sm:$0xf]
  %v68 = vld [vmem:[%s1 + $0x94] sm:$0xf]
  %v69 = vld [vmem:[%s1 + $0x98] sm:$0xf]
  %v70 = vld [vmem:[%s1 + $0x9c] sm:$0xf]
  %v71 = vld [vmem:[%s1 + $0xa0] sm:$0xf]
  %v72 = vld [vmem:[%s1 + $0xa4] sm:$0xf]
  %v73 = vld [vmem:[%s1 + $0xa8] sm:$0xf]
  %v74 = vld [vmem:[%s1 + $0xac] sm:$0xf]
  %v75 = vld [vmem:[%s1 + $0xb0] sm:$0xf]
  %v76 = vld [vmem:[%s1 + $0xb4] sm:$0xf]
  %v77 = vld [vmem:[%s1 + $0xb8] sm:$0xf]
  %v78 = vld [vmem:[%s1 + $0xbc] sm:$0xf]
  %v87 = vunpack.c.l.b16 %v19
  %v88 = vunpack.c.h.b16 %v19
  %v89 = vunpack.c.l.b16 %v20
  %v90 = vunpack.c.l.b16 %v21
  %v91 = vunpack.c.h.b16 %v21
  %v92 = vunpack.c.l.b16 %v22
  %v93 = vunpack.c.l.b16 %v23
  %v94 = vunpack.c.h.b16 %v23
  %v95 = vunpack.c.l.b16 %v24
  %v96 = vunpack.c.l.b16 %v25
  %v97 = vunpack.c.h.b16 %v25
  %v98 = vunpack.c.l.b16 %v26
  %v99 = vpack.c.b16 %v90, %v87
  %v100 = vpack.c.b16 %v91, %v88
  %v101 = vpack.c.b16 %v92, %v89
  %v102 = vpack.c.b16 %v96, %v93
  %v103 = vpack.c.b16 %v97, %v94
  %v104 = vpack.c.b16 %v98, %v95
  %v159 = vunpack.c.l.b16 %v31
  %v160 = vunpack.c.l.b16 %v32
  %v161 = vunpack.c.l.b16 %v33
  %v162 = vunpack.c.l.b16 %v34
  %v163 = vunpack.c.l.b16 %v35
  %v164 = vunpack.c.l.b16 %v36
  %v165 = vunpack.c.l.b16 %v37
  %v166 = vunpack.c.l.b16 %v38
  %v167 = vunpack.c.l.b16 %v39
  %v168 = vunpack.c.l.b16 %v40
  %v169 = vunpack.c.l.b16 %v41
  %v170 = vunpack.c.l.b16 %v42
  %v171 = vunpack.c.l.b16 %v43
  %v172 = vunpack.c.l.b16 %v44
  %v173 = vunpack.c.l.b16 %v45
  %v174 = vunpack.c.l.b16 %v46
  %v175 = vunpack.c.l.b16 %v47
  %v176 = vunpack.c.l.b16 %v48
  %v177 = vunpack.c.l.b16 %v49
  %v178 = vunpack.c.l.b16 %v50
  %v179 = vunpack.c.l.b16 %v51
  %v180 = vunpack.c.l.b16 %v52
  %v181 = vunpack.c.l.b16 %v53
  %v182 = vunpack.c.l.b16 %v54
  %v183 = vunpack.c.l.b16 %v55
  %v184 = vunpack.c.l.b16 %v56
  %v185 = vunpack.c.l.b16 %v57
  %v186 = vunpack.c.l.b16 %v58
  %v187 = vunpack.c.l.b16 %v59
  %v188 = vunpack.c.l.b16 %v60
  %v189 = vunpack.c.l.b16 %v61
  %v190 = vunpack.c.l.b16 %v62
  %v191 = vunpack.c.l.b16 %v63
  %v192 = vunpack.c.l.b16 %v64
  %v193 = vunpack.c.l.b16 %v65
  %v194 = vunpack.c.l.b16 %v66
  %v195 = vunpack.c.l.b16 %v67
  %v196 = vunpack.c.l.b16 %v68
  %v197 = vunpack.c.l.b16 %v69
  %v198 = vunpack.c.l.b16 %v70
  %v199 = vunpack.c.l.b16 %v71
  %v200 = vunpack.c.l.b16 %v72
  %v201 = vunpack.c.l.b16 %v73
  %v202 = vunpack.c.l.b16 %v74
  %v203 = vunpack.c.l.b16 %v75
  %v204 = vunpack.c.l.b16 %v76
  %v205 = vunpack.c.l.b16 %v77
  %v206 = vunpack.c.l.b16 %v78
  %v207 = vpack.c.b16 %v160, %v159
  %v208 = vpack.c.b16 %v162, %v161
  %v209 = vpack.c.b16 %v164, %v163
  %v210 = vpack.c.b16 %v166, %v165
  %v211 = vpack.c.b16 %v168, %v167
  %v212 = vpack.c.b16 %v170, %v169
  %v213 = vpack.c.b16 %v172, %v171
  %v214 = vpack.c.b16 %v174, %v173
  %v215 = vpack.c.b16 %v176, %v175
  %v216 = vpack.c.b16 %v178, %v177
  %v217 = vpack.c.b16 %v180, %v179
  %v218 = vpack.c.b16 %v182, %v181
  %v219 = vpack.c.b16 %v184, %v183
  %v220 = vpack.c.b16 %v186, %v185
  %v221 = vpack.c.b16 %v188, %v187
  %v222 = vpack.c.b16 %v190, %v189
  %v223 = vpack.c.b16 %v192, %v191
  %v224 = vpack.c.b16 %v194, %v193
  %v225 = vpack.c.b16 %v196, %v195
  %v226 = vpack.c.b16 %v198, %v197
  %v227 = vpack.c.b16 %v200, %v199
  %v228 = vpack.c.b16 %v202, %v201
  %v229 = vpack.c.b16 %v204, %v203
  %v230 = vpack.c.b16 %v206, %v205
  %255 = vmatpush.bf16.msra.mxu0 %v214
  %256 = vmatpush.bf16.msra.mxu0 %v213
  %257 = vmatpush.bf16.msra.mxu0 %v212
  %258 = vmatpush.bf16.msra.mxu0 %v211
  %259 = vmatpush.bf16.msra.mxu0 %v210
  %260 = vmatpush.bf16.msra.mxu0 %v209
  %261 = vmatpush.bf16.msra.mxu0 %v208
  %262 = vmatpush.bf16.msra.mxu0 %v207
  %263 = vmatmul.bf16.gmra.mxu0 %v99
  %v264 = vpop.f32.mrf.mxu0
  %v265 = vadd.f32 0.0, %v264
  %v266 = vpop.f32.mrf.mxu0
  %v267 = vadd.f32 0.0, %v266
  %268 = vmatmul.bf16.gmra.mxu0 %v102
  %v269 = vpop.f32.mrf.mxu0
  %v270 = vadd.f32 0.0, %v269
  %v271 = vpop.f32.mrf.mxu0
  %v272 = vadd.f32 0.0, %v271
  %273 = vdwg.mxu0
  %274 = vmatpush.bf16.msra.mxu0 %v222
  %275 = vmatpush.bf16.msra.mxu0 %v221
  %276 = vmatpush.bf16.msra.mxu0 %v220
  %277 = vmatpush.bf16.msra.mxu0 %v219
  %278 = vmatpush.bf16.msra.mxu0 %v218
  %279 = vmatpush.bf16.msra.mxu0 %v217
  %280 = vmatpush.bf16.msra.mxu0 %v216
  %281 = vmatpush.bf16.msra.mxu0 %v215
  %282 = vmatmul.bf16.gmra.mxu0 %v100
  %v283 = vpop.f32.mrf.mxu0
  %v284 = vadd.f32 %v265, %v283
  %v285 = vpop.f32.mrf.mxu0
  %v286 = vadd.f32 %v267, %v285
  %287 = vmatmul.bf16.gmra.mxu0 %v103
  %v288 = vpop.f32.mrf.mxu0
  %v289 = vadd.f32 %v270, %v288
  %v290 = vpop.f32.mrf.mxu0
  %v291 = vadd.f32 %v272, %v290
  %292 = vdwg.mxu0
  %293 = vmatpush.bf16.msra.mxu0 %v230
  %294 = vmatpush.bf16.msra.mxu0 %v229
  %295 = vmatpush.bf16.msra.mxu0 %v228
  %296 = vmatpush.bf16.msra.mxu0 %v227
  %297 = vmatpush.bf16.msra.mxu0 %v226
  %298 = vmatpush.bf16.msra.mxu0 %v225
  %299 = vmatpush.bf16.msra.mxu0 %v224
  %300 = vmatpush.bf16.msra.mxu0 %v223
  %301 = vmatmul.bf16.gmra.mxu0 %v101
  %v302 = vpop.f32.mrf.mxu0
  %v303 = vadd.f32 %v284, %v302
  %v304 = vpop.f32.mrf.mxu0
  %v305 = vadd.f32 %v286, %v304
  %306 = vmatmul.bf16.gmra.mxu0 %v104
  %v307 = vpop.f32.mrf.mxu0
  %v308 = vadd.f32 %v289, %v307
  %v309 = vpop.f32.mrf.mxu0
  %v310 = vadd.f32 %v291, %v309
  %311 = vdwg.mxu0
  %v312 = vadd.f32 %v27, %v303
  %v313 = vadd.f32 %v28, %v305
  %v314 = vadd.f32 %v29, %v308
  %v315 = vadd.f32 %v30, %v310
  %316 = vst [vmem:[#allocation2] sm:$0xff] %v312
  %317 = vst [vmem:[#allocation2 + $0x8] sm:$0xff] %v313
  %318 = vst [vmem:[#allocation2 + $0x10] sm:$0xff] %v314
  %319 = vst [vmem:[#allocation2 + $0x18] sm:$0xff] %v315
  // Predicated region
  $region14: #{densenet_forward.23} parent=0 // pred_check
    %p320 = pneg %p11
  $region15: #{densenet_forward.23} parent=0 // pred_check_branch
    %322 = sbr.rel (%p320) target = $region17
  $region16: #{densenet_forward.23} parent=0 // pred_region
    %v323 = vld [vmem:[#allocation2] sm:$0xff]
    %v324 = vld [vmem:[#allocation2 + $0x8] sm:$0xff]
    %v325 = vld [vmem:[#allocation2 + $0x10] sm:$0xff]
    %v326 = vld [vmem:[#allocation2 + $0x18] sm:$0xff]
    %v327 = vpack.c.bf16 %v323, %v323
    %v328 = vpack.c.bf16 %v324, %v324
    %v329 = vpack.c.bf16 %v325, %v325
    %v330 = vpack.c.bf16 %v326, %v326
    %331 = vst [vmem:[%s2] sm:$0xf] %v327
    %332 = vst [vmem:[%s2 + $0x4] sm:$0xf] %v328
    %333 = vst [vmem:[%s2 + $0x8] sm:$0xf] %v329
    %334 = vst [vmem:[%s2 + $0xc] sm:$0xf] %v330
  $region17: #{densenet_forward.23} parent=0 // pred_fallthru
    _
  // Predicated region
  $region18: #{densenet_forward.23} parent=0 // pred_check
    _
  $region19: #{densenet_forward.23} parent=0 // pred_check_branch
    %336 = sbr.rel (0) target = $region21
  $region20: #{densenet_forward.23} parent=0 // pred_region
    _
  $region21: #{densenet_forward.23} parent=0 // pred_fallthru
    _
  // Predicated region
  $region22: #{densenet_forward.23} parent=0 // pred_check
    _
  $region23: #{densenet_forward.23} parent=0 // pred_check_branch
    %338 = sbr.rel (0) target = $region25
  $region24: #{densenet_forward.23} parent=0 // pred_region
    _
  $region25: #{densenet_forward.23} parent=0 // pred_fallthru
    _

// kernel: densenet_forward.27
$region0: #{densenet_forward.27}
  #allocation0 [shape = 'u32[]', space=smem, size = 0x4, offset = 0x4, fixed_abs, tag = 'smem constant byte address 0x4 - core index']
  #allocation1 [shape = 'u32[72,128]{1,0:T(1,128)}', space=vmem, size = 0x9000, scoped, tag = 'internal scratch']
  #allocation2 [shape = 'f32[16,128]{1,0:T(8,128)}', space=vmem, size = 0x2000, scoped, tag = 'scratch operand']
  %s0 = inlined_call_operand.vmem [shape: bf16[16,128], index: 0, kind: input, shape index: {}]
  %s1 = inlined_call_operand.vmem [shape: bf16[128,128], index: 1, kind: input, shape index: {}]
  %s2 = inlined_call_operand.vmem [shape: f32[1,128], index: 2, kind: input, shape index: {}]
  %s3 = inlined_call_operand.vmem [shape: f32[16,128], index: 3, kind: output, shape index: {}]
  %s4 = sld [smem:[#allocation0]]
  $region30: #{densenet_forward.27} parent=0
    _
  %s6 = ssub.s32 1, %s4
  %s7 = scalar_select 0, %s6, %s4
  // Predicated region
  $region2: #{densenet_forward.27} parent=0 // pred_check
    _
  $region3: #{densenet_forward.27} parent=0 // pred_check_branch
    %9 = sbr.rel (0) target = $region5
  $region4: #{densenet_forward.27} parent=0 // pred_region
    _
  $region5: #{densenet_forward.27} parent=0 // pred_fallthru
    _
  // Predicated region
  $region6: #{densenet_forward.27} parent=0 // pred_check
    _
  $region7: #{densenet_forward.27} parent=0 // pred_check_branch
    %11 = sbr.rel (0) target = $region9
  $region8: #{densenet_forward.27} parent=0 // pred_region
    _
  $region9: #{densenet_forward.27} parent=0 // pred_fallthru
    _
  // Predicated region
  $region10: #{densenet_forward.27} parent=0 // pred_check
    _
  $region11: #{densenet_forward.27} parent=0 // pred_check_branch
    %13 = sbr.rel (0) target = $region13
  $region12: #{densenet_forward.27} parent=0 // pred_region
    _
  $region13: #{densenet_forward.27} parent=0 // pred_fallthru
    _
  %p14 = scmp.eq.s32.totalorder 0, 0
  // Predicated region
  $region14: #{densenet_forward.27} parent=0 // pred_check
    %p15 = pneg %p14
  $region15: #{densenet_forward.27} parent=0 // pred_check_branch
    %17 = sbr.rel (%p15) target = $region17
  $region16: #{densenet_forward.27} parent=0 // pred_region
    %18 = vst [vmem:[#allocation2] sm:$0xff] 0.0
    %19 = vst [vmem:[#allocation2 + $0x8] sm:$0xff] 0.0
  $region17: #{densenet_forward.27} parent=0 // pred_fallthru
    _
  %v20 = vld [vmem:[%s0] sm:$0xf]
  %v21 = vld [vmem:[%s0 + $0x4] sm:$0xf]
  %v22 = vld [vmem:[#allocation2] sm:$0xff]
  %v23 = vld [vmem:[#allocation2 + $0x8] sm:$0xff]
  %v24 = vld [vmem:[%s1] sm:$0xf]
  %v25 = vld [vmem:[%s1 + $0x4] sm:$0xf]
  %v26 = vld [vmem:[%s1 + $0x8] sm:$0xf]
  %v27 = vld [vmem:[%s1 + $0xc] sm:$0xf]
  %v28 = vld [vmem:[%s1 + $0x10] sm:$0xf]
  %v29 = vld [vmem:[%s1 + $0x14] sm:$0xf]
  %v30 = vld [vmem:[%s1 + $0x18] sm:$0xf]
  %v31 = vld [vmem:[%s1 + $0x1c] sm:$0xf]
  %v32 = vld [vmem:[%s1 + $0x20] sm:$0xf]
  %v33 = vld [vmem:[%s1 + $0x24] sm:$0xf]
  %v34 = vld [vmem:[%s1 + $0x28] sm:$0xf]
  %v35 = vld [vmem:[%s1 + $0x2c] sm:$0xf]
  %v36 = vld [vmem:[%s1 + $0x30] sm:$0xf]
  %v37 = vld [vmem:[%s1 + $0x34] sm:$0xf]
  %v38 = vld [vmem:[%s1 + $0x38] sm:$0xf]
  %v39 = vld [vmem:[%s1 + $0x3c] sm:$0xf]
  %v42 = vunpack.c.l.b16 %v20
  %v43 = vunpack.c.l.b16 %v21
  %v44 = vpack.c.b16 %v43, %v42
  %v62 = vunpack.c.l.b16 %v24
  %v63 = vunpack.c.l.b16 %v25
  %v64 = vunpack.c.l.b16 %v26
  %v65 = vunpack.c.l.b16 %v27
  %v66 = vunpack.c.l.b16 %v28
  %v67 = vunpack.c.l.b16 %v29
  %v68 = vunpack.c.l.b16 %v30
  %v69 = vunpack.c.l.b16 %v31
  %v70 = vunpack.c.l.b16 %v32
  %v71 = vunpack.c.l.b16 %v33
  %v72 = vunpack.c.l.b16 %v34
  %v73 = vunpack.c.l.b16 %v35
  %v74 = vunpack.c.l.b16 %v36
  %v75 = vunpack.c.l.b16 %v37
  %v76 = vunpack.c.l.b16 %v38
  %v77 = vunpack.c.l.b16 %v39
  %v78 = vpack.c.b16 %v63, %v62
  %v79 = vpack.c.b16 %v65, %v64
  %v80 = vpack.c.b16 %v67, %v66
  %v81 = vpack.c.b16 %v69, %v68
  %v82 = vpack.c.b16 %v71, %v70
  %v83 = vpack.c.b16 %v73, %v72
  %v84 = vpack.c.b16 %v75, %v74
  %v85 = vpack.c.b16 %v77, %v76
  %94 = vmatpush.bf16.msra.mxu0 %v85
  %95 = vmatpush.bf16.msra.mxu0 %v84
  %96 = vmatpush.bf16.msra.mxu0 %v83
  %97 = vmatpush.bf16.msra.mxu0 %v82
  %98 = vmatpush.bf16.msra.mxu0 %v81
  %99 = vmatpush.bf16.msra.mxu0 %v80
  %100 = vmatpush.bf16.msra.mxu0 %v79
  %101 = vmatpush.bf16.msra.mxu0 %v78
  %102 = vmatmul.bf16.gmra.mxu0 %v44
  %v103 = vpop.f32.mrf.mxu0
  %v104 = vadd.f32 0.0, %v103
  %v105 = vpop.f32.mrf.mxu0
  %v106 = vadd.f32 0.0, %v105
  %107 = vdwg.mxu0
  %v108 = vadd.f32 %v22, %v104
  %v109 = vadd.f32 %v23, %v106
  %110 = vst [vmem:[#allocation2] sm:$0xff] %v108
  %111 = vst [vmem:[#allocation2 + $0x8] sm:$0xff] %v109
  // Predicated region
  $region18: #{densenet_forward.27} parent=0 // pred_check
    %p112 = pneg %p14
  $region19: #{densenet_forward.27} parent=0 // pred_check_branch
    %114 = sbr.rel (%p112) target = $region21
  $region20: #{densenet_forward.27} parent=0 // pred_region
    %v115 = vld [vmem:[#allocation2] sm:$0xff]
    %v116 = vld [vmem:[#allocation2 + $0x8] sm:$0xff]
    %v117 = vld [vmem:[%s2] sm:$0x1]
    %v119 = vperm.slane %v117, 0
    %v121 = vadd.f32 %v115, %v119
    %v122 = vadd.f32 %v116, %v119
    %123 = vst [vmem:[%s3] sm:$0xff] %v121
    %124 = vst [vmem:[%s3 + $0x8] sm:$0xff] %v122
  $region21: #{densenet_forward.27} parent=0 // pred_fallthru
    _
  // Predicated region
  $region22: #{densenet_forward.27} parent=0 // pred_check
    _
  $region23: #{densenet_forward.27} parent=0 // pred_check_branch
    %126 = sbr.rel (0) target = $region25
  $region24: #{densenet_forward.27} parent=0 // pred_region
    _
  $region25: #{densenet_forward.27} parent=0 // pred_fallthru
    _
  // Predicated region
  $region26: #{densenet_forward.27} parent=0 // pred_check
    _
  $region27: #{densenet_forward.27} parent=0 // pred_check_branch
    %128 = sbr.rel (0) target = $region29
  $region28: #{densenet_forward.27} parent=0 // pred_region
    _
  $region29: #{densenet_forward.27} parent=0 // pred_fallthru
    _

</llo_original>
